<compile_context>
chip_gen: v6e
topology: v6e:2x2x1
jax: 0.10.0
libtpu: 0.0.40
codegen_flags: <defaults>
</compile_context>

<pallas_src>
import math
from functools import partial

import jax
import jax.numpy as jnp
from jax.experimental import pallas as pl
from jax.experimental.pallas import tpu as pltpu


# ------------------------------ fused model kernel ------------------------------

def _model_kernel(h0_ref, negmask_ref, emb_g_ref, emb_b_ref,
                  wqkv_ref, bqkv_ref, wo_ref, bo_ref, ln1_g_ref, ln1_b_ref,
                  w1_ref, b1_ref, w2_ref, b2_ref, ln2_g_ref, ln2_b_ref,
                  cls_g_ref, cls_b_ref, wc_ref, bc_ref,
                  out_ref,
                  *, num_layers, num_heads, eps):
    S, H = h0_ref.shape
    NH = num_heads
    D = H // NH

    def layer_norm(x, g, b):
        mu = jnp.mean(x, axis=-1, keepdims=True)
        var = jnp.mean(jnp.square(x - mu), axis=-1, keepdims=True)
        return (x - mu) * jax.lax.rsqrt(var + eps) * g + b

    def matmul2d(x, w_bf16, bias):
        # bf16 MXU inputs, f32 accumulation, f32 bias add.
        return jnp.dot(x.astype(jnp.bfloat16), w_bf16,
                       preferred_element_type=jnp.float32) + bias

    def bdot(a, b):
        # (G, M, K) @ (G, K, N) -> (G, M, N), batch over leading dim, f32 accumulation.
        return jax.lax.dot_general(a, b, (((2,), (1,)), ((0,), (0,))),
                                   preferred_element_type=jnp.float32)

    h = layer_norm(h0_ref[...], emb_g_ref[...], emb_b_ref[...])        # (S, H) f32, VMEM-resident
    neg_mask = negmask_ref[...]                                        # (1, 1, S) additive mask

    for l in range(num_layers):                                        # static unroll (tiny L)
        # --- self-attention, head-batched (batch dim = 3*NH), no lane slicing / concat ---
        hb = jnp.broadcast_to(h.astype(jnp.bfloat16), (3 * NH, S, H))
        qkv = bdot(hb, wqkv_ref[l]) + bqkv_ref[l]                      # (3NH, S, D) f32
        q = qkv[0:NH]                                                  # leading-dim (tile) slices
        k = qkv[NH:2 * NH]
        v = qkv[2 * NH:3 * NH]

        # scores: contract D directly (no materialized k^T); 1/sqrt(D) pre-folded into Wq
        s = jax.lax.dot_general(q, k, (((2,), (2,)), ((0,), (0,))),
                                preferred_element_type=jnp.float32)    # (NH, S, S)
        s = s + neg_mask
        m = jnp.max(s, axis=-1, keepdims=True)
        p = jnp.exp(s - m)
        denom = jnp.sum(p, axis=-1, keepdims=True)                     # >= 1 (max term is exp(0))
        p = p * pl.reciprocal(denom, approx=True)                      # EUP reciprocal

        ctx = bdot(p, v)                                               # (NH, S, D)

        # per-head output projection, then cheap sum over the head axis (no lane concat)
        per_head = bdot(ctx.astype(jnp.bfloat16), wo_ref[l])           # (NH, S, H)
        attn_out = jnp.sum(per_head, axis=0) + bo_ref[l]               # (S, H)
        h = layer_norm(h + attn_out, ln1_g_ref[l], ln1_b_ref[l])       # residual + LN fused

        # --- feed-forward: w1 + GELU(tanh, EUP) + w2 + residual + LN fused ---
        ffn = matmul2d(h, w1_ref[l], b1_ref[l])
        ffn = jax.nn.gelu(ffn, approximate=True)                       # small deviation vs erf GELU
        ffn = matmul2d(ffn, w2_ref[l], b2_ref[l])
        h = layer_norm(h + ffn, ln2_g_ref[l], ln2_b_ref[l])

    # --- pooled CLS token + classification head; one coalesced (1, H+C) store ---
    emb = h[0:1, :]                                                    # last_hidden_state[:, 0, :]
    y = layer_norm(emb, cls_g_ref[...], cls_b_ref[...])
    # Dropout is identity at inference.
    cls = matmul2d(y, wc_ref[...], bc_ref[...])                        # (1, C)
    out_ref[...] = jnp.concatenate([emb, cls], axis=-1)                # (1, H + C)


# ------------------------------ model definition ------------------------------

CFG = dict(
    vocab=128,
    hidden=32,
    num_layers=2,
    num_heads=4,
    intermediate=64,
    max_pos=16,
    n_output_normal=4,
)


def init_params(key, cfg):
    """'Natural' BERT-style parameter shapes (as AutoModel would hold them), f32."""
    H, I, L = cfg["hidden"], cfg["intermediate"], cfg["num_layers"]
    C = cfg["n_output_normal"]
    keys = iter(jax.random.split(key, 32))

    def w(shape):
        return 0.02 * jax.random.normal(next(keys), shape, jnp.float32)

    zeros = lambda shape: jnp.zeros(shape, jnp.float32)
    ones = lambda shape: jnp.ones(shape, jnp.float32)

    return {
        "word_emb": w((cfg["vocab"], H)),
        "pos_emb": w((cfg["max_pos"], H)),
        "type_emb": w((2, H)),
        "emb_g": ones((H,)), "emb_b": zeros((H,)),
        "wq": w((L, H, H)), "bq": zeros((L, H)),
        "wk": w((L, H, H)), "bk": zeros((L, H)),
        "wv": w((L, H, H)), "bv": zeros((L, H)),
        "wo": w((L, H, H)), "bo": zeros((L, H)),
        "ln1_g": ones((L, H)), "ln1_b": zeros((L, H)),
        "w1": w((L, H, I)), "b1": zeros((L, I)),
        "w2": w((L, I, H)), "b2": zeros((L, H)),
        "ln2_g": ones((L, H)), "ln2_b": zeros((L, H)),
        "cls_ln_g": ones((H,)), "cls_ln_b": zeros((H,)),
        "wc": w((H, C)), "bc": zeros((C,)),
    }


def pack_params(p, cfg):
    """One-time host-side layout plumbing for the kernel:
    head-major QKV / WO layouts, 1/sqrt(D) folded into the Q projection (f32), bf16 MXU weights."""
    H, I, L = cfg["hidden"], cfg["intermediate"], cfg["num_layers"]
    C = cfg["n_output_normal"]
    NH = cfg["num_heads"]
    D = H // NH
    scale = 1.0 / math.sqrt(D)
    wdt = jnp.bfloat16  # matmul weights in bf16 (MXU); biases / LN params stay f32

    def heads_w(w):   # (L, H, H) -> (L, NH, H, D), head-major output columns
        return jnp.transpose(w.reshape(L, H, NH, D), (0, 2, 1, 3))

    def heads_b(b):   # (L, H) -> (L, NH, 1, D)
        return b.reshape(L, NH, 1, D)

    wqkv = jnp.stack([heads_w(p["wq"] * scale), heads_w(p["wk"]), heads_w(p["wv"])],
                     axis=1).reshape(L, 3 * NH, H, D).astype(wdt)
    bqkv = jnp.stack([heads_b(p["bq"] * scale), heads_b(p["bk"]), heads_b(p["bv"])],
                     axis=1).reshape(L, 3 * NH, 1, D).astype(jnp.float32)

    return {
        "word_emb": p["word_emb"], "pos_emb": p["pos_emb"], "type_emb": p["type_emb"],
        "emb_g": p["emb_g"].reshape(1, H), "emb_b": p["emb_b"].reshape(1, H),
        "wqkv": wqkv, "bqkv": bqkv,
        "wo": p["wo"].reshape(L, NH, D, H).astype(wdt),
        "bo": p["bo"].reshape(L, 1, H),
        "ln1_g": p["ln1_g"].reshape(L, 1, H), "ln1_b": p["ln1_b"].reshape(L, 1, H),
        "w1": p["w1"].astype(wdt), "b1": p["b1"].reshape(L, 1, I),
        "w2": p["w2"].astype(wdt), "b2": p["b2"].reshape(L, 1, H),
        "ln2_g": p["ln2_g"].reshape(L, 1, H), "ln2_b": p["ln2_b"].reshape(L, 1, H),
        "cls_ln_g": p["cls_ln_g"].reshape(1, H), "cls_ln_b": p["cls_ln_b"].reshape(1, H),
        "wc": p["wc"].astype(wdt), "bc": p["bc"].reshape(1, C),
    }


def _nbytes(x):
    return math.prod(x.shape) * jnp.dtype(x.dtype).itemsize


def forward(kp, ids, mask, cfg):
    """Equivalent of BaseArchitecture.forward({'ids': ids, 'mask': mask})."""
    B, S = ids.shape
    H, L, I = cfg["hidden"], cfg["num_layers"], cfg["intermediate"]
    NH = cfg["num_heads"]
    D = H // NH
    C = cfg["n_output_normal"]

    # glue: embedding gather + position/type embeddings (plain JAX indexing)
    # TODO(synk): the vocab-table gather could move in-kernel (ids via scalar prefetch in SMEM,
    # tables resident in VMEM); minor at B=2, left to XLA here.
    h0 = (kp["word_emb"][ids]
          + kp["pos_emb"][None, :S, :]
          + kp["type_emb"][0][None, None, :]).astype(jnp.float32)           # (B, S, H)

    # additive attention mask, computed ONCE (shared by all layers / heads)
    neg_mask = ((mask.astype(jnp.float32) - 1.0) * 1e9).reshape(B, 1, 1, S)  # (B, 1, 1, S)

    kernel = partial(_model_kernel, num_layers=L, num_heads=NH, eps=1e-12)

    operands = (
        h0, neg_mask,
        kp["emb_g"], kp["emb_b"],
        kp["wqkv"], kp["bqkv"], kp["wo"], kp["bo"], kp["ln1_g"], kp["ln1_b"],
        kp["w1"], kp["b1"], kp["w2"], kp["b2"], kp["ln2_g"], kp["ln2_b"],
        kp["cls_ln_g"], kp["cls_ln_b"], kp["wc"], kp["bc"],
    )

    c2 = lambda b: (0, 0)
    c3 = lambda b: (0, 0, 0)
    c4 = lambda b: (0, 0, 0, 0)

    in_specs = [
        pl.BlockSpec((None, S, H), lambda b: (b, 0, 0)),            # h0 (per-sequence block)
        pl.BlockSpec((None, 1, 1, S), lambda b: (b, 0, 0, 0)),      # additive mask
        pl.BlockSpec((1, H), c2), pl.BlockSpec((1, H), c2),         # emb LN gamma/beta
        pl.BlockSpec((L, 3 * NH, H, D), c4),                        # wqkv (head-major, resident)
        pl.BlockSpec((L, 3 * NH, 1, D), c4),                        # bqkv
        pl.BlockSpec((L, NH, D, H), c4),                            # wo (head-major)
        pl.BlockSpec((L, 1, H), c3),                                # bo
        pl.BlockSpec((L, 1, H), c3), pl.BlockSpec((L, 1, H), c3),   # ln1 gamma/beta
        pl.BlockSpec((L, H, I), c3), pl.BlockSpec((L, 1, I), c3),   # w1, b1
        pl.BlockSpec((L, I, H), c3), pl.BlockSpec((L, 1, H), c3),   # w2, b2
        pl.BlockSpec((L, 1, H), c3), pl.BlockSpec((L, 1, H), c3),   # ln2 gamma/beta
        pl.BlockSpec((1, H), c2), pl.BlockSpec((1, H), c2),         # cls LN gamma/beta
        pl.BlockSpec((H, C), c2), pl.BlockSpec((1, C), c2),         # wc, bc
    ]

    # VMEM budget from the actual operand/output footprint (double-buffered I/O + headroom),
    # instead of a hard-coded constant; stays well under v7x's 64 MiB physical VMEM.
    total_bytes = sum(_nbytes(x) for x in operands) + B * (H + C) * 4
    vmem_limit = min(4 * total_bytes + 8 * 1024 * 1024, 64 * 1024 * 1024)

    out = pl.pallas_call(
        kernel,
        out_shape=jax.ShapeDtypeStruct((B, 1, H + C), jnp.float32),
        grid=(B,),                                                  # B=2 -> 2 parallel steps
        in_specs=in_specs,
        out_specs=pl.BlockSpec((None, 1, H + C), lambda b: (b, 0, 0)),
        compiler_params=pltpu.CompilerParams(
            dimension_semantics=("parallel",),                      # v7x: both TCs take a sequence
            vmem_limit_bytes=int(vmem_limit),
        ),
    )(*operands)

    emb_out = out[:, 0, :H]       # embedding_output (CLS token)
    cls_out = out[:, 0, H:]       # classification_output
    return cls_out, emb_out


# ----------------------------------- main -----------------------------------

if __name__ == "__main__":
    key = jax.random.PRNGKey(0)
    k_param, k_ids = jax.random.split(key)

    B, S = 2, 8
    params = init_params(k_param, CFG)
    kparams = pack_params(params, CFG)     # one-time host-side layout prep (scale fold, bf16 cast)

    ids = jax.random.randint(k_ids, (B, S), 0, CFG["vocab"], dtype=jnp.int32)
    lengths = jnp.array([8, 5], dtype=jnp.int32)          # sequence lengths 8 and 5
    mask = (jnp.arange(S)[None, :] < lengths[:, None]).astype(jnp.int32)

    fwd = jax.jit(lambda kp, i, m: forward(kp, i, m, CFG))
    cls_out, emb_out = fwd(kparams, ids, mask)
    jax.block_until_ready((cls_out, emb_out))

    assert cls_out.shape == (B, CFG["n_output_normal"])
    assert emb_out.shape == (B, CFG["hidden"])
    assert bool(jnp.all(jnp.isfinite(cls_out))) and bool(jnp.all(jnp.isfinite(emb_out)))
    print("KERNEL_OK")
</pallas_src>

<mosaic_0001>
module attributes {stable_mosaic.version = 11 : i64} {
  func.func @_model_kernel(%arg0: i32, %arg1: memref<1x8x32xf32, #tpu.memory_space<vmem>>, %arg2: memref<1x1x1x8xf32, #tpu.memory_space<vmem>>, %arg3: memref<1x32xf32, #tpu.memory_space<vmem>>, %arg4: memref<1x32xf32, #tpu.memory_space<vmem>>, %arg5: memref<2x12x32x8xbf16, #tpu.memory_space<vmem>>, %arg6: memref<2x12x1x8xf32, #tpu.memory_space<vmem>>, %arg7: memref<2x4x8x32xbf16, #tpu.memory_space<vmem>>, %arg8: memref<2x1x32xf32, #tpu.memory_space<vmem>>, %arg9: memref<2x1x32xf32, #tpu.memory_space<vmem>>, %arg10: memref<2x1x32xf32, #tpu.memory_space<vmem>>, %arg11: memref<2x32x64xbf16, #tpu.memory_space<vmem>>, %arg12: memref<2x1x64xf32, #tpu.memory_space<vmem>>, %arg13: memref<2x64x32xbf16, #tpu.memory_space<vmem>>, %arg14: memref<2x1x32xf32, #tpu.memory_space<vmem>>, %arg15: memref<2x1x32xf32, #tpu.memory_space<vmem>>, %arg16: memref<2x1x32xf32, #tpu.memory_space<vmem>>, %arg17: memref<1x32xf32, #tpu.memory_space<vmem>>, %arg18: memref<1x32xf32, #tpu.memory_space<vmem>>, %arg19: memref<32x4xbf16, #tpu.memory_space<vmem>>, %arg20: memref<1x4xf32, #tpu.memory_space<vmem>>, %arg21: memref<1x1x36xf32, #tpu.memory_space<vmem>>) attributes {dimension_semantics = [#tpu.dimension_semantics<parallel>], iteration_bounds = array<i64: 2>, scalar_prefetch = 0 : i64, scratch_operands = 0 : i64, tpu.core_type = #tpu.core_type<tc>, window_params = [{transform_indices = @transform_0, window_bounds = array<i64: 1, 8, 32>}, {transform_indices = @transform_1, window_bounds = array<i64: 1, 1, 1, 8>}, {pipeline_mode = #tpu.pipeline_mode<synchronous>, transform_indices = @transform_2, window_bounds = array<i64: 1, 32>}, {pipeline_mode = #tpu.pipeline_mode<synchronous>, transform_indices = @transform_3, window_bounds = array<i64: 1, 32>}, {pipeline_mode = #tpu.pipeline_mode<synchronous>, transform_indices = @transform_4, window_bounds = array<i64: 2, 12, 32, 8>}, {pipeline_mode = #tpu.pipeline_mode<synchronous>, transform_indices = @transform_5, window_bounds = array<i64: 2, 12, 1, 8>}, {pipeline_mode = #tpu.pipeline_mode<synchronous>, transform_indices = @transform_6, window_bounds = array<i64: 2, 4, 8, 32>}, {pipeline_mode = #tpu.pipeline_mode<synchronous>, transform_indices = @transform_7, window_bounds = array<i64: 2, 1, 32>}, {pipeline_mode = #tpu.pipeline_mode<synchronous>, transform_indices = @transform_8, window_bounds = array<i64: 2, 1, 32>}, {pipeline_mode = #tpu.pipeline_mode<synchronous>, transform_indices = @transform_9, window_bounds = array<i64: 2, 1, 32>}, {pipeline_mode = #tpu.pipeline_mode<synchronous>, transform_indices = @transform_10, window_bounds = array<i64: 2, 32, 64>}, {pipeline_mode = #tpu.pipeline_mode<synchronous>, transform_indices = @transform_11, window_bounds = array<i64: 2, 1, 64>}, {pipeline_mode = #tpu.pipeline_mode<synchronous>, transform_indices = @transform_12, window_bounds = array<i64: 2, 64, 32>}, {pipeline_mode = #tpu.pipeline_mode<synchronous>, transform_indices = @transform_13, window_bounds = array<i64: 2, 1, 32>}, {pipeline_mode = #tpu.pipeline_mode<synchronous>, transform_indices = @transform_14, window_bounds = array<i64: 2, 1, 32>}, {pipeline_mode = #tpu.pipeline_mode<synchronous>, transform_indices = @transform_15, window_bounds = array<i64: 2, 1, 32>}, {pipeline_mode = #tpu.pipeline_mode<synchronous>, transform_indices = @transform_16, window_bounds = array<i64: 1, 32>}, {pipeline_mode = #tpu.pipeline_mode<synchronous>, transform_indices = @transform_17, window_bounds = array<i64: 1, 32>}, {pipeline_mode = #tpu.pipeline_mode<synchronous>, transform_indices = @transform_18, window_bounds = array<i64: 32, 4>}, {pipeline_mode = #tpu.pipeline_mode<synchronous>, transform_indices = @transform_19, window_bounds = array<i64: 1, 4>}, {transform_indices = @transform_20, window_bounds = array<i64: 1, 1, 36>}]} {
    %c0 = arith.constant 0 : index
    %c0_0 = arith.constant 0 : index
    %c0_1 = arith.constant 0 : index
    %0 = vector.load %arg1[%c0, %c0_0, %c0_1] : memref<1x8x32xf32, #tpu.memory_space<vmem>>, vector<1x8x32xf32>
    %1 = vector.shape_cast %0 : vector<1x8x32xf32> to vector<8x32xf32>
    %c0_2 = arith.constant 0 : index
    %c0_3 = arith.constant 0 : index
    %2 = vector.load %arg3[%c0_2, %c0_3] : memref<1x32xf32, #tpu.memory_space<vmem>>, vector<1x32xf32>
    %c0_4 = arith.constant 0 : index
    %c0_5 = arith.constant 0 : index
    %3 = vector.load %arg4[%c0_4, %c0_5] : memref<1x32xf32, #tpu.memory_space<vmem>>, vector<1x32xf32>
    %cst = arith.constant dense<0.000000e+00> : vector<8xf32>
    %4 = vector.multi_reduction <add>, %1, %cst [1] : vector<8x32xf32> to vector<8xf32>
    %5 = vector.shape_cast %4 : vector<8xf32> to vector<8x1xf32>
    %cst_6 = arith.constant 3.200000e+01 : f32
    %6 = vector.broadcast %cst_6 : f32 to vector<8x1xf32>
    %7 = arith.divf %5, %6 : vector<8x1xf32>
    %8 = vector.broadcast %7 : vector<8x1xf32> to vector<8x32xf32>
    %9 = arith.subf %1, %8 : vector<8x32xf32>
    %10 = arith.mulf %9, %9 : vector<8x32xf32>
    %cst_7 = arith.constant dense<0.000000e+00> : vector<8xf32>
    %11 = vector.multi_reduction <add>, %10, %cst_7 [1] : vector<8x32xf32> to vector<8xf32>
    %12 = vector.shape_cast %11 : vector<8xf32> to vector<8x1xf32>
    %cst_8 = arith.constant 3.200000e+01 : f32
    %13 = vector.broadcast %cst_8 : f32 to vector<8x1xf32>
    %14 = arith.divf %12, %13 : vector<8x1xf32>
    %15 = vector.broadcast %7 : vector<8x1xf32> to vector<8x32xf32>
    %16 = arith.subf %1, %15 : vector<8x32xf32>
    %cst_9 = arith.constant 9.99999996E-13 : f32
    %17 = vector.broadcast %cst_9 : f32 to vector<8x1xf32>
    %18 = arith.addf %14, %17 : vector<8x1xf32>
    %19 = math.rsqrt %18 : vector<8x1xf32>
    %20 = vector.broadcast %19 : vector<8x1xf32> to vector<8x32xf32>
    %21 = arith.mulf %16, %20 : vector<8x32xf32>
    %22 = vector.broadcast %2 : vector<1x32xf32> to vector<8x32xf32>
    %23 = arith.mulf %21, %22 : vector<8x32xf32>
    %24 = vector.broadcast %3 : vector<1x32xf32> to vector<8x32xf32>
    %25 = arith.addf %23, %24 : vector<8x32xf32>
    %c0_10 = arith.constant 0 : index
    %c0_11 = arith.constant 0 : index
    %c0_12 = arith.constant 0 : index
    %c0_13 = arith.constant 0 : index
    %26 = vector.load %arg2[%c0_10, %c0_11, %c0_12, %c0_13] : memref<1x1x1x8xf32, #tpu.memory_space<vmem>>, vector<1x1x1x8xf32>
    %27 = vector.shape_cast %26 : vector<1x1x1x8xf32> to vector<1x1x8xf32>
    %28 = arith.truncf %25 : vector<8x32xf32> to vector<8x32xbf16>
    %29 = vector.shape_cast %28 : vector<8x32xbf16> to vector<1x8x32xbf16>
    %30 = vector.broadcast %29 : vector<1x8x32xbf16> to vector<12x8x32xbf16>
    %c0_14 = arith.constant 0 : index
    %c0_15 = arith.constant 0 : index
    %c0_16 = arith.constant 0 : index
    %c0_17 = arith.constant 0 : index
    %31 = vector.load %arg5[%c0_14, %c0_15, %c0_16, %c0_17] : memref<2x12x32x8xbf16, #tpu.memory_space<vmem>>, vector<1x12x32x8xbf16>
    %32 = vector.shape_cast %31 : vector<1x12x32x8xbf16> to vector<12x32x8xbf16>
    %cst_18 = arith.constant dense<0.000000e+00> : vector<12x8x8xf32>
    %33 = tpu.matmul %30, %32, %cst_18 {dimension_numbers = #tpu.dot_dimension_numbers<[2], [1], [1], [2], [0, 0, 0, 1, 1, 2], [0], [0]>} : vector<12x8x32xbf16>, vector<12x32x8xbf16>, vector<12x8x8xf32> -> vector<12x8x8xf32>
    %c0_19 = arith.constant 0 : index
    %c0_20 = arith.constant 0 : index
    %c0_21 = arith.constant 0 : index
    %c0_22 = arith.constant 0 : index
    %34 = vector.load %arg6[%c0_19, %c0_20, %c0_21, %c0_22] : memref<2x12x1x8xf32, #tpu.memory_space<vmem>>, vector<1x12x1x8xf32>
    %35 = vector.shape_cast %34 : vector<1x12x1x8xf32> to vector<12x1x8xf32>
    %36 = vector.broadcast %35 : vector<12x1x8xf32> to vector<12x8x8xf32>
    %37 = arith.addf %33, %36 : vector<12x8x8xf32>
    %38 = vector.extract_strided_slice %37 {offsets = [0, 0, 0], sizes = [4, 8, 8], strides = [1, 1, 1]} : vector<12x8x8xf32> to vector<4x8x8xf32>
    %39 = vector.extract_strided_slice %37 {offsets = [4, 0, 0], sizes = [4, 8, 8], strides = [1, 1, 1]} : vector<12x8x8xf32> to vector<4x8x8xf32>
    %40 = vector.extract_strided_slice %37 {offsets = [8, 0, 0], sizes = [4, 8, 8], strides = [1, 1, 1]} : vector<12x8x8xf32> to vector<4x8x8xf32>
    %cst_23 = arith.constant dense<0.000000e+00> : vector<4x8x8xf32>
    %41 = tpu.matmul %38, %39, %cst_23 {dimension_numbers = #tpu.dot_dimension_numbers<[2], [2], [1], [1], [0, 0, 0, 1, 1, 1], [0], [0]>} : vector<4x8x8xf32>, vector<4x8x8xf32>, vector<4x8x8xf32> -> vector<4x8x8xf32>
    %42 = vector.broadcast %27 : vector<1x1x8xf32> to vector<4x8x8xf32>
    %43 = arith.addf %41, %42 : vector<4x8x8xf32>
    %cst_24 = arith.constant dense<0xFF800000> : vector<4x8xf32>
    %44 = vector.multi_reduction <maximumf>, %43, %cst_24 [2] : vector<4x8x8xf32> to vector<4x8xf32>
    %45 = vector.shape_cast %44 : vector<4x8xf32> to vector<4x8x1xf32>
    %46 = vector.broadcast %45 : vector<4x8x1xf32> to vector<4x8x8xf32>
    %47 = arith.subf %43, %46 : vector<4x8x8xf32>
    %48 = math.exp %47 : vector<4x8x8xf32>
    %cst_25 = arith.constant dense<0.000000e+00> : vector<4x8xf32>
    %49 = vector.multi_reduction <add>, %48, %cst_25 [2] : vector<4x8x8xf32> to vector<4x8xf32>
    %50 = vector.shape_cast %49 : vector<4x8xf32> to vector<4x8x1xf32>
    %51 = tpu.reciprocal %50 {approx = true} : vector<4x8x1xf32> -> vector<4x8x1xf32>
    %52 = vector.broadcast %51 : vector<4x8x1xf32> to vector<4x8x8xf32>
    %53 = arith.mulf %48, %52 : vector<4x8x8xf32>
    %cst_26 = arith.constant dense<0.000000e+00> : vector<4x8x8xf32>
    %54 = tpu.matmul %53, %40, %cst_26 {dimension_numbers = #tpu.dot_dimension_numbers<[2], [1], [1], [2], [0, 0, 0, 1, 1, 2], [0], [0]>} : vector<4x8x8xf32>, vector<4x8x8xf32>, vector<4x8x8xf32> -> vector<4x8x8xf32>
    %55 = arith.truncf %54 : vector<4x8x8xf32> to vector<4x8x8xbf16>
    %c0_27 = arith.constant 0 : index
    %c0_28 = arith.constant 0 : index
    %c0_29 = arith.constant 0 : index
    %c0_30 = arith.constant 0 : index
    %56 = vector.load %arg7[%c0_27, %c0_28, %c0_29, %c0_30] : memref<2x4x8x32xbf16, #tpu.memory_space<vmem>>, vector<1x4x8x32xbf16>
    %57 = vector.shape_cast %56 : vector<1x4x8x32xbf16> to vector<4x8x32xbf16>
    %cst_31 = arith.constant dense<0.000000e+00> : vector<4x8x32xf32>
    %58 = tpu.matmul %55, %57, %cst_31 {dimension_numbers = #tpu.dot_dimension_numbers<[2], [1], [1], [2], [0, 0, 0, 1, 1, 2], [0], [0]>} : vector<4x8x8xbf16>, vector<4x8x32xbf16>, vector<4x8x32xf32> -> vector<4x8x32xf32>
    %cst_32 = arith.constant dense<0.000000e+00> : vector<8x32xf32>
    %59 = vector.multi_reduction <add>, %58, %cst_32 [0] : vector<4x8x32xf32> to vector<8x32xf32>
    %c0_33 = arith.constant 0 : index
    %c0_34 = arith.constant 0 : index
    %c0_35 = arith.constant 0 : index
    %60 = vector.load %arg8[%c0_33, %c0_34, %c0_35] : memref<2x1x32xf32, #tpu.memory_space<vmem>>, vector<1x1x32xf32>
    %61 = vector.shape_cast %60 : vector<1x1x32xf32> to vector<1x32xf32>
    %62 = vector.broadcast %61 : vector<1x32xf32> to vector<8x32xf32>
    %63 = arith.addf %59, %62 : vector<8x32xf32>
    %64 = arith.addf %25, %63 : vector<8x32xf32>
    %c0_36 = arith.constant 0 : index
    %c0_37 = arith.constant 0 : index
    %c0_38 = arith.constant 0 : index
    %65 = vector.load %arg9[%c0_36, %c0_37, %c0_38] : memref<2x1x32xf32, #tpu.memory_space<vmem>>, vector<1x1x32xf32>
    %66 = vector.shape_cast %65 : vector<1x1x32xf32> to vector<1x32xf32>
    %c0_39 = arith.constant 0 : index
    %c0_40 = arith.constant 0 : index
    %c0_41 = arith.constant 0 : index
    %67 = vector.load %arg10[%c0_39, %c0_40, %c0_41] : memref<2x1x32xf32, #tpu.memory_space<vmem>>, vector<1x1x32xf32>
    %68 = vector.shape_cast %67 : vector<1x1x32xf32> to vector<1x32xf32>
    %cst_42 = arith.constant dense<0.000000e+00> : vector<8xf32>
    %69 = vector.multi_reduction <add>, %64, %cst_42 [1] : vector<8x32xf32> to vector<8xf32>
    %70 = vector.shape_cast %69 : vector<8xf32> to vector<8x1xf32>
    %cst_43 = arith.constant 3.200000e+01 : f32
    %71 = vector.broadcast %cst_43 : f32 to vector<8x1xf32>
    %72 = arith.divf %70, %71 : vector<8x1xf32>
    %73 = vector.broadcast %72 : vector<8x1xf32> to vector<8x32xf32>
    %74 = arith.subf %64, %73 : vector<8x32xf32>
    %75 = arith.mulf %74, %74 : vector<8x32xf32>
    %cst_44 = arith.constant dense<0.000000e+00> : vector<8xf32>
    %76 = vector.multi_reduction <add>, %75, %cst_44 [1] : vector<8x32xf32> to vector<8xf32>
    %77 = vector.shape_cast %76 : vector<8xf32> to vector<8x1xf32>
    %cst_45 = arith.constant 3.200000e+01 : f32
    %78 = vector.broadcast %cst_45 : f32 to vector<8x1xf32>
    %79 = arith.divf %77, %78 : vector<8x1xf32>
    %80 = vector.broadcast %72 : vector<8x1xf32> to vector<8x32xf32>
    %81 = arith.subf %64, %80 : vector<8x32xf32>
    %cst_46 = arith.constant 9.99999996E-13 : f32
    %82 = vector.broadcast %cst_46 : f32 to vector<8x1xf32>
    %83 = arith.addf %79, %82 : vector<8x1xf32>
    %84 = math.rsqrt %83 : vector<8x1xf32>
    %85 = vector.broadcast %84 : vector<8x1xf32> to vector<8x32xf32>
    %86 = arith.mulf %81, %85 : vector<8x32xf32>
    %87 = vector.broadcast %66 : vector<1x32xf32> to vector<8x32xf32>
    %88 = arith.mulf %86, %87 : vector<8x32xf32>
    %89 = vector.broadcast %68 : vector<1x32xf32> to vector<8x32xf32>
    %90 = arith.addf %88, %89 : vector<8x32xf32>
    %c0_47 = arith.constant 0 : index
    %c0_48 = arith.constant 0 : index
    %c0_49 = arith.constant 0 : index
    %91 = vector.load %arg11[%c0_47, %c0_48, %c0_49] : memref<2x32x64xbf16, #tpu.memory_space<vmem>>, vector<1x32x64xbf16>
    %92 = vector.shape_cast %91 : vector<1x32x64xbf16> to vector<32x64xbf16>
    %c0_50 = arith.constant 0 : index
    %c0_51 = arith.constant 0 : index
    %c0_52 = arith.constant 0 : index
    %93 = vector.load %arg12[%c0_50, %c0_51, %c0_52] : memref<2x1x64xf32, #tpu.memory_space<vmem>>, vector<1x1x64xf32>
    %94 = vector.shape_cast %93 : vector<1x1x64xf32> to vector<1x64xf32>
    %95 = arith.truncf %90 : vector<8x32xf32> to vector<8x32xbf16>
    %cst_53 = arith.constant dense<0.000000e+00> : vector<8x64xf32>
    %96 = tpu.matmul %95, %92, %cst_53 {dimension_numbers = #tpu.dot_dimension_numbers<[1], [0], [0], [1], [0, 0, 1, 1], [], []>} : vector<8x32xbf16>, vector<32x64xbf16>, vector<8x64xf32> -> vector<8x64xf32>
    %97 = vector.broadcast %94 : vector<1x64xf32> to vector<8x64xf32>
    %98 = arith.addf %96, %97 : vector<8x64xf32>
    %99 = arith.mulf %98, %98 : vector<8x64xf32>
    %100 = arith.mulf %98, %99 : vector<8x64xf32>
    %cst_54 = arith.constant 4.471500e-02 : f32
    %101 = vector.broadcast %cst_54 : f32 to vector<8x64xf32>
    %102 = arith.mulf %101, %100 : vector<8x64xf32>
    %103 = arith.addf %98, %102 : vector<8x64xf32>
    %cst_55 = arith.constant 0.797884583 : f32
    %104 = vector.broadcast %cst_55 : f32 to vector<8x64xf32>
    %105 = arith.mulf %104, %103 : vector<8x64xf32>
    %106 = math.tanh %105 : vector<8x64xf32>
    %cst_56 = arith.constant 1.000000e+00 : f32
    %107 = vector.broadcast %cst_56 : f32 to vector<8x64xf32>
    %108 = arith.addf %107, %106 : vector<8x64xf32>
    %cst_57 = arith.constant 5.000000e-01 : f32
    %109 = vector.broadcast %cst_57 : f32 to vector<8x64xf32>
    %110 = arith.mulf %109, %108 : vector<8x64xf32>
    %111 = arith.mulf %98, %110 : vector<8x64xf32>
    %c0_58 = arith.constant 0 : index
    %c0_59 = arith.constant 0 : index
    %c0_60 = arith.constant 0 : index
    %112 = vector.load %arg13[%c0_58, %c0_59, %c0_60] : memref<2x64x32xbf16, #tpu.memory_space<vmem>>, vector<1x64x32xbf16>
    %113 = vector.shape_cast %112 : vector<1x64x32xbf16> to vector<64x32xbf16>
    %c0_61 = arith.constant 0 : index
    %c0_62 = arith.constant 0 : index
    %c0_63 = arith.constant 0 : index
    %114 = vector.load %arg14[%c0_61, %c0_62, %c0_63] : memref<2x1x32xf32, #tpu.memory_space<vmem>>, vector<1x1x32xf32>
    %115 = vector.shape_cast %114 : vector<1x1x32xf32> to vector<1x32xf32>
    %116 = arith.truncf %111 : vector<8x64xf32> to vector<8x64xbf16>
    %cst_64 = arith.constant dense<0.000000e+00> : vector<8x32xf32>
    %117 = tpu.matmul %116, %113, %cst_64 {dimension_numbers = #tpu.dot_dimension_numbers<[1], [0], [0], [1], [0, 0, 1, 1], [], []>} : vector<8x64xbf16>, vector<64x32xbf16>, vector<8x32xf32> -> vector<8x32xf32>
    %118 = vector.broadcast %115 : vector<1x32xf32> to vector<8x32xf32>
    %119 = arith.addf %117, %118 : vector<8x32xf32>
    %120 = arith.addf %90, %119 : vector<8x32xf32>
    %c0_65 = arith.constant 0 : index
    %c0_66 = arith.constant 0 : index
    %c0_67 = arith.constant 0 : index
    %121 = vector.load %arg15[%c0_65, %c0_66, %c0_67] : memref<2x1x32xf32, #tpu.memory_space<vmem>>, vector<1x1x32xf32>
    %122 = vector.shape_cast %121 : vector<1x1x32xf32> to vector<1x32xf32>
    %c0_68 = arith.constant 0 : index
    %c0_69 = arith.constant 0 : index
    %c0_70 = arith.constant 0 : index
    %123 = vector.load %arg16[%c0_68, %c0_69, %c0_70] : memref<2x1x32xf32, #tpu.memory_space<vmem>>, vector<1x1x32xf32>
    %124 = vector.shape_cast %123 : vector<1x1x32xf32> to vector<1x32xf32>
    %cst_71 = arith.constant dense<0.000000e+00> : vector<8xf32>
    %125 = vector.multi_reduction <add>, %120, %cst_71 [1] : vector<8x32xf32> to vector<8xf32>
    %126 = vector.shape_cast %125 : vector<8xf32> to vector<8x1xf32>
    %cst_72 = arith.constant 3.200000e+01 : f32
    %127 = vector.broadcast %cst_72 : f32 to vector<8x1xf32>
    %128 = arith.divf %126, %127 : vector<8x1xf32>
    %129 = vector.broadcast %128 : vector<8x1xf32> to vector<8x32xf32>
    %130 = arith.subf %120, %129 : vector<8x32xf32>
    %131 = arith.mulf %130, %130 : vector<8x32xf32>
    %cst_73 = arith.constant dense<0.000000e+00> : vector<8xf32>
    %132 = vector.multi_reduction <add>, %131, %cst_73 [1] : vector<8x32xf32> to vector<8xf32>
    %133 = vector.shape_cast %132 : vector<8xf32> to vector<8x1xf32>
    %cst_74 = arith.constant 3.200000e+01 : f32
    %134 = vector.broadcast %cst_74 : f32 to vector<8x1xf32>
    %135 = arith.divf %133, %134 : vector<8x1xf32>
    %136 = vector.broadcast %128 : vector<8x1xf32> to vector<8x32xf32>
    %137 = arith.subf %120, %136 : vector<8x32xf32>
    %cst_75 = arith.constant 9.99999996E-13 : f32
    %138 = vector.broadcast %cst_75 : f32 to vector<8x1xf32>
    %139 = arith.addf %135, %138 : vector<8x1xf32>
    %140 = math.rsqrt %139 : vector<8x1xf32>
    %141 = vector.broadcast %140 : vector<8x1xf32> to vector<8x32xf32>
    %142 = arith.mulf %137, %141 : vector<8x32xf32>
    %143 = vector.broadcast %122 : vector<1x32xf32> to vector<8x32xf32>
    %144 = arith.mulf %142, %143 : vector<8x32xf32>
    %145 = vector.broadcast %124 : vector<1x32xf32> to vector<8x32xf32>
    %146 = arith.addf %144, %145 : vector<8x32xf32>
    %147 = arith.truncf %146 : vector<8x32xf32> to vector<8x32xbf16>
    %148 = vector.shape_cast %147 : vector<8x32xbf16> to vector<1x8x32xbf16>
    %149 = vector.broadcast %148 : vector<1x8x32xbf16> to vector<12x8x32xbf16>
    %c1 = arith.constant 1 : index
    %c0_76 = arith.constant 0 : index
    %c0_77 = arith.constant 0 : index
    %c0_78 = arith.constant 0 : index
    %150 = vector.load %arg5[%c1, %c0_76, %c0_77, %c0_78] : memref<2x12x32x8xbf16, #tpu.memory_space<vmem>>, vector<1x12x32x8xbf16>
    %151 = vector.shape_cast %150 : vector<1x12x32x8xbf16> to vector<12x32x8xbf16>
    %cst_79 = arith.constant dense<0.000000e+00> : vector<12x8x8xf32>
    %152 = tpu.matmul %149, %151, %cst_79 {dimension_numbers = #tpu.dot_dimension_numbers<[2], [1], [1], [2], [0, 0, 0, 1, 1, 2], [0], [0]>} : vector<12x8x32xbf16>, vector<12x32x8xbf16>, vector<12x8x8xf32> -> vector<12x8x8xf32>
    %c1_80 = arith.constant 1 : index
    %c0_81 = arith.constant 0 : index
    %c0_82 = arith.constant 0 : index
    %c0_83 = arith.constant 0 : index
    %153 = vector.load %arg6[%c1_80, %c0_81, %c0_82, %c0_83] : memref<2x12x1x8xf32, #tpu.memory_space<vmem>>, vector<1x12x1x8xf32>
    %154 = vector.shape_cast %153 : vector<1x12x1x8xf32> to vector<12x1x8xf32>
    %155 = vector.broadcast %154 : vector<12x1x8xf32> to vector<12x8x8xf32>
    %156 = arith.addf %152, %155 : vector<12x8x8xf32>
    %157 = vector.extract_strided_slice %156 {offsets = [0, 0, 0], sizes = [4, 8, 8], strides = [1, 1, 1]} : vector<12x8x8xf32> to vector<4x8x8xf32>
    %158 = vector.extract_strided_slice %156 {offsets = [4, 0, 0], sizes = [4, 8, 8], strides = [1, 1, 1]} : vector<12x8x8xf32> to vector<4x8x8xf32>
    %159 = vector.extract_strided_slice %156 {offsets = [8, 0, 0], sizes = [4, 8, 8], strides = [1, 1, 1]} : vector<12x8x8xf32> to vector<4x8x8xf32>
    %cst_84 = arith.constant dense<0.000000e+00> : vector<4x8x8xf32>
    %160 = tpu.matmul %157, %158, %cst_84 {dimension_numbers = #tpu.dot_dimension_numbers<[2], [2], [1], [1], [0, 0, 0, 1, 1, 1], [0], [0]>} : vector<4x8x8xf32>, vector<4x8x8xf32>, vector<4x8x8xf32> -> vector<4x8x8xf32>
    %161 = vector.broadcast %27 : vector<1x1x8xf32> to vector<4x8x8xf32>
    %162 = arith.addf %160, %161 : vector<4x8x8xf32>
    %cst_85 = arith.constant dense<0xFF800000> : vector<4x8xf32>
    %163 = vector.multi_reduction <maximumf>, %162, %cst_85 [2] : vector<4x8x8xf32> to vector<4x8xf32>
    %164 = vector.shape_cast %163 : vector<4x8xf32> to vector<4x8x1xf32>
    %165 = vector.broadcast %164 : vector<4x8x1xf32> to vector<4x8x8xf32>
    %166 = arith.subf %162, %165 : vector<4x8x8xf32>
    %167 = math.exp %166 : vector<4x8x8xf32>
    %cst_86 = arith.constant dense<0.000000e+00> : vector<4x8xf32>
    %168 = vector.multi_reduction <add>, %167, %cst_86 [2] : vector<4x8x8xf32> to vector<4x8xf32>
    %169 = vector.shape_cast %168 : vector<4x8xf32> to vector<4x8x1xf32>
    %170 = tpu.reciprocal %169 {approx = true} : vector<4x8x1xf32> -> vector<4x8x1xf32>
    %171 = vector.broadcast %170 : vector<4x8x1xf32> to vector<4x8x8xf32>
    %172 = arith.mulf %167, %171 : vector<4x8x8xf32>
    %cst_87 = arith.constant dense<0.000000e+00> : vector<4x8x8xf32>
    %173 = tpu.matmul %172, %159, %cst_87 {dimension_numbers = #tpu.dot_dimension_numbers<[2], [1], [1], [2], [0, 0, 0, 1, 1, 2], [0], [0]>} : vector<4x8x8xf32>, vector<4x8x8xf32>, vector<4x8x8xf32> -> vector<4x8x8xf32>
    %174 = arith.truncf %173 : vector<4x8x8xf32> to vector<4x8x8xbf16>
    %c1_88 = arith.constant 1 : index
    %c0_89 = arith.constant 0 : index
    %c0_90 = arith.constant 0 : index
    %c0_91 = arith.constant 0 : index
    %175 = vector.load %arg7[%c1_88, %c0_89, %c0_90, %c0_91] : memref<2x4x8x32xbf16, #tpu.memory_space<vmem>>, vector<1x4x8x32xbf16>
    %176 = vector.shape_cast %175 : vector<1x4x8x32xbf16> to vector<4x8x32xbf16>
    %cst_92 = arith.constant dense<0.000000e+00> : vector<4x8x32xf32>
    %177 = tpu.matmul %174, %176, %cst_92 {dimension_numbers = #tpu.dot_dimension_numbers<[2], [1], [1], [2], [0, 0, 0, 1, 1, 2], [0], [0]>} : vector<4x8x8xbf16>, vector<4x8x32xbf16>, vector<4x8x32xf32> -> vector<4x8x32xf32>
    %cst_93 = arith.constant dense<0.000000e+00> : vector<8x32xf32>
    %178 = vector.multi_reduction <add>, %177, %cst_93 [0] : vector<4x8x32xf32> to vector<8x32xf32>
    %c1_94 = arith.constant 1 : index
    %c0_95 = arith.constant 0 : index
    %c0_96 = arith.constant 0 : index
    %179 = vector.load %arg8[%c1_94, %c0_95, %c0_96] : memref<2x1x32xf32, #tpu.memory_space<vmem>>, vector<1x1x32xf32>
    %180 = vector.shape_cast %179 : vector<1x1x32xf32> to vector<1x32xf32>
    %181 = vector.broadcast %180 : vector<1x32xf32> to vector<8x32xf32>
    %182 = arith.addf %178, %181 : vector<8x32xf32>
    %183 = arith.addf %146, %182 : vector<8x32xf32>
    %c1_97 = arith.constant 1 : index
    %c0_98 = arith.constant 0 : index
    %c0_99 = arith.constant 0 : index
    %184 = vector.load %arg9[%c1_97, %c0_98, %c0_99] : memref<2x1x32xf32, #tpu.memory_space<vmem>>, vector<1x1x32xf32>
    %185 = vector.shape_cast %184 : vector<1x1x32xf32> to vector<1x32xf32>
    %c1_100 = arith.constant 1 : index
    %c0_101 = arith.constant 0 : index
    %c0_102 = arith.constant 0 : index
    %186 = vector.load %arg10[%c1_100, %c0_101, %c0_102] : memref<2x1x32xf32, #tpu.memory_space<vmem>>, vector<1x1x32xf32>
    %187 = vector.shape_cast %186 : vector<1x1x32xf32> to vector<1x32xf32>
    %cst_103 = arith.constant dense<0.000000e+00> : vector<8xf32>
    %188 = vector.multi_reduction <add>, %183, %cst_103 [1] : vector<8x32xf32> to vector<8xf32>
    %189 = vector.shape_cast %188 : vector<8xf32> to vector<8x1xf32>
    %cst_104 = arith.constant 3.200000e+01 : f32
    %190 = vector.broadcast %cst_104 : f32 to vector<8x1xf32>
    %191 = arith.divf %189, %190 : vector<8x1xf32>
    %192 = vector.broadcast %191 : vector<8x1xf32> to vector<8x32xf32>
    %193 = arith.subf %183, %192 : vector<8x32xf32>
    %194 = arith.mulf %193, %193 : vector<8x32xf32>
    %cst_105 = arith.constant dense<0.000000e+00> : vector<8xf32>
    %195 = vector.multi_reduction <add>, %194, %cst_105 [1] : vector<8x32xf32> to vector<8xf32>
    %196 = vector.shape_cast %195 : vector<8xf32> to vector<8x1xf32>
    %cst_106 = arith.constant 3.200000e+01 : f32
    %197 = vector.broadcast %cst_106 : f32 to vector<8x1xf32>
    %198 = arith.divf %196, %197 : vector<8x1xf32>
    %199 = vector.broadcast %191 : vector<8x1xf32> to vector<8x32xf32>
    %200 = arith.subf %183, %199 : vector<8x32xf32>
    %cst_107 = arith.constant 9.99999996E-13 : f32
    %201 = vector.broadcast %cst_107 : f32 to vector<8x1xf32>
    %202 = arith.addf %198, %201 : vector<8x1xf32>
    %203 = math.rsqrt %202 : vector<8x1xf32>
    %204 = vector.broadcast %203 : vector<8x1xf32> to vector<8x32xf32>
    %205 = arith.mulf %200, %204 : vector<8x32xf32>
    %206 = vector.broadcast %185 : vector<1x32xf32> to vector<8x32xf32>
    %207 = arith.mulf %205, %206 : vector<8x32xf32>
    %208 = vector.broadcast %187 : vector<1x32xf32> to vector<8x32xf32>
    %209 = arith.addf %207, %208 : vector<8x32xf32>
    %c1_108 = arith.constant 1 : index
    %c0_109 = arith.constant 0 : index
    %c0_110 = arith.constant 0 : index
    %210 = vector.load %arg11[%c1_108, %c0_109, %c0_110] : memref<2x32x64xbf16, #tpu.memory_space<vmem>>, vector<1x32x64xbf16>
    %211 = vector.shape_cast %210 : vector<1x32x64xbf16> to vector<32x64xbf16>
    %c1_111 = arith.constant 1 : index
    %c0_112 = arith.constant 0 : index
    %c0_113 = arith.constant 0 : index
    %212 = vector.load %arg12[%c1_111, %c0_112, %c0_113] : memref<2x1x64xf32, #tpu.memory_space<vmem>>, vector<1x1x64xf32>
    %213 = vector.shape_cast %212 : vector<1x1x64xf32> to vector<1x64xf32>
    %214 = arith.truncf %209 : vector<8x32xf32> to vector<8x32xbf16>
    %cst_114 = arith.constant dense<0.000000e+00> : vector<8x64xf32>
    %215 = tpu.matmul %214, %211, %cst_114 {dimension_numbers = #tpu.dot_dimension_numbers<[1], [0], [0], [1], [0, 0, 1, 1], [], []>} : vector<8x32xbf16>, vector<32x64xbf16>, vector<8x64xf32> -> vector<8x64xf32>
    %216 = vector.broadcast %213 : vector<1x64xf32> to vector<8x64xf32>
    %217 = arith.addf %215, %216 : vector<8x64xf32>
    %218 = arith.mulf %217, %217 : vector<8x64xf32>
    %219 = arith.mulf %217, %218 : vector<8x64xf32>
    %cst_115 = arith.constant 4.471500e-02 : f32
    %220 = vector.broadcast %cst_115 : f32 to vector<8x64xf32>
    %221 = arith.mulf %220, %219 : vector<8x64xf32>
    %222 = arith.addf %217, %221 : vector<8x64xf32>
    %cst_116 = arith.constant 0.797884583 : f32
    %223 = vector.broadcast %cst_116 : f32 to vector<8x64xf32>
    %224 = arith.mulf %223, %222 : vector<8x64xf32>
    %225 = math.tanh %224 : vector<8x64xf32>
    %cst_117 = arith.constant 1.000000e+00 : f32
    %226 = vector.broadcast %cst_117 : f32 to vector<8x64xf32>
    %227 = arith.addf %226, %225 : vector<8x64xf32>
    %cst_118 = arith.constant 5.000000e-01 : f32
    %228 = vector.broadcast %cst_118 : f32 to vector<8x64xf32>
    %229 = arith.mulf %228, %227 : vector<8x64xf32>
    %230 = arith.mulf %217, %229 : vector<8x64xf32>
    %c1_119 = arith.constant 1 : index
    %c0_120 = arith.constant 0 : index
    %c0_121 = arith.constant 0 : index
    %231 = vector.load %arg13[%c1_119, %c0_120, %c0_121] : memref<2x64x32xbf16, #tpu.memory_space<vmem>>, vector<1x64x32xbf16>
    %232 = vector.shape_cast %231 : vector<1x64x32xbf16> to vector<64x32xbf16>
    %c1_122 = arith.constant 1 : index
    %c0_123 = arith.constant 0 : index
    %c0_124 = arith.constant 0 : index
    %233 = vector.load %arg14[%c1_122, %c0_123, %c0_124] : memref<2x1x32xf32, #tpu.memory_space<vmem>>, vector<1x1x32xf32>
    %234 = vector.shape_cast %233 : vector<1x1x32xf32> to vector<1x32xf32>
    %235 = arith.truncf %230 : vector<8x64xf32> to vector<8x64xbf16>
    %cst_125 = arith.constant dense<0.000000e+00> : vector<8x32xf32>
    %236 = tpu.matmul %235, %232, %cst_125 {dimension_numbers = #tpu.dot_dimension_numbers<[1], [0], [0], [1], [0, 0, 1, 1], [], []>} : vector<8x64xbf16>, vector<64x32xbf16>, vector<8x32xf32> -> vector<8x32xf32>
    %237 = vector.broadcast %234 : vector<1x32xf32> to vector<8x32xf32>
    %238 = arith.addf %236, %237 : vector<8x32xf32>
    %239 = arith.addf %209, %238 : vector<8x32xf32>
    %c1_126 = arith.constant 1 : index
    %c0_127 = arith.constant 0 : index
    %c0_128 = arith.constant 0 : index
    %240 = vector.load %arg15[%c1_126, %c0_127, %c0_128] : memref<2x1x32xf32, #tpu.memory_space<vmem>>, vector<1x1x32xf32>
    %241 = vector.shape_cast %240 : vector<1x1x32xf32> to vector<1x32xf32>
    %c1_129 = arith.constant 1 : index
    %c0_130 = arith.constant 0 : index
    %c0_131 = arith.constant 0 : index
    %242 = vector.load %arg16[%c1_129, %c0_130, %c0_131] : memref<2x1x32xf32, #tpu.memory_space<vmem>>, vector<1x1x32xf32>
    %243 = vector.shape_cast %242 : vector<1x1x32xf32> to vector<1x32xf32>
    %cst_132 = arith.constant dense<0.000000e+00> : vector<8xf32>
    %244 = vector.multi_reduction <add>, %239, %cst_132 [1] : vector<8x32xf32> to vector<8xf32>
    %245 = vector.shape_cast %244 : vector<8xf32> to vector<8x1xf32>
    %cst_133 = arith.constant 3.200000e+01 : f32
    %246 = vector.broadcast %cst_133 : f32 to vector<8x1xf32>
    %247 = arith.divf %245, %246 : vector<8x1xf32>
    %248 = vector.broadcast %247 : vector<8x1xf32> to vector<8x32xf32>
    %249 = arith.subf %239, %248 : vector<8x32xf32>
    %250 = arith.mulf %249, %249 : vector<8x32xf32>
    %cst_134 = arith.constant dense<0.000000e+00> : vector<8xf32>
    %251 = vector.multi_reduction <add>, %250, %cst_134 [1] : vector<8x32xf32> to vector<8xf32>
    %252 = vector.shape_cast %251 : vector<8xf32> to vector<8x1xf32>
    %cst_135 = arith.constant 3.200000e+01 : f32
    %253 = vector.broadcast %cst_135 : f32 to vector<8x1xf32>
    %254 = arith.divf %252, %253 : vector<8x1xf32>
    %255 = vector.broadcast %247 : vector<8x1xf32> to vector<8x32xf32>
    %256 = arith.subf %239, %255 : vector<8x32xf32>
    %cst_136 = arith.constant 9.99999996E-13 : f32
    %257 = vector.broadcast %cst_136 : f32 to vector<8x1xf32>
    %258 = arith.addf %254, %257 : vector<8x1xf32>
    %259 = math.rsqrt %258 : vector<8x1xf32>
    %260 = vector.broadcast %259 : vector<8x1xf32> to vector<8x32xf32>
    %261 = arith.mulf %256, %260 : vector<8x32xf32>
    %262 = vector.broadcast %241 : vector<1x32xf32> to vector<8x32xf32>
    %263 = arith.mulf %261, %262 : vector<8x32xf32>
    %264 = vector.broadcast %243 : vector<1x32xf32> to vector<8x32xf32>
    %265 = arith.addf %263, %264 : vector<8x32xf32>
    %266 = vector.extract_strided_slice %265 {offsets = [0, 0], sizes = [1, 32], strides = [1, 1]} : vector<8x32xf32> to vector<1x32xf32>
    %c0_137 = arith.constant 0 : index
    %c0_138 = arith.constant 0 : index
    %267 = vector.load %arg17[%c0_137, %c0_138] : memref<1x32xf32, #tpu.memory_space<vmem>>, vector<1x32xf32>
    %c0_139 = arith.constant 0 : index
    %c0_140 = arith.constant 0 : index
    %268 = vector.load %arg18[%c0_139, %c0_140] : memref<1x32xf32, #tpu.memory_space<vmem>>, vector<1x32xf32>
    %cst_141 = arith.constant dense<0.000000e+00> : vector<1xf32>
    %269 = vector.multi_reduction <add>, %266, %cst_141 [1] : vector<1x32xf32> to vector<1xf32>
    %270 = vector.shape_cast %269 : vector<1xf32> to vector<1x1xf32>
    %cst_142 = arith.constant 3.200000e+01 : f32
    %271 = vector.broadcast %cst_142 : f32 to vector<1x1xf32>
    %272 = arith.divf %270, %271 : vector<1x1xf32>
    %273 = vector.broadcast %272 : vector<1x1xf32> to vector<1x32xf32>
    %274 = arith.subf %266, %273 : vector<1x32xf32>
    %275 = arith.mulf %274, %274 : vector<1x32xf32>
    %cst_143 = arith.constant dense<0.000000e+00> : vector<1xf32>
    %276 = vector.multi_reduction <add>, %275, %cst_143 [1] : vector<1x32xf32> to vector<1xf32>
    %277 = vector.shape_cast %276 : vector<1xf32> to vector<1x1xf32>
    %cst_144 = arith.constant 3.200000e+01 : f32
    %278 = vector.broadcast %cst_144 : f32 to vector<1x1xf32>
    %279 = arith.divf %277, %278 : vector<1x1xf32>
    %280 = vector.broadcast %272 : vector<1x1xf32> to vector<1x32xf32>
    %281 = arith.subf %266, %280 : vector<1x32xf32>
    %cst_145 = arith.constant 9.99999996E-13 : f32
    %282 = vector.broadcast %cst_145 : f32 to vector<1x1xf32>
    %283 = arith.addf %279, %282 : vector<1x1xf32>
    %284 = math.rsqrt %283 : vector<1x1xf32>
    %285 = vector.broadcast %284 : vector<1x1xf32> to vector<1x32xf32>
    %286 = arith.mulf %281, %285 : vector<1x32xf32>
    %287 = arith.mulf %286, %267 : vector<1x32xf32>
    %288 = arith.addf %287, %268 : vector<1x32xf32>
    %c0_146 = arith.constant 0 : index
    %c0_147 = arith.constant 0 : index
    %289 = vector.load %arg19[%c0_146, %c0_147] : memref<32x4xbf16, #tpu.memory_space<vmem>>, vector<32x4xbf16>
    %c0_148 = arith.constant 0 : index
    %c0_149 = arith.constant 0 : index
    %290 = vector.load %arg20[%c0_148, %c0_149] : memref<1x4xf32, #tpu.memory_space<vmem>>, vector<1x4xf32>
    %291 = arith.truncf %288 : vector<1x32xf32> to vector<1x32xbf16>
    %cst_150 = arith.constant dense<0.000000e+00> : vector<1x4xf32>
    %292 = tpu.matmul %291, %289, %cst_150 {dimension_numbers = #tpu.dot_dimension_numbers<[1], [0], [0], [1], [0, 0, 1, 1], [], []>} : vector<1x32xbf16>, vector<32x4xbf16>, vector<1x4xf32> -> vector<1x4xf32>
    %293 = arith.addf %292, %290 : vector<1x4xf32>
    %294 = tpu.concatenate %266, %293 in 1 : vector<1x32xf32>, vector<1x4xf32> -> vector<1x36xf32>
    %c0_151 = arith.constant 0 : index
    %c0_152 = arith.constant 0 : index
    %c0_153 = arith.constant 0 : index
    %295 = vector.load %arg21[%c0_151, %c0_152, %c0_153] : memref<1x1x36xf32, #tpu.memory_space<vmem>>, vector<1x1x36xf32>
    %296 = vector.shape_cast %295 : vector<1x1x36xf32> to vector<1x36xf32>
    %297 = vector.shape_cast %294 : vector<1x36xf32> to vector<1x1x36xf32>
    tpu.vector_store %arg21[%c0_151, %c0_152, %c0_153], %297 {strides = array<i32>} : memref<1x1x36xf32, #tpu.memory_space<vmem>>, vector<1x1x36xf32>,
    return
  }
  func.func @transform_0(%arg0: i32) -> (i32, i32, i32) {
    %c0_i32 = arith.constant 0 : i32
    %c0_i32_0 = arith.constant 0 : i32
    %c0_i32_1 = arith.constant 0 : i32
    return %arg0, %c0_i32, %c0_i32_0 : i32, i32, i32
  }
  func.func @transform_1(%arg0: i32) -> (i32, i32, i32, i32) {
    %c0_i32 = arith.constant 0 : i32
    %c0_i32_0 = arith.constant 0 : i32
    %c0_i32_1 = arith.constant 0 : i32
    %c0_i32_2 = arith.constant 0 : i32
    return %arg0, %c0_i32, %c0_i32_0, %c0_i32_1 : i32, i32, i32, i32
  }
  func.func @transform_2(%arg0: i32) -> (i32, i32) {
    %c0_i32 = arith.constant 0 : i32
    %c0_i32_0 = arith.constant 0 : i32
    %c0_i32_1 = arith.constant 0 : i32
    return %c0_i32, %c0_i32_0 : i32, i32
  }
  func.func @transform_3(%arg0: i32) -> (i32, i32) {
    %c0_i32 = arith.constant 0 : i32
    %c0_i32_0 = arith.constant 0 : i32
    %c0_i32_1 = arith.constant 0 : i32
    return %c0_i32, %c0_i32_0 : i32, i32
  }
  func.func @transform_4(%arg0: i32) -> (i32, i32, i32, i32) {
    %c0_i32 = arith.constant 0 : i32
    %c0_i32_0 = arith.constant 0 : i32
    %c0_i32_1 = arith.constant 0 : i32
    %c0_i32_2 = arith.constant 0 : i32
    %c0_i32_3 = arith.constant 0 : i32
    return %c0_i32, %c0_i32_0, %c0_i32_1, %c0_i32_2 : i32, i32, i32, i32
  }
  func.func @transform_5(%arg0: i32) -> (i32, i32, i32, i32) {
    %c0_i32 = arith.constant 0 : i32
    %c0_i32_0 = arith.constant 0 : i32
    %c0_i32_1 = arith.constant 0 : i32
    %c0_i32_2 = arith.constant 0 : i32
    %c0_i32_3 = arith.constant 0 : i32
    return %c0_i32, %c0_i32_0, %c0_i32_1, %c0_i32_2 : i32, i32, i32, i32
  }
  func.func @transform_6(%arg0: i32) -> (i32, i32, i32, i32) {
    %c0_i32 = arith.constant 0 : i32
    %c0_i32_0 = arith.constant 0 : i32
    %c0_i32_1 = arith.constant 0 : i32
    %c0_i32_2 = arith.constant 0 : i32
    %c0_i32_3 = arith.constant 0 : i32
    return %c0_i32, %c0_i32_0, %c0_i32_1, %c0_i32_2 : i32, i32, i32, i32
  }
  func.func @transform_7(%arg0: i32) -> (i32, i32, i32) {
    %c0_i32 = arith.constant 0 : i32
    %c0_i32_0 = arith.constant 0 : i32
    %c0_i32_1 = arith.constant 0 : i32
    %c0_i32_2 = arith.constant 0 : i32
    return %c0_i32, %c0_i32_0, %c0_i32_1 : i32, i32, i32
  }
  func.func @transform_8(%arg0: i32) -> (i32, i32, i32) {
    %c0_i32 = arith.constant 0 : i32
    %c0_i32_0 = arith.constant 0 : i32
    %c0_i32_1 = arith.constant 0 : i32
    %c0_i32_2 = arith.constant 0 : i32
    return %c0_i32, %c0_i32_0, %c0_i32_1 : i32, i32, i32
  }
  func.func @transform_9(%arg0: i32) -> (i32, i32, i32) {
    %c0_i32 = arith.constant 0 : i32
    %c0_i32_0 = arith.constant 0 : i32
    %c0_i32_1 = arith.constant 0 : i32
    %c0_i32_2 = arith.constant 0 : i32
    return %c0_i32, %c0_i32_0, %c0_i32_1 : i32, i32, i32
  }
  func.func @transform_10(%arg0: i32) -> (i32, i32, i32) {
    %c0_i32 = arith.constant 0 : i32
    %c0_i32_0 = arith.constant 0 : i32
    %c0_i32_1 = arith.constant 0 : i32
    %c0_i32_2 = arith.constant 0 : i32
    return %c0_i32, %c0_i32_0, %c0_i32_1 : i32, i32, i32
  }
  func.func @transform_11(%arg0: i32) -> (i32, i32, i32) {
    %c0_i32 = arith.constant 0 : i32
    %c0_i32_0 = arith.constant 0 : i32
    %c0_i32_1 = arith.constant 0 : i32
    %c0_i32_2 = arith.constant 0 : i32
    return %c0_i32, %c0_i32_0, %c0_i32_1 : i32, i32, i32
  }
  func.func @transform_12(%arg0: i32) -> (i32, i32, i32) {
    %c0_i32 = arith.constant 0 : i32
    %c0_i32_0 = arith.constant 0 : i32
    %c0_i32_1 = arith.constant 0 : i32
    %c0_i32_2 = arith.constant 0 : i32
    return %c0_i32, %c0_i32_0, %c0_i32_1 : i32, i32, i32
  }
  func.func @transform_13(%arg0: i32) -> (i32, i32, i32) {
    %c0_i32 = arith.constant 0 : i32
    %c0_i32_0 = arith.constant 0 : i32
    %c0_i32_1 = arith.constant 0 : i32
    %c0_i32_2 = arith.constant 0 : i32
    return %c0_i32, %c0_i32_0, %c0_i32_1 : i32, i32, i32
  }
  func.func @transform_14(%arg0: i32) -> (i32, i32, i32) {
    %c0_i32 = arith.constant 0 : i32
    %c0_i32_0 = arith.constant 0 : i32
    %c0_i32_1 = arith.constant 0 : i32
    %c0_i32_2 = arith.constant 0 : i32
    return %c0_i32, %c0_i32_0, %c0_i32_1 : i32, i32, i32
  }
  func.func @transform_15(%arg0: i32) -> (i32, i32, i32) {
    %c0_i32 = arith.constant 0 : i32
    %c0_i32_0 = arith.constant 0 : i32
    %c0_i32_1 = arith.constant 0 : i32
    %c0_i32_2 = arith.constant 0 : i32
    return %c0_i32, %c0_i32_0, %c0_i32_1 : i32, i32, i32
  }
  func.func @transform_16(%arg0: i32) -> (i32, i32) {
    %c0_i32 = arith.constant 0 : i32
    %c0_i32_0 = arith.constant 0 : i32
    %c0_i32_1 = arith.constant 0 : i32
    return %c0_i32, %c0_i32_0 : i32, i32
  }
  func.func @transform_17(%arg0: i32) -> (i32, i32) {
    %c0_i32 = arith.constant 0 : i32
    %c0_i32_0 = arith.constant 0 : i32
    %c0_i32_1 = arith.constant 0 : i32
    return %c0_i32, %c0_i32_0 : i32, i32
  }
  func.func @transform_18(%arg0: i32) -> (i32, i32) {
    %c0_i32 = arith.constant 0 : i32
    %c0_i32_0 = arith.constant 0 : i32
    %c0_i32_1 = arith.constant 0 : i32
    return %c0_i32, %c0_i32_0 : i32, i32
  }
  func.func @transform_19(%arg0: i32) -> (i32, i32) {
    %c0_i32 = arith.constant 0 : i32
    %c0_i32_0 = arith.constant 0 : i32
    %c0_i32_1 = arith.constant 0 : i32
    return %c0_i32, %c0_i32_0 : i32, i32
  }
  func.func @transform_20(%arg0: i32) -> (i32, i32, i32) {
    %c0_i32 = arith.constant 0 : i32
    %c0_i32_0 = arith.constant 0 : i32
    %c0_i32_1 = arith.constant 0 : i32
    return %arg0, %c0_i32, %c0_i32_0 : i32, i32, i32
  }
}

</mosaic_0001>

<llo_original>
// kernel: _lambda_.1
$region0: #{_lambda_.1}
  #allocation0 [shape = 'u32[]', space=smem, size = 0x4, offset = 0x4, fixed_abs, tag = 'smem constant byte address 0x4 - core index']
  #allocation1 [shape = 'u32[144,128]{1,0:T(1,128)}', space=vmem, size = 0x12000, scoped, tag = 'internal scratch']
  %s0 = inlined_call_operand.vmem [shape: f32[2,8,32], index: 0, kind: input, shape index: {}]
  %s1 = inlined_call_operand.vmem [shape: f32[2,1,1,8], index: 1, kind: input, shape index: {}]
  %s2 = inlined_call_operand.vmem [shape: f32[1,32], index: 2, kind: input, shape index: {}]
  %s3 = inlined_call_operand.vmem [shape: f32[1,32], index: 3, kind: input, shape index: {}]
  %s4 = inlined_call_operand.vmem [shape: bf16[2,12,32,8], index: 4, kind: input, shape index: {}]
  %s5 = inlined_call_operand.vmem [shape: f32[2,12,1,8], index: 5, kind: input, shape index: {}]
  %s6 = inlined_call_operand.vmem [shape: bf16[2,4,8,32], index: 6, kind: input, shape index: {}]
  %s7 = inlined_call_operand.vmem [shape: f32[2,1,32], index: 7, kind: input, shape index: {}]
  %s8 = inlined_call_operand.vmem [shape: f32[2,1,32], index: 8, kind: input, shape index: {}]
  %s9 = inlined_call_operand.vmem [shape: f32[2,1,32], index: 9, kind: input, shape index: {}]
  %s10 = inlined_call_operand.vmem [shape: bf16[2,32,64], index: 10, kind: input, shape index: {}]
  %s11 = inlined_call_operand.vmem [shape: f32[2,1,64], index: 11, kind: input, shape index: {}]
  %s12 = inlined_call_operand.vmem [shape: bf16[2,64,32], index: 12, kind: input, shape index: {}]
  %s13 = inlined_call_operand.vmem [shape: f32[2,1,32], index: 13, kind: input, shape index: {}]
  %s14 = inlined_call_operand.vmem [shape: f32[2,1,32], index: 14, kind: input, shape index: {}]
  %s15 = inlined_call_operand.vmem [shape: f32[2,1,32], index: 15, kind: input, shape index: {}]
  %s16 = inlined_call_operand.vmem [shape: f32[1,32], index: 16, kind: input, shape index: {}]
  %s17 = inlined_call_operand.vmem [shape: f32[1,32], index: 17, kind: input, shape index: {}]
  %s18 = inlined_call_operand.vmem [shape: bf16[32,4], index: 18, kind: input, shape index: {}]
  %s19 = inlined_call_operand.vmem [shape: f32[1,4], index: 19, kind: input, shape index: {}]
  %s20 = inlined_call_operand.vmem [shape: f32[2,1,36], index: 20, kind: output, shape index: {}]
  %s21 = sld [smem:[#allocation0]]
  $region113: #{_lambda_.1} parent=0
    _
  %s23 = ssub.s32 1, %s21
  %s24 = scalar_select 0, %s23, %s21
  loop: start=0, step=1, limit=4
  $region2: #{_lambda_.1} parent=0 // loop_pre_header
    _
  $region3: #{_lambda_.1} parent=0 // loop_header
    %s26 = sphi 0, %s30
    %p27 = scmp.ge.s32.totalorder %s26, 4
    %s36 = sphi 0, %s38
    %s39 = sphi 0, %s36
    %s40 = sphi 0, %s39
    %s56 = sphi 0, %s40
    %s62 = sphi 0, %s64
    %s65 = sphi 0, %s62
    %s66 = sphi 0, %s65
    %s82 = sphi 0, %s66
    %s86 = sphi 0, %s86
    %s88 = sphi 0, %s86
    %s89 = sphi 0, %s88
    %s103 = sphi 0, %s89
    %s107 = sphi 0, %s107
    %s109 = sphi 0, %s107
    %s110 = sphi 0, %s109
    %s124 = sphi 0, %s110
    %s128 = sphi 0, %s128
    %s130 = sphi 0, %s128
    %s131 = sphi 0, %s130
    %s145 = sphi 0, %s131
    %s149 = sphi 0, %s149
    %s151 = sphi 0, %s149
    %s152 = sphi 0, %s151
    %s166 = sphi 0, %s152
    %s170 = sphi 0, %s170
    %s172 = sphi 0, %s170
    %s173 = sphi 0, %s172
    %s187 = sphi 0, %s173
    %s191 = sphi 0, %s191
    %s193 = sphi 0, %s191
    %s194 = sphi 0, %s193
    %s208 = sphi 0, %s194
    %s212 = sphi 0, %s212
    %s214 = sphi 0, %s212
    %s215 = sphi 0, %s214
    %s229 = sphi 0, %s215
    %s233 = sphi 0, %s233
    %s235 = sphi 0, %s233
    %s236 = sphi 0, %s235
    %s250 = sphi 0, %s236
    %s254 = sphi 0, %s254
    %s256 = sphi 0, %s254
    %s257 = sphi 0, %s256
    %s271 = sphi 0, %s257
    %s275 = sphi 0, %s275
    %s277 = sphi 0, %s275
    %s278 = sphi 0, %s277
    %s292 = sphi 0, %s278
    %s296 = sphi 0, %s296
    %s298 = sphi 0, %s296
    %s299 = sphi 0, %s298
    %s313 = sphi 0, %s299
    %s317 = sphi 0, %s317
    %s319 = sphi 0, %s317
    %s320 = sphi 0, %s319
    %s334 = sphi 0, %s320
    %s338 = sphi 0, %s338
    %s340 = sphi 0, %s338
    %s341 = sphi 0, %s340
    %s355 = sphi 0, %s341
    %s359 = sphi 0, %s359
    %s361 = sphi 0, %s359
    %s362 = sphi 0, %s361
    %s376 = sphi 0, %s362
    %s380 = sphi 0, %s380
    %s382 = sphi 0, %s380
    %s383 = sphi 0, %s382
    %s397 = sphi 0, %s383
    %s401 = sphi 0, %s401
    %s403 = sphi 0, %s401
    %s404 = sphi 0, %s403
    %s418 = sphi 0, %s404
    %s422 = sphi 0, %s422
    %s424 = sphi 0, %s422
    %s425 = sphi 0, %s424
    %s439 = sphi 0, %s425
    %s443 = sphi 0, %s443
    %s445 = sphi 0, %s443
    %s446 = sphi 0, %s445
    %s460 = sphi 0, %s446
    %s466 = sphi 0, %s468
    %s469 = sphi 0, %s466
    %s470 = sphi 0, %s469
    %s486 = sphi 0, %s470
  $region4: #{_lambda_.1} parent=0 // loop_header_branch
    %29 = sbr.rel (%p27) target = $region8
  $region5: #{_lambda_.1} parent=0 // loop_body
    %s31 = ssub.s32 %s26, 1
    %s32 = ssub.s32 %s26, 2
    %s33 = sadd.s32 %s26, 1
    %s34 = ssub.s32 %s26, %s33
    %p35 = scmp.eq.s32.totalorder %s34, 0
    %s37 = sadd.s32 %s36, 1
    %s38 = scalar_select %p35, %s36, %s37
    %p41 = pneg %p35
    %p42 = scmp.eq.s32.totalorder %s26, 1
    %p43 = por %p41, %p42
    %p44 = scmp.ne.s32.totalorder %s36, %s39
    %p45 = scmp.eq.s32.totalorder %s26, 0
    %p46 = por %p44, %p45
    %p47 = scmp.ne.s32.totalorder %s36, %s39
    %p48 = scmp.eq.s32.totalorder %s31, 1
    %p49 = por %p47, %p48
    %p50 = scmp.ne.s32.totalorder %s39, %s40
    %p51 = scmp.eq.s32.totalorder %s31, 0
    %p52 = por %p50, %p51
    %p53 = scmp.ne.s32.totalorder %s39, %s40
    %p54 = scmp.eq.s32.totalorder %s32, 1
    %p55 = por %p53, %p54
    %p57 = scmp.ne.s32.totalorder %s40, %s56
    %p58 = scmp.eq.s32.totalorder %s32, 0
    %p59 = por %p57, %p58
    %s60 = ssub.s32 %s26, %s33
    %p61 = scmp.eq.s32.totalorder %s60, 0
    %s63 = sadd.s32 %s62, 1
    %s64 = scalar_select %p61, %s62, %s63
    %p67 = pneg %p61
    %p68 = scmp.eq.s32.totalorder %s26, 1
    %p69 = por %p67, %p68
    %p70 = scmp.ne.s32.totalorder %s62, %s65
    %p71 = scmp.eq.s32.totalorder %s26, 0
    %p72 = por %p70, %p71
    %p73 = scmp.ne.s32.totalorder %s62, %s65
    %p74 = scmp.eq.s32.totalorder %s31, 1
    %p75 = por %p73, %p74
    %p76 = scmp.ne.s32.totalorder %s65, %s66
    %p77 = scmp.eq.s32.totalorder %s31, 0
    %p78 = por %p76, %p77
    %p79 = scmp.ne.s32.totalorder %s65, %s66
    %p80 = scmp.eq.s32.totalorder %s32, 1
    %p81 = por %p79, %p80
    %p83 = scmp.ne.s32.totalorder %s66, %s82
    %p84 = scmp.eq.s32.totalorder %s32, 0
    %p85 = por %p83, %p84
    %s87 = sadd.s32 %s86, 1
    %p90 = scmp.eq.s32.totalorder %s26, 1
    %p91 = scmp.ne.s32.totalorder %s86, %s88
    %p92 = scmp.eq.s32.totalorder %s26, 0
    %p93 = por %p91, %p92
    %p94 = scmp.ne.s32.totalorder %s86, %s88
    %p95 = scmp.eq.s32.totalorder %s31, 1
    %p96 = por %p94, %p95
    %p97 = scmp.ne.s32.totalorder %s88, %s89
    %p98 = scmp.eq.s32.totalorder %s31, 0
    %p99 = por %p97, %p98
    %p100 = scmp.ne.s32.totalorder %s88, %s89
    %p101 = scmp.eq.s32.totalorder %s32, 1
    %p102 = por %p100, %p101
    %p104 = scmp.ne.s32.totalorder %s89, %s103
    %p105 = scmp.eq.s32.totalorder %s32, 0
    %p106 = por %p104, %p105
    %s108 = sadd.s32 %s107, 1
    %p111 = scmp.eq.s32.totalorder %s26, 1
    %p112 = scmp.ne.s32.totalorder %s107, %s109
    %p113 = scmp.eq.s32.totalorder %s26, 0
    %p114 = por %p112, %p113
    %p115 = scmp.ne.s32.totalorder %s107, %s109
    %p116 = scmp.eq.s32.totalorder %s31, 1
    %p117 = por %p115, %p116
    %p118 = scmp.ne.s32.totalorder %s109, %s110
    %p119 = scmp.eq.s32.totalorder %s31, 0
    %p120 = por %p118, %p119
    %p121 = scmp.ne.s32.totalorder %s109, %s110
    %p122 = scmp.eq.s32.totalorder %s32, 1
    %p123 = por %p121, %p122
    %p125 = scmp.ne.s32.totalorder %s110, %s124
    %p126 = scmp.eq.s32.totalorder %s32, 0
    %p127 = por %p125, %p126
    %s129 = sadd.s32 %s128, 1
    %p132 = scmp.eq.s32.totalorder %s26, 1
    %p133 = scmp.ne.s32.totalorder %s128, %s130
    %p134 = scmp.eq.s32.totalorder %s26, 0
    %p135 = por %p133, %p134
    %p136 = scmp.ne.s32.totalorder %s128, %s130
    %p137 = scmp.eq.s32.totalorder %s31, 1
    %p138 = por %p136, %p137
    %p139 = scmp.ne.s32.totalorder %s130, %s131
    %p140 = scmp.eq.s32.totalorder %s31, 0
    %p141 = por %p139, %p140
    %p142 = scmp.ne.s32.totalorder %s130, %s131
    %p143 = scmp.eq.s32.totalorder %s32, 1
    %p144 = por %p142, %p143
    %p146 = scmp.ne.s32.totalorder %s131, %s145
    %p147 = scmp.eq.s32.totalorder %s32, 0
    %p148 = por %p146, %p147
    %s150 = sadd.s32 %s149, 1
    %p153 = scmp.eq.s32.totalorder %s26, 1
    %p154 = scmp.ne.s32.totalorder %s149, %s151
    %p155 = scmp.eq.s32.totalorder %s26, 0
    %p156 = por %p154, %p155
    %p157 = scmp.ne.s32.totalorder %s149, %s151
    %p158 = scmp.eq.s32.totalorder %s31, 1
    %p159 = por %p157, %p158
    %p160 = scmp.ne.s32.totalorder %s151, %s152
    %p161 = scmp.eq.s32.totalorder %s31, 0
    %p162 = por %p160, %p161
    %p163 = scmp.ne.s32.totalorder %s151, %s152
    %p164 = scmp.eq.s32.totalorder %s32, 1
    %p165 = por %p163, %p164
    %p167 = scmp.ne.s32.totalorder %s152, %s166
    %p168 = scmp.eq.s32.totalorder %s32, 0
    %p169 = por %p167, %p168
    %s171 = sadd.s32 %s170, 1
    %p174 = scmp.eq.s32.totalorder %s26, 1
    %p175 = scmp.ne.s32.totalorder %s170, %s172
    %p176 = scmp.eq.s32.totalorder %s26, 0
    %p177 = por %p175, %p176
    %p178 = scmp.ne.s32.totalorder %s170, %s172
    %p179 = scmp.eq.s32.totalorder %s31, 1
    %p180 = por %p178, %p179
    %p181 = scmp.ne.s32.totalorder %s172, %s173
    %p182 = scmp.eq.s32.totalorder %s31, 0
    %p183 = por %p181, %p182
    %p184 = scmp.ne.s32.totalorder %s172, %s173
    %p185 = scmp.eq.s32.totalorder %s32, 1
    %p186 = por %p184, %p185
    %p188 = scmp.ne.s32.totalorder %s173, %s187
    %p189 = scmp.eq.s32.totalorder %s32, 0
    %p190 = por %p188, %p189
    %s192 = sadd.s32 %s191, 1
    %p195 = scmp.eq.s32.totalorder %s26, 1
    %p196 = scmp.ne.s32.totalorder %s191, %s193
    %p197 = scmp.eq.s32.totalorder %s26, 0
    %p198 = por %p196, %p197
    %p199 = scmp.ne.s32.totalorder %s191, %s193
    %p200 = scmp.eq.s32.totalorder %s31, 1
    %p201 = por %p199, %p200
    %p202 = scmp.ne.s32.totalorder %s193, %s194
    %p203 = scmp.eq.s32.totalorder %s31, 0
    %p204 = por %p202, %p203
    %p205 = scmp.ne.s32.totalorder %s193, %s194
    %p206 = scmp.eq.s32.totalorder %s32, 1
    %p207 = por %p205, %p206
    %p209 = scmp.ne.s32.totalorder %s194, %s208
    %p210 = scmp.eq.s32.totalorder %s32, 0
    %p211 = por %p209, %p210
    %s213 = sadd.s32 %s212, 1
    %p216 = scmp.eq.s32.totalorder %s26, 1
    %p217 = scmp.ne.s32.totalorder %s212, %s214
    %p218 = scmp.eq.s32.totalorder %s26, 0
    %p219 = por %p217, %p218
    %p220 = scmp.ne.s32.totalorder %s212, %s214
    %p221 = scmp.eq.s32.totalorder %s31, 1
    %p222 = por %p220, %p221
    %p223 = scmp.ne.s32.totalorder %s214, %s215
    %p224 = scmp.eq.s32.totalorder %s31, 0
    %p225 = por %p223, %p224
    %p226 = scmp.ne.s32.totalorder %s214, %s215
    %p227 = scmp.eq.s32.totalorder %s32, 1
    %p228 = por %p226, %p227
    %p230 = scmp.ne.s32.totalorder %s215, %s229
    %p231 = scmp.eq.s32.totalorder %s32, 0
    %p232 = por %p230, %p231
    %s234 = sadd.s32 %s233, 1
    %p237 = scmp.eq.s32.totalorder %s26, 1
    %p238 = scmp.ne.s32.totalorder %s233, %s235
    %p239 = scmp.eq.s32.totalorder %s26, 0
    %p240 = por %p238, %p239
    %p241 = scmp.ne.s32.totalorder %s233, %s235
    %p242 = scmp.eq.s32.totalorder %s31, 1
    %p243 = por %p241, %p242
    %p244 = scmp.ne.s32.totalorder %s235, %s236
    %p245 = scmp.eq.s32.totalorder %s31, 0
    %p246 = por %p244, %p245
    %p247 = scmp.ne.s32.totalorder %s235, %s236
    %p248 = scmp.eq.s32.totalorder %s32, 1
    %p249 = por %p247, %p248
    %p251 = scmp.ne.s32.totalorder %s236, %s250
    %p252 = scmp.eq.s32.totalorder %s32, 0
    %p253 = por %p251, %p252
    %s255 = sadd.s32 %s254, 1
    %p258 = scmp.eq.s32.totalorder %s26, 1
    %p259 = scmp.ne.s32.totalorder %s254, %s256
    %p260 = scmp.eq.s32.totalorder %s26, 0
    %p261 = por %p259, %p260
    %p262 = scmp.ne.s32.totalorder %s254, %s256
    %p263 = scmp.eq.s32.totalorder %s31, 1
    %p264 = por %p262, %p263
    %p265 = scmp.ne.s32.totalorder %s256, %s257
    %p266 = scmp.eq.s32.totalorder %s31, 0
    %p267 = por %p265, %p266
    %p268 = scmp.ne.s32.totalorder %s256, %s257
    %p269 = scmp.eq.s32.totalorder %s32, 1
    %p270 = por %p268, %p269
    %p272 = scmp.ne.s32.totalorder %s257, %s271
    %p273 = scmp.eq.s32.totalorder %s32, 0
    %p274 = por %p272, %p273
    %s276 = sadd.s32 %s275, 1
    %p279 = scmp.eq.s32.totalorder %s26, 1
    %p280 = scmp.ne.s32.totalorder %s275, %s277
    %p281 = scmp.eq.s32.totalorder %s26, 0
    %p282 = por %p280, %p281
    %p283 = scmp.ne.s32.totalorder %s275, %s277
    %p284 = scmp.eq.s32.totalorder %s31, 1
    %p285 = por %p283, %p284
    %p286 = scmp.ne.s32.totalorder %s277, %s278
    %p287 = scmp.eq.s32.totalorder %s31, 0
    %p288 = por %p286, %p287
    %p289 = scmp.ne.s32.totalorder %s277, %s278
    %p290 = scmp.eq.s32.totalorder %s32, 1
    %p291 = por %p289, %p290
    %p293 = scmp.ne.s32.totalorder %s278, %s292
    %p294 = scmp.eq.s32.totalorder %s32, 0
    %p295 = por %p293, %p294
    %s297 = sadd.s32 %s296, 1
    %p300 = scmp.eq.s32.totalorder %s26, 1
    %p301 = scmp.ne.s32.totalorder %s296, %s298
    %p302 = scmp.eq.s32.totalorder %s26, 0
    %p303 = por %p301, %p302
    %p304 = scmp.ne.s32.totalorder %s296, %s298
    %p305 = scmp.eq.s32.totalorder %s31, 1
    %p306 = por %p304, %p305
    %p307 = scmp.ne.s32.totalorder %s298, %s299
    %p308 = scmp.eq.s32.totalorder %s31, 0
    %p309 = por %p307, %p308
    %p310 = scmp.ne.s32.totalorder %s298, %s299
    %p311 = scmp.eq.s32.totalorder %s32, 1
    %p312 = por %p310, %p311
    %p314 = scmp.ne.s32.totalorder %s299, %s313
    %p315 = scmp.eq.s32.totalorder %s32, 0
    %p316 = por %p314, %p315
    %s318 = sadd.s32 %s317, 1
    %p321 = scmp.eq.s32.totalorder %s26, 1
    %p322 = scmp.ne.s32.totalorder %s317, %s319
    %p323 = scmp.eq.s32.totalorder %s26, 0
    %p324 = por %p322, %p323
    %p325 = scmp.ne.s32.totalorder %s317, %s319
    %p326 = scmp.eq.s32.totalorder %s31, 1
    %p327 = por %p325, %p326
    %p328 = scmp.ne.s32.totalorder %s319, %s320
    %p329 = scmp.eq.s32.totalorder %s31, 0
    %p330 = por %p328, %p329
    %p331 = scmp.ne.s32.totalorder %s319, %s320
    %p332 = scmp.eq.s32.totalorder %s32, 1
    %p333 = por %p331, %p332
    %p335 = scmp.ne.s32.totalorder %s320, %s334
    %p336 = scmp.eq.s32.totalorder %s32, 0
    %p337 = por %p335, %p336
    %s339 = sadd.s32 %s338, 1
    %p342 = scmp.eq.s32.totalorder %s26, 1
    %p343 = scmp.ne.s32.totalorder %s338, %s340
    %p344 = scmp.eq.s32.totalorder %s26, 0
    %p345 = por %p343, %p344
    %p346 = scmp.ne.s32.totalorder %s338, %s340
    %p347 = scmp.eq.s32.totalorder %s31, 1
    %p348 = por %p346, %p347
    %p349 = scmp.ne.s32.totalorder %s340, %s341
    %p350 = scmp.eq.s32.totalorder %s31, 0
    %p351 = por %p349, %p350
    %p352 = scmp.ne.s32.totalorder %s340, %s341
    %p353 = scmp.eq.s32.totalorder %s32, 1
    %p354 = por %p352, %p353
    %p356 = scmp.ne.s32.totalorder %s341, %s355
    %p357 = scmp.eq.s32.totalorder %s32, 0
    %p358 = por %p356, %p357
    %s360 = sadd.s32 %s359, 1
    %p363 = scmp.eq.s32.totalorder %s26, 1
    %p364 = scmp.ne.s32.totalorder %s359, %s361
    %p365 = scmp.eq.s32.totalorder %s26, 0
    %p366 = por %p364, %p365
    %p367 = scmp.ne.s32.totalorder %s359, %s361
    %p368 = scmp.eq.s32.totalorder %s31, 1
    %p369 = por %p367, %p368
    %p370 = scmp.ne.s32.totalorder %s361, %s362
    %p371 = scmp.eq.s32.totalorder %s31, 0
    %p372 = por %p370, %p371
    %p373 = scmp.ne.s32.totalorder %s361, %s362
    %p374 = scmp.eq.s32.totalorder %s32, 1
    %p375 = por %p373, %p374
    %p377 = scmp.ne.s32.totalorder %s362, %s376
    %p378 = scmp.eq.s32.totalorder %s32, 0
    %p379 = por %p377, %p378
    %s381 = sadd.s32 %s380, 1
    %p384 = scmp.eq.s32.totalorder %s26, 1
    %p385 = scmp.ne.s32.totalorder %s380, %s382
    %p386 = scmp.eq.s32.totalorder %s26, 0
    %p387 = por %p385, %p386
    %p388 = scmp.ne.s32.totalorder %s380, %s382
    %p389 = scmp.eq.s32.totalorder %s31, 1
    %p390 = por %p388, %p389
    %p391 = scmp.ne.s32.totalorder %s382, %s383
    %p392 = scmp.eq.s32.totalorder %s31, 0
    %p393 = por %p391, %p392
    %p394 = scmp.ne.s32.totalorder %s382, %s383
    %p395 = scmp.eq.s32.totalorder %s32, 1
    %p396 = por %p394, %p395
    %p398 = scmp.ne.s32.totalorder %s383, %s397
    %p399 = scmp.eq.s32.totalorder %s32, 0
    %p400 = por %p398, %p399
    %s402 = sadd.s32 %s401, 1
    %p405 = scmp.eq.s32.totalorder %s26, 1
    %p406 = scmp.ne.s32.totalorder %s401, %s403
    %p407 = scmp.eq.s32.totalorder %s26, 0
    %p408 = por %p406, %p407
    %p409 = scmp.ne.s32.totalorder %s401, %s403
    %p410 = scmp.eq.s32.totalorder %s31, 1
    %p411 = por %p409, %p410
    %p412 = scmp.ne.s32.totalorder %s403, %s404
    %p413 = scmp.eq.s32.totalorder %s31, 0
    %p414 = por %p412, %p413
    %p415 = scmp.ne.s32.totalorder %s403, %s404
    %p416 = scmp.eq.s32.totalorder %s32, 1
    %p417 = por %p415, %p416
    %p419 = scmp.ne.s32.totalorder %s404, %s418
    %p420 = scmp.eq.s32.totalorder %s32, 0
    %p421 = por %p419, %p420
    %s423 = sadd.s32 %s422, 1
    %p426 = scmp.eq.s32.totalorder %s26, 1
    %p427 = scmp.ne.s32.totalorder %s422, %s424
    %p428 = scmp.eq.s32.totalorder %s26, 0
    %p429 = por %p427, %p428
    %p430 = scmp.ne.s32.totalorder %s422, %s424
    %p431 = scmp.eq.s32.totalorder %s31, 1
    %p432 = por %p430, %p431
    %p433 = scmp.ne.s32.totalorder %s424, %s425
    %p434 = scmp.eq.s32.totalorder %s31, 0
    %p435 = por %p433, %p434
    %p436 = scmp.ne.s32.totalorder %s424, %s425
    %p437 = scmp.eq.s32.totalorder %s32, 1
    %p438 = por %p436, %p437
    %p440 = scmp.ne.s32.totalorder %s425, %s439
    %p441 = scmp.eq.s32.totalorder %s32, 0
    %p442 = por %p440, %p441
    %s444 = sadd.s32 %s443, 1
    %p447 = scmp.eq.s32.totalorder %s26, 1
    %p448 = scmp.ne.s32.totalorder %s443, %s445
    %p449 = scmp.eq.s32.totalorder %s26, 0
    %p450 = por %p448, %p449
    %p451 = scmp.ne.s32.totalorder %s443, %s445
    %p452 = scmp.eq.s32.totalorder %s31, 1
    %p453 = por %p451, %p452
    %p454 = scmp.ne.s32.totalorder %s445, %s446
    %p455 = scmp.eq.s32.totalorder %s31, 0
    %p456 = por %p454, %p455
    %p457 = scmp.ne.s32.totalorder %s445, %s446
    %p458 = scmp.eq.s32.totalorder %s32, 1
    %p459 = por %p457, %p458
    %p461 = scmp.ne.s32.totalorder %s446, %s460
    %p462 = scmp.eq.s32.totalorder %s32, 0
    %p463 = por %p461, %p462
    %s464 = ssub.s32 %s26, %s33
    %p465 = scmp.eq.s32.totalorder %s464, 0
    %s467 = sadd.s32 %s466, 1
    %s468 = scalar_select %p465, %s466, %s467
    %p471 = pneg %p465
    %p472 = scmp.eq.s32.totalorder %s26, 1
    %p473 = por %p471, %p472
    %p474 = scmp.ne.s32.totalorder %s466, %s469
    %p475 = scmp.eq.s32.totalorder %s26, 0
    %p476 = por %p474, %p475
    %p477 = scmp.ne.s32.totalorder %s466, %s469
    %p478 = scmp.eq.s32.totalorder %s31, 1
    %p479 = por %p477, %p478
    %p480 = scmp.ne.s32.totalorder %s469, %s470
    %p481 = scmp.eq.s32.totalorder %s31, 0
    %p482 = por %p480, %p481
    %p483 = scmp.ne.s32.totalorder %s469, %s470
    %p484 = scmp.eq.s32.totalorder %s32, 1
    %p485 = por %p483, %p484
    %p487 = scmp.ne.s32.totalorder %s470, %s486
    %p488 = scmp.eq.s32.totalorder %s32, 0
    %p489 = por %p487, %p488
    %p490 = scmp.le.s32.totalorder 1, %s26
    %p491 = scmp.lt.s32.totalorder %s26, 3
    %p492 = pnand %p490, %p491
    %p493 = pneg %p492
    // Predicated region
    $region9: #{_lambda_.1} parent=5 // pred_check
      _
    $region10: #{_lambda_.1} parent=5 // pred_check_branch
      %495 = sbr.rel (%p492) target = $region12
    $region11: #{_lambda_.1} parent=5 // pred_region
      %s496 = ssub.s32 %s26, 1
      // Predicated region
      $region13: #{_lambda_.1} parent=11 // pred_check
        %p497 = pneg %p99
      $region14: #{_lambda_.1} parent=11 // pred_check_branch
        %499 = sbr.rel (%p497) target = $region16
      $region15: #{_lambda_.1} parent=11 // pred_region
        _
      $region16: #{_lambda_.1} parent=11 // pred_fallthru
        _
      // Predicated region
      $region17: #{_lambda_.1} parent=11 // pred_check
        %p500 = pneg %p120
      $region18: #{_lambda_.1} parent=11 // pred_check_branch
        %502 = sbr.rel (%p500) target = $region20
      $region19: #{_lambda_.1} parent=11 // pred_region
        _
      $region20: #{_lambda_.1} parent=11 // pred_fallthru
        _
      // Predicated region
      $region21: #{_lambda_.1} parent=11 // pred_check
        %p503 = pneg %p141
      $region22: #{_lambda_.1} parent=11 // pred_check_branch
        %505 = sbr.rel (%p503) target = $region24
      $region23: #{_lambda_.1} parent=11 // pred_region
        _
      $region24: #{_lambda_.1} parent=11 // pred_fallthru
        _
      // Predicated region
      $region25: #{_lambda_.1} parent=11 // pred_check
        %p506 = pneg %p162
      $region26: #{_lambda_.1} parent=11 // pred_check_branch
        %508 = sbr.rel (%p506) target = $region28
      $region27: #{_lambda_.1} parent=11 // pred_region
        _
      $region28: #{_lambda_.1} parent=11 // pred_fallthru
        _
      // Predicated region
      $region29: #{_lambda_.1} parent=11 // pred_check
        %p509 = pneg %p183
      $region30: #{_lambda_.1} parent=11 // pred_check_branch
        %511 = sbr.rel (%p509) target = $region32
      $region31: #{_lambda_.1} parent=11 // pred_region
        _
      $region32: #{_lambda_.1} parent=11 // pred_fallthru
        _
      // Predicated region
      $region33: #{_lambda_.1} parent=11 // pred_check
        %p512 = pneg %p204
      $region34: #{_lambda_.1} parent=11 // pred_check_branch
        %514 = sbr.rel (%p512) target = $region36
      $region35: #{_lambda_.1} parent=11 // pred_region
        _
      $region36: #{_lambda_.1} parent=11 // pred_fallthru
        _
      // Predicated region
      $region37: #{_lambda_.1} parent=11 // pred_check
        %p515 = pneg %p225
      $region38: #{_lambda_.1} parent=11 // pred_check_branch
        %517 = sbr.rel (%p515) target = $region40
      $region39: #{_lambda_.1} parent=11 // pred_region
        _
      $region40: #{_lambda_.1} parent=11 // pred_fallthru
        _
      // Predicated region
      $region41: #{_lambda_.1} parent=11 // pred_check
        %p518 = pneg %p246
      $region42: #{_lambda_.1} parent=11 // pred_check_branch
        %520 = sbr.rel (%p518) target = $region44
      $region43: #{_lambda_.1} parent=11 // pred_region
        _
      $region44: #{_lambda_.1} parent=11 // pred_fallthru
        _
      // Predicated region
      $region45: #{_lambda_.1} parent=11 // pred_check
        %p521 = pneg %p267
      $region46: #{_lambda_.1} parent=11 // pred_check_branch
        %523 = sbr.rel (%p521) target = $region48
      $region47: #{_lambda_.1} parent=11 // pred_region
        _
      $region48: #{_lambda_.1} parent=11 // pred_fallthru
        _
      // Predicated region
      $region49: #{_lambda_.1} parent=11 // pred_check
        %p524 = pneg %p288
      $region50: #{_lambda_.1} parent=11 // pred_check_branch
        %526 = sbr.rel (%p524) target = $region52
      $region51: #{_lambda_.1} parent=11 // pred_region
        _
      $region52: #{_lambda_.1} parent=11 // pred_fallthru
        _
      // Predicated region
      $region53: #{_lambda_.1} parent=11 // pred_check
        %p527 = pneg %p309
      $region54: #{_lambda_.1} parent=11 // pred_check_branch
        %529 = sbr.rel (%p527) target = $region56
      $region55: #{_lambda_.1} parent=11 // pred_region
        _
      $region56: #{_lambda_.1} parent=11 // pred_fallthru
        _
      // Predicated region
      $region57: #{_lambda_.1} parent=11 // pred_check
        %p530 = pneg %p330
      $region58: #{_lambda_.1} parent=11 // pred_check_branch
        %532 = sbr.rel (%p530) target = $region60
      $region59: #{_lambda_.1} parent=11 // pred_region
        _
      $region60: #{_lambda_.1} parent=11 // pred_fallthru
        _
      // Predicated region
      $region61: #{_lambda_.1} parent=11 // pred_check
        %p533 = pneg %p351
      $region62: #{_lambda_.1} parent=11 // pred_check_branch
        %535 = sbr.rel (%p533) target = $region64
      $region63: #{_lambda_.1} parent=11 // pred_region
        _
      $region64: #{_lambda_.1} parent=11 // pred_fallthru
        _
      // Predicated region
      $region65: #{_lambda_.1} parent=11 // pred_check
        %p536 = pneg %p372
      $region66: #{_lambda_.1} parent=11 // pred_check_branch
        %538 = sbr.rel (%p536) target = $region68
      $region67: #{_lambda_.1} parent=11 // pred_region
        _
      $region68: #{_lambda_.1} parent=11 // pred_fallthru
        _
      // Predicated region
      $region69: #{_lambda_.1} parent=11 // pred_check
        %p539 = pneg %p393
      $region70: #{_lambda_.1} parent=11 // pred_check_branch
        %541 = sbr.rel (%p539) target = $region72
      $region71: #{_lambda_.1} parent=11 // pred_region
        _
      $region72: #{_lambda_.1} parent=11 // pred_fallthru
        _
      // Predicated region
      $region73: #{_lambda_.1} parent=11 // pred_check
        %p542 = pneg %p414
      $region74: #{_lambda_.1} parent=11 // pred_check_branch
        %544 = sbr.rel (%p542) target = $region76
      $region75: #{_lambda_.1} parent=11 // pred_region
        _
      $region76: #{_lambda_.1} parent=11 // pred_fallthru
        _
      // Predicated region
      $region77: #{_lambda_.1} parent=11 // pred_check
        %p545 = pneg %p435
      $region78: #{_lambda_.1} parent=11 // pred_check_branch
        %547 = sbr.rel (%p545) target = $region80
      $region79: #{_lambda_.1} parent=11 // pred_region
        _
      $region80: #{_lambda_.1} parent=11 // pred_fallthru
        _
      // Predicated region
      $region81: #{_lambda_.1} parent=11 // pred_check
        %p548 = pneg %p456
      $region82: #{_lambda_.1} parent=11 // pred_check_branch
        %550 = sbr.rel (%p548) target = $region84
      $region83: #{_lambda_.1} parent=11 // pred_region
        _
      $region84: #{_lambda_.1} parent=11 // pred_fallthru
        _
    $region12: #{_lambda_.1} parent=5 // pred_fallthru
      _
    %p551 = scmp.lt.s32.totalorder %s26, 2
    // Predicated region
    $region85: #{_lambda_.1} parent=5 // pred_check
      %p552 = pneg %p551
    $region86: #{_lambda_.1} parent=5 // pred_check_branch
      %554 = sbr.rel (%p552) target = $region88
    $region87: #{_lambda_.1} parent=5 // pred_region
      // Predicated region
      $region89: #{_lambda_.1} parent=87 // pred_check
        %p555 = pneg %p46
      $region90: #{_lambda_.1} parent=87 // pred_check_branch
        %557 = sbr.rel (%p555) target = $region92
      $region91: #{_lambda_.1} parent=87 // pred_region
        %p558 = scmp.lt.s32.totalorder %s26, 1
        %s559 = scalar_select %p558, %s26, 1
        %s560 = smul.addr %s559, 8
        %s561 = scalar_lea.vmem %s0, %s560
      $region92: #{_lambda_.1} parent=87 // pred_fallthru
        _
      // Predicated region
      $region93: #{_lambda_.1} parent=87 // pred_check
        %p562 = pneg %p72
      $region94: #{_lambda_.1} parent=87 // pred_check_branch
        %564 = sbr.rel (%p562) target = $region96
      $region95: #{_lambda_.1} parent=87 // pred_region
        %p565 = scmp.lt.s32.totalorder %s26, 1
        %s566 = scalar_select %p565, %s26, 1
        %s567 = scalar_lea.vmem %s1, %s566
      $region96: #{_lambda_.1} parent=87 // pred_fallthru
        _
    $region88: #{_lambda_.1} parent=5 // pred_fallthru
      _
    %p568 = scmp.le.s32.totalorder 1, %s26
    %p569 = scmp.lt.s32.totalorder %s26, 3
    %p570 = pnand %p568, %p569
    %p571 = pneg %p570
    // Predicated region
    $region97: #{_lambda_.1} parent=5 // pred_check
      _
    $region98: #{_lambda_.1} parent=5 // pred_check_branch
      %573 = sbr.rel (%p570) target = $region100
    $region99: #{_lambda_.1} parent=5 // pred_region
      %s574 = ssub.s32 %s26, 1
      %p575 = scmp.lt.s32.totalorder %s31, 1
      %s576 = scalar_select %p575, %s31, 1
      %s577 = smul.addr %s576, 8
      %s578 = scalar_lea.vmem %s0, %s577
      %p579 = pneg %p52
      %p580 = pneg %p49
      %p581 = scmp.lt.s32.totalorder %s31, 1
      %s582 = scalar_select %p581, %s31, 1
      %s583 = scalar_lea.vmem %s1, %s582
      %p584 = pneg %p78
      %p585 = pneg %p75
      %p586 = pneg %p99
      %p587 = pneg %p96
      %p588 = pneg %p120
      %p589 = pneg %p117
      %p590 = pneg %p141
      %p591 = pneg %p138
      %p592 = pneg %p162
      %p593 = pneg %p159
      %p594 = pneg %p183
      %p595 = pneg %p180
      %p596 = pneg %p204
      %p597 = pneg %p201
      %p598 = pneg %p225
      %p599 = pneg %p222
      %p600 = pneg %p246
      %p601 = pneg %p243
      %p602 = pneg %p267
      %p603 = pneg %p264
      %p604 = pneg %p288
      %p605 = pneg %p285
      %p606 = pneg %p309
      %p607 = pneg %p306
      %p608 = pneg %p330
      %p609 = pneg %p327
      %p610 = pneg %p351
      %p611 = pneg %p348
      %p612 = pneg %p372
      %p613 = pneg %p369
      %p614 = pneg %p393
      %p615 = pneg %p390
      %p616 = pneg %p414
      %p617 = pneg %p411
      %p618 = pneg %p435
      %p619 = pneg %p432
      %p620 = pneg %p456
      %p621 = pneg %p453
      %p622 = pneg %p482
      %p623 = pneg %p479
      %p624 = scmp.lt.s32.totalorder %s31, 1
      %s625 = scalar_select %p624, %s31, 1
      %s626 = scalar_lea.vmem %s20, %s625
      %p627 = scmp.lt.s32.totalorder %s31, 1
      %s628 = scalar_select %p627, %s31, 1
      %s629 = smul.addr %s628, 8
      %s630 = scalar_lea.vmem %s0, %s629
      %p631 = scmp.lt.s32.totalorder %s31, 1
      %s632 = scalar_select %p631, %s31, 1
      %s633 = scalar_lea.vmem %s1, %s632
      %p634 = scmp.lt.s32.totalorder %s31, 1
      %s635 = scalar_select %p634, %s31, 1
      %s636 = scalar_lea.vmem %s20, %s635
      %v638 = vld [vmem:[%s630] sm:$0xff]
      %v639 = vld [vmem:[%s2] sm:$0x1]
      %v640 = vld [vmem:[%s3] sm:$0x1]
      %vm641 = vcmask 261120
      %v642 = vsel %vm641, %v638, 0.0
      %643 = vadd.xlane.f32.xlu0 %v642
      %v644 = vpop.xlane.xlu0 %643
      %v645 = vrcp.pop 32.0
      %v646 = vmul.f32 %v644, %v645
      %v647 = vsub.f32 %v638, %v646
      %v648 = vmul.f32 %v647, %v647
      %v649 = vsel %vm641, %v648, 0.0
      %650 = vadd.xlane.f32.xlu0 %v649
      %v651 = vpop.xlane.xlu0 %650
      %v652 = vmul.f32 %v651, %v645
      %v653 = vadd.f32 %v652, 1e-12
      %v654 = vrsqrt.pop %v653
      %v655 = vmul.f32 %v647, %v654
      %v657 = vlaneseq
      %v658 = vshrl.u32 %v657, 7
      %v659 = vsub.s32 0, %v658
      %v660 = vrot.slane %v639, %v659
      %v662 = vmul.f32 %v655, %v660
      %v664 = vlaneseq
      %v665 = vshrl.u32 %v664, 7
      %v666 = vsub.s32 0, %v665
      %v667 = vrot.slane %v640, %v666
      %v669 = vadd.f32 %v662, %v667
      %v670 = vld [vmem:[%s633] sm:$0x1]
      %v671 = vpack.c.bf16 %v669, %v669
      %v672 = vld [vmem:[%s4] sm:$0xf]
      %v673 = vld [vmem:[%s4 + $0x4] sm:$0xf]
      %v674 = vld [vmem:[%s4 + $0x8] sm:$0xf]
      %v675 = vld [vmem:[%s4 + $0xc] sm:$0xf]
      %v676 = vld [vmem:[%s4 + $0x10] sm:$0xf]
      %v677 = vld [vmem:[%s4 + $0x14] sm:$0xf]
      %v678 = vld [vmem:[%s4 + $0x18] sm:$0xf]
      %v679 = vld [vmem:[%s4 + $0x1c] sm:$0xf]
      %v680 = vld [vmem:[%s4 + $0x20] sm:$0xf]
      %v681 = vld [vmem:[%s4 + $0x24] sm:$0xf]
      %v682 = vld [vmem:[%s4 + $0x28] sm:$0xf]
      %v683 = vld [vmem:[%s4 + $0x2c] sm:$0xf]
      %v684 = vld [vmem:[%s4 + $0x30] sm:$0xf]
      %v685 = vld [vmem:[%s4 + $0x34] sm:$0xf]
      %v686 = vld [vmem:[%s4 + $0x38] sm:$0xf]
      %v687 = vld [vmem:[%s4 + $0x3c] sm:$0xf]
      %v688 = vld [vmem:[%s4 + $0x40] sm:$0xf]
      %v689 = vld [vmem:[%s4 + $0x44] sm:$0xf]
      %v690 = vld [vmem:[%s4 + $0x48] sm:$0xf]
      %v691 = vld [vmem:[%s4 + $0x4c] sm:$0xf]
      %v692 = vld [vmem:[%s4 + $0x50] sm:$0xf]
      %v693 = vld [vmem:[%s4 + $0x54] sm:$0xf]
      %v694 = vld [vmem:[%s4 + $0x58] sm:$0xf]
      %v695 = vld [vmem:[%s4 + $0x5c] sm:$0xf]
      %v696 = vld [vmem:[%s4 + $0x60] sm:$0xf]
      %v697 = vld [vmem:[%s4 + $0x64] sm:$0xf]
      %v698 = vld [vmem:[%s4 + $0x68] sm:$0xf]
      %v699 = vld [vmem:[%s4 + $0x6c] sm:$0xf]
      %v700 = vld [vmem:[%s4 + $0x70] sm:$0xf]
      %v701 = vld [vmem:[%s4 + $0x74] sm:$0xf]
      %v702 = vld [vmem:[%s4 + $0x78] sm:$0xf]
      %v703 = vld [vmem:[%s4 + $0x7c] sm:$0xf]
      %v704 = vld [vmem:[%s4 + $0x80] sm:$0xf]
      %v705 = vld [vmem:[%s4 + $0x84] sm:$0xf]
      %v706 = vld [vmem:[%s4 + $0x88] sm:$0xf]
      %v707 = vld [vmem:[%s4 + $0x8c] sm:$0xf]
      %v708 = vld [vmem:[%s4 + $0x90] sm:$0xf]
      %v709 = vld [vmem:[%s4 + $0x94] sm:$0xf]
      %v710 = vld [vmem:[%s4 + $0x98] sm:$0xf]
      %v711 = vld [vmem:[%s4 + $0x9c] sm:$0xf]
      %v712 = vld [vmem:[%s4 + $0xa0] sm:$0xf]
      %v713 = vld [vmem:[%s4 + $0xa4] sm:$0xf]
      %v714 = vld [vmem:[%s4 + $0xa8] sm:$0xf]
      %v715 = vld [vmem:[%s4 + $0xac] sm:$0xf]
      %v716 = vld [vmem:[%s4 + $0xb0] sm:$0xf]
      %v717 = vld [vmem:[%s4 + $0xb4] sm:$0xf]
      %v718 = vld [vmem:[%s4 + $0xb8] sm:$0xf]
      %v719 = vld [vmem:[%s4 + $0xbc] sm:$0xf]
      %v720 = vld [vmem:[%s5] sm:$0x1]
      %v721 = vld [vmem:[%s5 + $0x1] sm:$0x1]
      %v722 = vld [vmem:[%s5 + $0x2] sm:$0x1]
      %v723 = vld [vmem:[%s5 + $0x3] sm:$0x1]
      %v724 = vld [vmem:[%s5 + $0x4] sm:$0x1]
      %v725 = vld [vmem:[%s5 + $0x5] sm:$0x1]
      %v726 = vld [vmem:[%s5 + $0x6] sm:$0x1]
      %v727 = vld [vmem:[%s5 + $0x7] sm:$0x1]
      %v728 = vld [vmem:[%s5 + $0x8] sm:$0x1]
      %v729 = vld [vmem:[%s5 + $0x9] sm:$0x1]
      %v730 = vld [vmem:[%s5 + $0xa] sm:$0x1]
      %v731 = vld [vmem:[%s5 + $0xb] sm:$0x1]
      %v744 = vlaneseq
      %v745 = vshrl.u32 %v744, 7
      %v746 = vsub.s32 0, %v745
      %v747 = vrot.slane %v720, %v746
      %v748 = vlaneseq
      %v749 = vshrl.u32 %v748, 7
      %v750 = vsub.s32 0, %v749
      %v751 = vrot.slane %v721, %v750
      %v752 = vlaneseq
      %v753 = vshrl.u32 %v752, 7
      %v754 = vsub.s32 0, %v753
      %v755 = vrot.slane %v722, %v754
      %v756 = vlaneseq
      %v757 = vshrl.u32 %v756, 7
      %v758 = vsub.s32 0, %v757
      %v759 = vrot.slane %v723, %v758
      %v760 = vlaneseq
      %v761 = vshrl.u32 %v760, 7
      %v762 = vsub.s32 0, %v761
      %v763 = vrot.slane %v724, %v762
      %v764 = vlaneseq
      %v765 = vshrl.u32 %v764, 7
      %v766 = vsub.s32 0, %v765
      %v767 = vrot.slane %v725, %v766
      %v768 = vlaneseq
      %v769 = vshrl.u32 %v768, 7
      %v770 = vsub.s32 0, %v769
      %v771 = vrot.slane %v726, %v770
      %v772 = vlaneseq
      %v773 = vshrl.u32 %v772, 7
      %v774 = vsub.s32 0, %v773
      %v775 = vrot.slane %v727, %v774
      %v776 = vlaneseq
      %v777 = vshrl.u32 %v776, 7
      %v778 = vsub.s32 0, %v777
      %v779 = vrot.slane %v728, %v778
      %v780 = vlaneseq
      %v781 = vshrl.u32 %v780, 7
      %v782 = vsub.s32 0, %v781
      %v783 = vrot.slane %v729, %v782
      %v784 = vlaneseq
      %v785 = vshrl.u32 %v784, 7
      %v786 = vsub.s32 0, %v785
      %v787 = vrot.slane %v730, %v786
      %v788 = vlaneseq
      %v789 = vshrl.u32 %v788, 7
      %v790 = vsub.s32 0, %v789
      %v791 = vrot.slane %v731, %v790
      %v808 = vunpack.c.l.b16 %v672
      %v809 = vunpack.c.l.b16 %v673
      %v810 = vunpack.c.l.b16 %v674
      %v811 = vunpack.c.l.b16 %v675
      %v812 = vpack.c.b16 %v809, %v808
      %v813 = vpack.c.b16 %v811, %v810
      %v817 = vsel %vm641, %v671, 0
      %819 = vmatprep.subr.bf16.mxu0 0
      %820 = vmatpush1.bf16.msra.mxu0 0
      %821 = vmatprep.subr.bf16.mxu0 0
      %822 = vmatpush1.bf16.msra.mxu0 0
      %823 = vmatprep.subr.bf16.mxu0 0
      %824 = vmatpush1.bf16.msra.mxu0 0
      %825 = vmatprep.subr.bf16.mxu0 0
      %826 = vmatpush1.bf16.msra.mxu0 0
      %827 = vmatprep.subr.bf16.mxu0 0
      %828 = vmatpush1.bf16.msra.mxu0 0
      %829 = vmatprep.subr.bf16.mxu0 0
      %830 = vmatpush1.bf16.msra.mxu0 0
      %831 = vmatprep.subr.bf16.mxu0 0
      %832 = vmatpush1.bf16.msra.mxu0 %v813
      %833 = vmatprep.subr.bf16.mxu0 0
      %834 = vmatpush1.bf16.msra.mxu0 %v812
      %835 = vmatprep.subr.bf16.mxu0 0
      %836 = vmatpush2.bf16.msra.mxu0 0
      %837 = vmatprep.subr.bf16.mxu0 0
      %838 = vmatpush2.bf16.msra.mxu0 0
      %839 = vmatprep.subr.bf16.mxu0 0
      %840 = vmatpush2.bf16.msra.mxu0 0
      %841 = vmatprep.subr.bf16.mxu0 0
      %842 = vmatpush2.bf16.msra.mxu0 0
      %843 = vmatprep.subr.bf16.mxu0 0
      %844 = vmatpush2.bf16.msra.mxu0 0
      %845 = vmatprep.subr.bf16.mxu0 0
      %846 = vmatpush2.bf16.msra.mxu0 0
      %847 = vmatprep.subr.bf16.mxu0 0
      %848 = vmatpush2.bf16.msra.mxu0 0
      %849 = vmatprep.subr.bf16.mxu0 0
      %850 = vmatpush2.bf16.msra.mxu0 0
      %851 = vmatprep.mubr.bf16.mxu0 0
      %852 = vmatmul.mubr.bf16.gmra.mxu0 %v817
      %v853 = vpop.f32.mrf.mxu0
      %v854 = vadd.f32 %v747, %v853
      %v855 = vpop.f32.mrf.mxu0
      %v856 = vpop.f32.mrf.mxu0
      %v857 = vpop.f32.mrf.mxu0
      %858 = vdwg.mxu0
      %v863 = vunpack.c.l.b16 %v676
      %v864 = vunpack.c.l.b16 %v677
      %v865 = vunpack.c.l.b16 %v678
      %v866 = vunpack.c.l.b16 %v679
      %v867 = vpack.c.b16 %v864, %v863
      %v868 = vpack.c.b16 %v866, %v865
      %871 = vmatprep.subr.bf16.mxu0 0
      %872 = vmatpush1.bf16.msra.mxu0 0
      %873 = vmatprep.subr.bf16.mxu0 0
      %874 = vmatpush1.bf16.msra.mxu0 0
      %875 = vmatprep.subr.bf16.mxu0 0
      %876 = vmatpush1.bf16.msra.mxu0 0
      %877 = vmatprep.subr.bf16.mxu0 0
      %878 = vmatpush1.bf16.msra.mxu0 0
      %879 = vmatprep.subr.bf16.mxu0 0
      %880 = vmatpush1.bf16.msra.mxu0 0
      %881 = vmatprep.subr.bf16.mxu0 0
      %882 = vmatpush1.bf16.msra.mxu0 0
      %883 = vmatprep.subr.bf16.mxu0 0
      %884 = vmatpush1.bf16.msra.mxu0 %v868
      %885 = vmatprep.subr.bf16.mxu0 0
      %886 = vmatpush1.bf16.msra.mxu0 %v867
      %887 = vmatprep.subr.bf16.mxu0 0
      %888 = vmatpush2.bf16.msra.mxu0 0
      %889 = vmatprep.subr.bf16.mxu0 0
      %890 = vmatpush2.bf16.msra.mxu0 0
      %891 = vmatprep.subr.bf16.mxu0 0
      %892 = vmatpush2.bf16.msra.mxu0 0
      %893 = vmatprep.subr.bf16.mxu0 0
      %894 = vmatpush2.bf16.msra.mxu0 0
      %895 = vmatprep.subr.bf16.mxu0 0
      %896 = vmatpush2.bf16.msra.mxu0 0
      %897 = vmatprep.subr.bf16.mxu0 0
      %898 = vmatpush2.bf16.msra.mxu0 0
      %899 = vmatprep.subr.bf16.mxu0 0
      %900 = vmatpush2.bf16.msra.mxu0 0
      %901 = vmatprep.subr.bf16.mxu0 0
      %902 = vmatpush2.bf16.msra.mxu0 0
      %903 = vmatprep.mubr.bf16.mxu0 0
      %904 = vmatmul.mubr.bf16.gmra.mxu0 %v817
      %v905 = vpop.f32.mrf.mxu0
      %v906 = vadd.f32 %v751, %v905
      %v907 = vpop.f32.mrf.mxu0
      %v908 = vpop.f32.mrf.mxu0
      %v909 = vpop.f32.mrf.mxu0
      %910 = vdwg.mxu0
      %v915 = vunpack.c.l.b16 %v680
      %v916 = vunpack.c.l.b16 %v681
      %v917 = vunpack.c.l.b16 %v682
      %v918 = vunpack.c.l.b16 %v683
      %v919 = vpack.c.b16 %v916, %v915
      %v920 = vpack.c.b16 %v918, %v917
      %923 = vmatprep.subr.bf16.mxu0 0
      %924 = vmatpush1.bf16.msra.mxu0 0
      %925 = vmatprep.subr.bf16.mxu0 0
      %926 = vmatpush1.bf16.msra.mxu0 0
      %927 = vmatprep.subr.bf16.mxu0 0
      %928 = vmatpush1.bf16.msra.mxu0 0
      %929 = vmatprep.subr.bf16.mxu0 0
      %930 = vmatpush1.bf16.msra.mxu0 0
      %931 = vmatprep.subr.bf16.mxu0 0
      %932 = vmatpush1.bf16.msra.mxu0 0
      %933 = vmatprep.subr.bf16.mxu0 0
      %934 = vmatpush1.bf16.msra.mxu0 0
      %935 = vmatprep.subr.bf16.mxu0 0
      %936 = vmatpush1.bf16.msra.mxu0 %v920
      %937 = vmatprep.subr.bf16.mxu0 0
      %938 = vmatpush1.bf16.msra.mxu0 %v919
      %939 = vmatprep.subr.bf16.mxu0 0
      %940 = vmatpush2.bf16.msra.mxu0 0
      %941 = vmatprep.subr.bf16.mxu0 0
      %942 = vmatpush2.bf16.msra.mxu0 0
      %943 = vmatprep.subr.bf16.mxu0 0
      %944 = vmatpush2.bf16.msra.mxu0 0
      %945 = vmatprep.subr.bf16.mxu0 0
      %946 = vmatpush2.bf16.msra.mxu0 0
      %947 = vmatprep.subr.bf16.mxu0 0
      %948 = vmatpush2.bf16.msra.mxu0 0
      %949 = vmatprep.subr.bf16.mxu0 0
      %950 = vmatpush2.bf16.msra.mxu0 0
      %951 = vmatprep.subr.bf16.mxu0 0
      %952 = vmatpush2.bf16.msra.mxu0 0
      %953 = vmatprep.subr.bf16.mxu0 0
      %954 = vmatpush2.bf16.msra.mxu0 0
      %955 = vmatprep.mubr.bf16.mxu0 0
      %956 = vmatmul.mubr.bf16.gmra.mxu0 %v817
      %v957 = vpop.f32.mrf.mxu0
      %v958 = vadd.f32 %v755, %v957
      %v959 = vpop.f32.mrf.mxu0
      %v960 = vpop.f32.mrf.mxu0
      %v961 = vpop.f32.mrf.mxu0
      %962 = vdwg.mxu0
      %v967 = vunpack.c.l.b16 %v684
      %v968 = vunpack.c.l.b16 %v685
      %v969 = vunpack.c.l.b16 %v686
      %v970 = vunpack.c.l.b16 %v687
      %v971 = vpack.c.b16 %v968, %v967
      %v972 = vpack.c.b16 %v970, %v969
      %975 = vmatprep.subr.bf16.mxu0 0
      %976 = vmatpush1.bf16.msra.mxu0 0
      %977 = vmatprep.subr.bf16.mxu0 0
      %978 = vmatpush1.bf16.msra.mxu0 0
      %979 = vmatprep.subr.bf16.mxu0 0
      %980 = vmatpush1.bf16.msra.mxu0 0
      %981 = vmatprep.subr.bf16.mxu0 0
      %982 = vmatpush1.bf16.msra.mxu0 0
      %983 = vmatprep.subr.bf16.mxu0 0
      %984 = vmatpush1.bf16.msra.mxu0 0
      %985 = vmatprep.subr.bf16.mxu0 0
      %986 = vmatpush1.bf16.msra.mxu0 0
      %987 = vmatprep.subr.bf16.mxu0 0
      %988 = vmatpush1.bf16.msra.mxu0 %v972
      %989 = vmatprep.subr.bf16.mxu0 0
      %990 = vmatpush1.bf16.msra.mxu0 %v971
      %991 = vmatprep.subr.bf16.mxu0 0
      %992 = vmatpush2.bf16.msra.mxu0 0
      %993 = vmatprep.subr.bf16.mxu0 0
      %994 = vmatpush2.bf16.msra.mxu0 0
      %995 = vmatprep.subr.bf16.mxu0 0
      %996 = vmatpush2.bf16.msra.mxu0 0
      %997 = vmatprep.subr.bf16.mxu0 0
      %998 = vmatpush2.bf16.msra.mxu0 0
      %999 = vmatprep.subr.bf16.mxu0 0
      %1000 = vmatpush2.bf16.msra.mxu0 0
      %1001 = vmatprep.subr.bf16.mxu0 0
      %1002 = vmatpush2.bf16.msra.mxu0 0
      %1003 = vmatprep.subr.bf16.mxu0 0
      %1004 = vmatpush2.bf16.msra.mxu0 0
      %1005 = vmatprep.subr.bf16.mxu0 0
      %1006 = vmatpush2.bf16.msra.mxu0 0
      %1007 = vmatprep.mubr.bf16.mxu0 0
      %1008 = vmatmul.mubr.bf16.gmra.mxu0 %v817
      %v1009 = vpop.f32.mrf.mxu0
      %v1010 = vadd.f32 %v759, %v1009
      %v1011 = vpop.f32.mrf.mxu0
      %v1012 = vpop.f32.mrf.mxu0
      %v1013 = vpop.f32.mrf.mxu0
      %1014 = vdwg.mxu0
      %v1019 = vunpack.c.l.b16 %v688
      %v1020 = vunpack.c.l.b16 %v689
      %v1021 = vunpack.c.l.b16 %v690
      %v1022 = vunpack.c.l.b16 %v691
      %v1023 = vpack.c.b16 %v1020, %v1019
      %v1024 = vpack.c.b16 %v1022, %v1021
      %1027 = vmatprep.subr.bf16.mxu0 0
      %1028 = vmatpush1.bf16.msra.mxu0 0
      %1029 = vmatprep.subr.bf16.mxu0 0
      %1030 = vmatpush1.bf16.msra.mxu0 0
      %1031 = vmatprep.subr.bf16.mxu0 0
      %1032 = vmatpush1.bf16.msra.mxu0 0
      %1033 = vmatprep.subr.bf16.mxu0 0
      %1034 = vmatpush1.bf16.msra.mxu0 0
      %1035 = vmatprep.subr.bf16.mxu0 0
      %1036 = vmatpush1.bf16.msra.mxu0 0
      %1037 = vmatprep.subr.bf16.mxu0 0
      %1038 = vmatpush1.bf16.msra.mxu0 0
      %1039 = vmatprep.subr.bf16.mxu0 0
      %1040 = vmatpush1.bf16.msra.mxu0 %v1024
      %1041 = vmatprep.subr.bf16.mxu0 0
      %1042 = vmatpush1.bf16.msra.mxu0 %v1023
      %1043 = vmatprep.subr.bf16.mxu0 0
      %1044 = vmatpush2.bf16.msra.mxu0 0
      %1045 = vmatprep.subr.bf16.mxu0 0
      %1046 = vmatpush2.bf16.msra.mxu0 0
      %1047 = vmatprep.subr.bf16.mxu0 0
      %1048 = vmatpush2.bf16.msra.mxu0 0
      %1049 = vmatprep.subr.bf16.mxu0 0
      %1050 = vmatpush2.bf16.msra.mxu0 0
      %1051 = vmatprep.subr.bf16.mxu0 0
      %1052 = vmatpush2.bf16.msra.mxu0 0
      %1053 = vmatprep.subr.bf16.mxu0 0
      %1054 = vmatpush2.bf16.msra.mxu0 0
      %1055 = vmatprep.subr.bf16.mxu0 0
      %1056 = vmatpush2.bf16.msra.mxu0 0
      %1057 = vmatprep.subr.bf16.mxu0 0
      %1058 = vmatpush2.bf16.msra.mxu0 0
      %1059 = vmatprep.mubr.bf16.mxu0 0
      %1060 = vmatmul.mubr.bf16.gmra.mxu0 %v817
      %v1061 = vpop.f32.mrf.mxu0
      %v1062 = vadd.f32 %v763, %v1061
      %v1063 = vpop.f32.mrf.mxu0
      %v1064 = vpop.f32.mrf.mxu0
      %v1065 = vpop.f32.mrf.mxu0
      %1066 = vdwg.mxu0
      %v1071 = vunpack.c.l.b16 %v692
      %v1072 = vunpack.c.l.b16 %v693
      %v1073 = vunpack.c.l.b16 %v694
      %v1074 = vunpack.c.l.b16 %v695
      %v1075 = vpack.c.b16 %v1072, %v1071
      %v1076 = vpack.c.b16 %v1074, %v1073
      %1079 = vmatprep.subr.bf16.mxu0 0
      %1080 = vmatpush1.bf16.msra.mxu0 0
      %1081 = vmatprep.subr.bf16.mxu0 0
      %1082 = vmatpush1.bf16.msra.mxu0 0
      %1083 = vmatprep.subr.bf16.mxu0 0
      %1084 = vmatpush1.bf16.msra.mxu0 0
      %1085 = vmatprep.subr.bf16.mxu0 0
      %1086 = vmatpush1.bf16.msra.mxu0 0
      %1087 = vmatprep.subr.bf16.mxu0 0
      %1088 = vmatpush1.bf16.msra.mxu0 0
      %1089 = vmatprep.subr.bf16.mxu0 0
      %1090 = vmatpush1.bf16.msra.mxu0 0
      %1091 = vmatprep.subr.bf16.mxu0 0
      %1092 = vmatpush1.bf16.msra.mxu0 %v1076
      %1093 = vmatprep.subr.bf16.mxu0 0
      %1094 = vmatpush1.bf16.msra.mxu0 %v1075
      %1095 = vmatprep.subr.bf16.mxu0 0
      %1096 = vmatpush2.bf16.msra.mxu0 0
      %1097 = vmatprep.subr.bf16.mxu0 0
      %1098 = vmatpush2.bf16.msra.mxu0 0
      %1099 = vmatprep.subr.bf16.mxu0 0
      %1100 = vmatpush2.bf16.msra.mxu0 0
      %1101 = vmatprep.subr.bf16.mxu0 0
      %1102 = vmatpush2.bf16.msra.mxu0 0
      %1103 = vmatprep.subr.bf16.mxu0 0
      %1104 = vmatpush2.bf16.msra.mxu0 0
      %1105 = vmatprep.subr.bf16.mxu0 0
      %1106 = vmatpush2.bf16.msra.mxu0 0
      %1107 = vmatprep.subr.bf16.mxu0 0
      %1108 = vmatpush2.bf16.msra.mxu0 0
      %1109 = vmatprep.subr.bf16.mxu0 0
      %1110 = vmatpush2.bf16.msra.mxu0 0
      %1111 = vmatprep.mubr.bf16.mxu0 0
      %1112 = vmatmul.mubr.bf16.gmra.mxu0 %v817
      %v1113 = vpop.f32.mrf.mxu0
      %v1114 = vadd.f32 %v767, %v1113
      %v1115 = vpop.f32.mrf.mxu0
      %v1116 = vpop.f32.mrf.mxu0
      %v1117 = vpop.f32.mrf.mxu0
      %1118 = vdwg.mxu0
      %v1123 = vunpack.c.l.b16 %v696
      %v1124 = vunpack.c.l.b16 %v697
      %v1125 = vunpack.c.l.b16 %v698
      %v1126 = vunpack.c.l.b16 %v699
      %v1127 = vpack.c.b16 %v1124, %v1123
      %v1128 = vpack.c.b16 %v1126, %v1125
      %1131 = vmatprep.subr.bf16.mxu0 0
      %1132 = vmatpush1.bf16.msra.mxu0 0
      %1133 = vmatprep.subr.bf16.mxu0 0
      %1134 = vmatpush1.bf16.msra.mxu0 0
      %1135 = vmatprep.subr.bf16.mxu0 0
      %1136 = vmatpush1.bf16.msra.mxu0 0
      %1137 = vmatprep.subr.bf16.mxu0 0
      %1138 = vmatpush1.bf16.msra.mxu0 0
      %1139 = vmatprep.subr.bf16.mxu0 0
      %1140 = vmatpush1.bf16.msra.mxu0 0
      %1141 = vmatprep.subr.bf16.mxu0 0
      %1142 = vmatpush1.bf16.msra.mxu0 0
      %1143 = vmatprep.subr.bf16.mxu0 0
      %1144 = vmatpush1.bf16.msra.mxu0 %v1128
      %1145 = vmatprep.subr.bf16.mxu0 0
      %1146 = vmatpush1.bf16.msra.mxu0 %v1127
      %1147 = vmatprep.subr.bf16.mxu0 0
      %1148 = vmatpush2.bf16.msra.mxu0 0
      %1149 = vmatprep.subr.bf16.mxu0 0
      %1150 = vmatpush2.bf16.msra.mxu0 0
      %1151 = vmatprep.subr.bf16.mxu0 0
      %1152 = vmatpush2.bf16.msra.mxu0 0
      %1153 = vmatprep.subr.bf16.mxu0 0
      %1154 = vmatpush2.bf16.msra.mxu0 0
      %1155 = vmatprep.subr.bf16.mxu0 0
      %1156 = vmatpush2.bf16.msra.mxu0 0
      %1157 = vmatprep.subr.bf16.mxu0 0
      %1158 = vmatpush2.bf16.msra.mxu0 0
      %1159 = vmatprep.subr.bf16.mxu0 0
      %1160 = vmatpush2.bf16.msra.mxu0 0
      %1161 = vmatprep.subr.bf16.mxu0 0
      %1162 = vmatpush2.bf16.msra.mxu0 0
      %1163 = vmatprep.mubr.bf16.mxu0 0
      %1164 = vmatmul.mubr.bf16.gmra.mxu0 %v817
      %v1165 = vpop.f32.mrf.mxu0
      %v1166 = vadd.f32 %v771, %v1165
      %v1167 = vpop.f32.mrf.mxu0
      %v1168 = vpop.f32.mrf.mxu0
      %v1169 = vpop.f32.mrf.mxu0
      %1170 = vdwg.mxu0
      %v1175 = vunpack.c.l.b16 %v700
      %v1176 = vunpack.c.l.b16 %v701
      %v1177 = vunpack.c.l.b16 %v702
      %v1178 = vunpack.c.l.b16 %v703
      %v1179 = vpack.c.b16 %v1176, %v1175
      %v1180 = vpack.c.b16 %v1178, %v1177
      %1183 = vmatprep.subr.bf16.mxu0 0
      %1184 = vmatpush1.bf16.msra.mxu0 0
      %1185 = vmatprep.subr.bf16.mxu0 0
      %1186 = vmatpush1.bf16.msra.mxu0 0
      %1187 = vmatprep.subr.bf16.mxu0 0
      %1188 = vmatpush1.bf16.msra.mxu0 0
      %1189 = vmatprep.subr.bf16.mxu0 0
      %1190 = vmatpush1.bf16.msra.mxu0 0
      %1191 = vmatprep.subr.bf16.mxu0 0
      %1192 = vmatpush1.bf16.msra.mxu0 0
      %1193 = vmatprep.subr.bf16.mxu0 0
      %1194 = vmatpush1.bf16.msra.mxu0 0
      %1195 = vmatprep.subr.bf16.mxu0 0
      %1196 = vmatpush1.bf16.msra.mxu0 %v1180
      %1197 = vmatprep.subr.bf16.mxu0 0
      %1198 = vmatpush1.bf16.msra.mxu0 %v1179
      %1199 = vmatprep.subr.bf16.mxu0 0
      %1200 = vmatpush2.bf16.msra.mxu0 0
      %1201 = vmatprep.subr.bf16.mxu0 0
      %1202 = vmatpush2.bf16.msra.mxu0 0
      %1203 = vmatprep.subr.bf16.mxu0 0
      %1204 = vmatpush2.bf16.msra.mxu0 0
      %1205 = vmatprep.subr.bf16.mxu0 0
      %1206 = vmatpush2.bf16.msra.mxu0 0
      %1207 = vmatprep.subr.bf16.mxu0 0
      %1208 = vmatpush2.bf16.msra.mxu0 0
      %1209 = vmatprep.subr.bf16.mxu0 0
      %1210 = vmatpush2.bf16.msra.mxu0 0
      %1211 = vmatprep.subr.bf16.mxu0 0
      %1212 = vmatpush2.bf16.msra.mxu0 0
      %1213 = vmatprep.subr.bf16.mxu0 0
      %1214 = vmatpush2.bf16.msra.mxu0 0
      %1215 = vmatprep.mubr.bf16.mxu0 0
      %1216 = vmatmul.mubr.bf16.gmra.mxu0 %v817
      %v1217 = vpop.f32.mrf.mxu0
      %v1218 = vadd.f32 %v775, %v1217
      %v1219 = vpop.f32.mrf.mxu0
      %v1220 = vpop.f32.mrf.mxu0
      %v1221 = vpop.f32.mrf.mxu0
      %1222 = vdwg.mxu0
      %v1227 = vunpack.c.l.b16 %v704
      %v1228 = vunpack.c.l.b16 %v705
      %v1229 = vunpack.c.l.b16 %v706
      %v1230 = vunpack.c.l.b16 %v707
      %v1231 = vpack.c.b16 %v1228, %v1227
      %v1232 = vpack.c.b16 %v1230, %v1229
      %1235 = vmatprep.subr.bf16.mxu0 0
      %1236 = vmatpush1.bf16.msra.mxu0 0
      %1237 = vmatprep.subr.bf16.mxu0 0
      %1238 = vmatpush1.bf16.msra.mxu0 0
      %1239 = vmatprep.subr.bf16.mxu0 0
      %1240 = vmatpush1.bf16.msra.mxu0 0
      %1241 = vmatprep.subr.bf16.mxu0 0
      %1242 = vmatpush1.bf16.msra.mxu0 0
      %1243 = vmatprep.subr.bf16.mxu0 0
      %1244 = vmatpush1.bf16.msra.mxu0 0
      %1245 = vmatprep.subr.bf16.mxu0 0
      %1246 = vmatpush1.bf16.msra.mxu0 0
      %1247 = vmatprep.subr.bf16.mxu0 0
      %1248 = vmatpush1.bf16.msra.mxu0 %v1232
      %1249 = vmatprep.subr.bf16.mxu0 0
      %1250 = vmatpush1.bf16.msra.mxu0 %v1231
      %1251 = vmatprep.subr.bf16.mxu0 0
      %1252 = vmatpush2.bf16.msra.mxu0 0
      %1253 = vmatprep.subr.bf16.mxu0 0
      %1254 = vmatpush2.bf16.msra.mxu0 0
      %1255 = vmatprep.subr.bf16.mxu0 0
      %1256 = vmatpush2.bf16.msra.mxu0 0
      %1257 = vmatprep.subr.bf16.mxu0 0
      %1258 = vmatpush2.bf16.msra.mxu0 0
      %1259 = vmatprep.subr.bf16.mxu0 0
      %1260 = vmatpush2.bf16.msra.mxu0 0
      %1261 = vmatprep.subr.bf16.mxu0 0
      %1262 = vmatpush2.bf16.msra.mxu0 0
      %1263 = vmatprep.subr.bf16.mxu0 0
      %1264 = vmatpush2.bf16.msra.mxu0 0
      %1265 = vmatprep.subr.bf16.mxu0 0
      %1266 = vmatpush2.bf16.msra.mxu0 0
      %1267 = vmatprep.mubr.bf16.mxu0 0
      %1268 = vmatmul.mubr.bf16.gmra.mxu0 %v817
      %v1269 = vpop.f32.mrf.mxu0
      %v1270 = vadd.f32 %v779, %v1269
      %v1271 = vpop.f32.mrf.mxu0
      %v1272 = vpop.f32.mrf.mxu0
      %v1273 = vpop.f32.mrf.mxu0
      %1274 = vdwg.mxu0
      %v1279 = vunpack.c.l.b16 %v708
      %v1280 = vunpack.c.l.b16 %v709
      %v1281 = vunpack.c.l.b16 %v710
      %v1282 = vunpack.c.l.b16 %v711
      %v1283 = vpack.c.b16 %v1280, %v1279
      %v1284 = vpack.c.b16 %v1282, %v1281
      %1287 = vmatprep.subr.bf16.mxu0 0
      %1288 = vmatpush1.bf16.msra.mxu0 0
      %1289 = vmatprep.subr.bf16.mxu0 0
      %1290 = vmatpush1.bf16.msra.mxu0 0
      %1291 = vmatprep.subr.bf16.mxu0 0
      %1292 = vmatpush1.bf16.msra.mxu0 0
      %1293 = vmatprep.subr.bf16.mxu0 0
      %1294 = vmatpush1.bf16.msra.mxu0 0
      %1295 = vmatprep.subr.bf16.mxu0 0
      %1296 = vmatpush1.bf16.msra.mxu0 0
      %1297 = vmatprep.subr.bf16.mxu0 0
      %1298 = vmatpush1.bf16.msra.mxu0 0
      %1299 = vmatprep.subr.bf16.mxu0 0
      %1300 = vmatpush1.bf16.msra.mxu0 %v1284
      %1301 = vmatprep.subr.bf16.mxu0 0
      %1302 = vmatpush1.bf16.msra.mxu0 %v1283
      %1303 = vmatprep.subr.bf16.mxu0 0
      %1304 = vmatpush2.bf16.msra.mxu0 0
      %1305 = vmatprep.subr.bf16.mxu0 0
      %1306 = vmatpush2.bf16.msra.mxu0 0
      %1307 = vmatprep.subr.bf16.mxu0 0
      %1308 = vmatpush2.bf16.msra.mxu0 0
      %1309 = vmatprep.subr.bf16.mxu0 0
      %1310 = vmatpush2.bf16.msra.mxu0 0
      %1311 = vmatprep.subr.bf16.mxu0 0
      %1312 = vmatpush2.bf16.msra.mxu0 0
      %1313 = vmatprep.subr.bf16.mxu0 0
      %1314 = vmatpush2.bf16.msra.mxu0 0
      %1315 = vmatprep.subr.bf16.mxu0 0
      %1316 = vmatpush2.bf16.msra.mxu0 0
      %1317 = vmatprep.subr.bf16.mxu0 0
      %1318 = vmatpush2.bf16.msra.mxu0 0
      %1319 = vmatprep.mubr.bf16.mxu0 0
      %1320 = vmatmul.mubr.bf16.gmra.mxu0 %v817
      %v1321 = vpop.f32.mrf.mxu0
      %v1322 = vadd.f32 %v783, %v1321
      %v1323 = vpop.f32.mrf.mxu0
      %v1324 = vpop.f32.mrf.mxu0
      %v1325 = vpop.f32.mrf.mxu0
      %1326 = vdwg.mxu0
      %v1331 = vunpack.c.l.b16 %v712
      %v1332 = vunpack.c.l.b16 %v713
      %v1333 = vunpack.c.l.b16 %v714
      %v1334 = vunpack.c.l.b16 %v715
      %v1335 = vpack.c.b16 %v1332, %v1331
      %v1336 = vpack.c.b16 %v1334, %v1333
      %1339 = vmatprep.subr.bf16.mxu0 0
      %1340 = vmatpush1.bf16.msra.mxu0 0
      %1341 = vmatprep.subr.bf16.mxu0 0
      %1342 = vmatpush1.bf16.msra.mxu0 0
      %1343 = vmatprep.subr.bf16.mxu0 0
      %1344 = vmatpush1.bf16.msra.mxu0 0
      %1345 = vmatprep.subr.bf16.mxu0 0
      %1346 = vmatpush1.bf16.msra.mxu0 0
      %1347 = vmatprep.subr.bf16.mxu0 0
      %1348 = vmatpush1.bf16.msra.mxu0 0
      %1349 = vmatprep.subr.bf16.mxu0 0
      %1350 = vmatpush1.bf16.msra.mxu0 0
      %1351 = vmatprep.subr.bf16.mxu0 0
      %1352 = vmatpush1.bf16.msra.mxu0 %v1336
      %1353 = vmatprep.subr.bf16.mxu0 0
      %1354 = vmatpush1.bf16.msra.mxu0 %v1335
      %1355 = vmatprep.subr.bf16.mxu0 0
      %1356 = vmatpush2.bf16.msra.mxu0 0
      %1357 = vmatprep.subr.bf16.mxu0 0
      %1358 = vmatpush2.bf16.msra.mxu0 0
      %1359 = vmatprep.subr.bf16.mxu0 0
      %1360 = vmatpush2.bf16.msra.mxu0 0
      %1361 = vmatprep.subr.bf16.mxu0 0
      %1362 = vmatpush2.bf16.msra.mxu0 0
      %1363 = vmatprep.subr.bf16.mxu0 0
      %1364 = vmatpush2.bf16.msra.mxu0 0
      %1365 = vmatprep.subr.bf16.mxu0 0
      %1366 = vmatpush2.bf16.msra.mxu0 0
      %1367 = vmatprep.subr.bf16.mxu0 0
      %1368 = vmatpush2.bf16.msra.mxu0 0
      %1369 = vmatprep.subr.bf16.mxu0 0
      %1370 = vmatpush2.bf16.msra.mxu0 0
      %1371 = vmatprep.mubr.bf16.mxu0 0
      %1372 = vmatmul.mubr.bf16.gmra.mxu0 %v817
      %v1373 = vpop.f32.mrf.mxu0
      %v1374 = vadd.f32 %v787, %v1373
      %v1375 = vpop.f32.mrf.mxu0
      %v1376 = vpop.f32.mrf.mxu0
      %v1377 = vpop.f32.mrf.mxu0
      %1378 = vdwg.mxu0
      %v1383 = vunpack.c.l.b16 %v716
      %v1384 = vunpack.c.l.b16 %v717
      %v1385 = vunpack.c.l.b16 %v718
      %v1386 = vunpack.c.l.b16 %v719
      %v1387 = vpack.c.b16 %v1384, %v1383
      %v1388 = vpack.c.b16 %v1386, %v1385
      %1391 = vmatprep.subr.bf16.mxu0 0
      %1392 = vmatpush1.bf16.msra.mxu0 0
      %1393 = vmatprep.subr.bf16.mxu0 0
      %1394 = vmatpush1.bf16.msra.mxu0 0
      %1395 = vmatprep.subr.bf16.mxu0 0
      %1396 = vmatpush1.bf16.msra.mxu0 0
      %1397 = vmatprep.subr.bf16.mxu0 0
      %1398 = vmatpush1.bf16.msra.mxu0 0
      %1399 = vmatprep.subr.bf16.mxu0 0
      %1400 = vmatpush1.bf16.msra.mxu0 0
      %1401 = vmatprep.subr.bf16.mxu0 0
      %1402 = vmatpush1.bf16.msra.mxu0 0
      %1403 = vmatprep.subr.bf16.mxu0 0
      %1404 = vmatpush1.bf16.msra.mxu0 %v1388
      %1405 = vmatprep.subr.bf16.mxu0 0
      %1406 = vmatpush1.bf16.msra.mxu0 %v1387
      %1407 = vmatprep.subr.bf16.mxu0 0
      %1408 = vmatpush2.bf16.msra.mxu0 0
      %1409 = vmatprep.subr.bf16.mxu0 0
      %1410 = vmatpush2.bf16.msra.mxu0 0
      %1411 = vmatprep.subr.bf16.mxu0 0
      %1412 = vmatpush2.bf16.msra.mxu0 0
      %1413 = vmatprep.subr.bf16.mxu0 0
      %1414 = vmatpush2.bf16.msra.mxu0 0
      %1415 = vmatprep.subr.bf16.mxu0 0
      %1416 = vmatpush2.bf16.msra.mxu0 0
      %1417 = vmatprep.subr.bf16.mxu0 0
      %1418 = vmatpush2.bf16.msra.mxu0 0
      %1419 = vmatprep.subr.bf16.mxu0 0
      %1420 = vmatpush2.bf16.msra.mxu0 0
      %1421 = vmatprep.subr.bf16.mxu0 0
      %1422 = vmatpush2.bf16.msra.mxu0 0
      %1423 = vmatprep.mubr.bf16.mxu0 0
      %1424 = vmatmul.mubr.bf16.gmra.mxu0 %v817
      %v1425 = vpop.f32.mrf.mxu0
      %v1426 = vadd.f32 %v791, %v1425
      %v1427 = vpop.f32.mrf.mxu0
      %v1428 = vpop.f32.mrf.mxu0
      %v1429 = vpop.f32.mrf.mxu0
      %1430 = vdwg.mxu0
      %v1432 = vlaneseq
      %v1433 = vshrl.u32 %v1432, 7
      %v1434 = vsub.s32 0, %v1433
      %v1435 = vrot.slane %v670, %v1434
      %vm1437 = vcmask 64512
      %v1439 = vsel %vm1437, %v854, 0
      %v1442 = vsel %vm1437, %v1062, 0
      %1444 = vmatprep.subr.mxu0 0.0
      %1445 = vmatpush1.xpose.msra.mxu0 0.0
      %1446 = vmatprep.subr.mxu0 0.0
      %1447 = vmatpush1.xpose.msra.mxu0 0.0
      %1448 = vmatprep.subr.mxu0 0.0
      %1449 = vmatpush1.xpose.msra.mxu0 0.0
      %1450 = vmatprep.subr.mxu0 0.0
      %1451 = vmatpush1.xpose.msra.mxu0 0.0
      %1452 = vmatprep.subr.mxu0 0.0
      %1453 = vmatpush1.xpose.msra.mxu0 0.0
      %1454 = vmatprep.subr.mxu0 0.0
      %1455 = vmatpush1.xpose.msra.mxu0 0.0
      %1456 = vmatprep.subr.mxu0 0.0
      %1457 = vmatpush1.xpose.msra.mxu0 0.0
      %1458 = vmatprep.subr.mxu0 0.0
      %1459 = vmatpush1.xpose.msra.mxu0 0.0
      %1460 = vmatprep.subr.mxu0 0.0
      %1461 = vmatpush1.xpose.msra.mxu0 0.0
      %1462 = vmatprep.subr.mxu0 0.0
      %1463 = vmatpush1.xpose.msra.mxu0 0.0
      %1464 = vmatprep.subr.mxu0 0.0
      %1465 = vmatpush1.xpose.msra.mxu0 0.0
      %1466 = vmatprep.subr.mxu0 0.0
      %1467 = vmatpush1.xpose.msra.mxu0 0.0
      %1468 = vmatprep.subr.mxu0 0.0
      %1469 = vmatpush1.xpose.msra.mxu0 0.0
      %1470 = vmatprep.subr.mxu0 0.0
      %1471 = vmatpush1.xpose.msra.mxu0 0.0
      %1472 = vmatprep.subr.mxu0 0.0
      %1473 = vmatpush1.xpose.msra.mxu0 0.0
      %1474 = vmatprep.subr.mxu0 0.0
      %1475 = vmatpush1.xpose.msra.mxu0 %v1442
      %1476 = vmatprep.subr.mxu0 0.0
      %1477 = vmatpush2.xpose.msra.mxu0 0.0
      %1478 = vmatprep.subr.mxu0 0.0
      %1479 = vmatpush2.xpose.msra.mxu0 0.0
      %1480 = vmatprep.subr.mxu0 0.0
      %1481 = vmatpush2.xpose.msra.mxu0 0.0
      %1482 = vmatprep.subr.mxu0 0.0
      %1483 = vmatpush2.xpose.msra.mxu0 0.0
      %1484 = vmatprep.subr.mxu0 0.0
      %1485 = vmatpush2.xpose.msra.mxu0 0.0
      %1486 = vmatprep.subr.mxu0 0.0
      %1487 = vmatpush2.xpose.msra.mxu0 0.0
      %1488 = vmatprep.subr.mxu0 0.0
      %1489 = vmatpush2.xpose.msra.mxu0 0.0
      %1490 = vmatprep.subr.mxu0 0.0
      %1491 = vmatpush2.xpose.msra.mxu0 0.0
      %1492 = vmatprep.subr.mxu0 0.0
      %1493 = vmatpush2.xpose.msra.mxu0 0.0
      %1494 = vmatprep.subr.mxu0 0.0
      %1495 = vmatpush2.xpose.msra.mxu0 0.0
      %1496 = vmatprep.subr.mxu0 0.0
      %1497 = vmatpush2.xpose.msra.mxu0 0.0
      %1498 = vmatprep.subr.mxu0 0.0
      %1499 = vmatpush2.xpose.msra.mxu0 0.0
      %1500 = vmatprep.subr.mxu0 0.0
      %1501 = vmatpush2.xpose.msra.mxu0 0.0
      %1502 = vmatprep.subr.mxu0 0.0
      %1503 = vmatpush2.xpose.msra.mxu0 0.0
      %1504 = vmatprep.subr.mxu0 0.0
      %1505 = vmatpush2.xpose.msra.mxu0 0.0
      %1506 = vmatprep.subr.mxu0 0.0
      %1507 = vmatpush2.xpose.msra.mxu0 0.0
      %1508 = vmatprep.mubr.f32.mxu0 0.0
      %1509 = vmatmul.mubr.f32.gmra.mxu0 %v1439
      %v1510 = vpop.f32.mrf.mxu0
      %v1511 = vadd.f32 %v1435, %v1510
      %v1512 = vpop.f32.mrf.mxu0
      %1513 = vdwg.mxu0
      %v1515 = vsel %vm1437, %v906, 0
      %v1518 = vsel %vm1437, %v1114, 0
      %1520 = vmatprep.subr.mxu0 0.0
      %1521 = vmatpush1.xpose.msra.mxu0 0.0
      %1522 = vmatprep.subr.mxu0 0.0
      %1523 = vmatpush1.xpose.msra.mxu0 0.0
      %1524 = vmatprep.subr.mxu0 0.0
      %1525 = vmatpush1.xpose.msra.mxu0 0.0
      %1526 = vmatprep.subr.mxu0 0.0
      %1527 = vmatpush1.xpose.msra.mxu0 0.0
      %1528 = vmatprep.subr.mxu0 0.0
      %1529 = vmatpush1.xpose.msra.mxu0 0.0
      %1530 = vmatprep.subr.mxu0 0.0
      %1531 = vmatpush1.xpose.msra.mxu0 0.0
      %1532 = vmatprep.subr.mxu0 0.0
      %1533 = vmatpush1.xpose.msra.mxu0 0.0
      %1534 = vmatprep.subr.mxu0 0.0
      %1535 = vmatpush1.xpose.msra.mxu0 0.0
      %1536 = vmatprep.subr.mxu0 0.0
      %1537 = vmatpush1.xpose.msra.mxu0 0.0
      %1538 = vmatprep.subr.mxu0 0.0
      %1539 = vmatpush1.xpose.msra.mxu0 0.0
      %1540 = vmatprep.subr.mxu0 0.0
      %1541 = vmatpush1.xpose.msra.mxu0 0.0
      %1542 = vmatprep.subr.mxu0 0.0
      %1543 = vmatpush1.xpose.msra.mxu0 0.0
      %1544 = vmatprep.subr.mxu0 0.0
      %1545 = vmatpush1.xpose.msra.mxu0 0.0
      %1546 = vmatprep.subr.mxu0 0.0
      %1547 = vmatpush1.xpose.msra.mxu0 0.0
      %1548 = vmatprep.subr.mxu0 0.0
      %1549 = vmatpush1.xpose.msra.mxu0 0.0
      %1550 = vmatprep.subr.mxu0 0.0
      %1551 = vmatpush1.xpose.msra.mxu0 %v1518
      %1552 = vmatprep.subr.mxu0 0.0
      %1553 = vmatpush2.xpose.msra.mxu0 0.0
      %1554 = vmatprep.subr.mxu0 0.0
      %1555 = vmatpush2.xpose.msra.mxu0 0.0
      %1556 = vmatprep.subr.mxu0 0.0
      %1557 = vmatpush2.xpose.msra.mxu0 0.0
      %1558 = vmatprep.subr.mxu0 0.0
      %1559 = vmatpush2.xpose.msra.mxu0 0.0
      %1560 = vmatprep.subr.mxu0 0.0
      %1561 = vmatpush2.xpose.msra.mxu0 0.0
      %1562 = vmatprep.subr.mxu0 0.0
      %1563 = vmatpush2.xpose.msra.mxu0 0.0
      %1564 = vmatprep.subr.mxu0 0.0
      %1565 = vmatpush2.xpose.msra.mxu0 0.0
      %1566 = vmatprep.subr.mxu0 0.0
      %1567 = vmatpush2.xpose.msra.mxu0 0.0
      %1568 = vmatprep.subr.mxu0 0.0
      %1569 = vmatpush2.xpose.msra.mxu0 0.0
      %1570 = vmatprep.subr.mxu0 0.0
      %1571 = vmatpush2.xpose.msra.mxu0 0.0
      %1572 = vmatprep.subr.mxu0 0.0
      %1573 = vmatpush2.xpose.msra.mxu0 0.0
      %1574 = vmatprep.subr.mxu0 0.0
      %1575 = vmatpush2.xpose.msra.mxu0 0.0
      %1576 = vmatprep.subr.mxu0 0.0
      %1577 = vmatpush2.xpose.msra.mxu0 0.0
      %1578 = vmatprep.subr.mxu0 0.0
      %1579 = vmatpush2.xpose.msra.mxu0 0.0
      %1580 = vmatprep.subr.mxu0 0.0
      %1581 = vmatpush2.xpose.msra.mxu0 0.0
      %1582 = vmatprep.subr.mxu0 0.0
      %1583 = vmatpush2.xpose.msra.mxu0 0.0
      %1584 = vmatprep.mubr.f32.mxu0 0.0
      %1585 = vmatmul.mubr.f32.gmra.mxu0 %v1515
      %v1586 = vpop.f32.mrf.mxu0
      %v1587 = vadd.f32 %v1435, %v1586
      %v1588 = vpop.f32.mrf.mxu0
      %1589 = vdwg.mxu0
      %v1591 = vsel %vm1437, %v958, 0
      %v1594 = vsel %vm1437, %v1166, 0
      %1596 = vmatprep.subr.mxu0 0.0
      %1597 = vmatpush1.xpose.msra.mxu0 0.0
      %1598 = vmatprep.subr.mxu0 0.0
      %1599 = vmatpush1.xpose.msra.mxu0 0.0
      %1600 = vmatprep.subr.mxu0 0.0
      %1601 = vmatpush1.xpose.msra.mxu0 0.0
      %1602 = vmatprep.subr.mxu0 0.0
      %1603 = vmatpush1.xpose.msra.mxu0 0.0
      %1604 = vmatprep.subr.mxu0 0.0
      %1605 = vmatpush1.xpose.msra.mxu0 0.0
      %1606 = vmatprep.subr.mxu0 0.0
      %1607 = vmatpush1.xpose.msra.mxu0 0.0
      %1608 = vmatprep.subr.mxu0 0.0
      %1609 = vmatpush1.xpose.msra.mxu0 0.0
      %1610 = vmatprep.subr.mxu0 0.0
      %1611 = vmatpush1.xpose.msra.mxu0 0.0
      %1612 = vmatprep.subr.mxu0 0.0
      %1613 = vmatpush1.xpose.msra.mxu0 0.0
      %1614 = vmatprep.subr.mxu0 0.0
      %1615 = vmatpush1.xpose.msra.mxu0 0.0
      %1616 = vmatprep.subr.mxu0 0.0
      %1617 = vmatpush1.xpose.msra.mxu0 0.0
      %1618 = vmatprep.subr.mxu0 0.0
      %1619 = vmatpush1.xpose.msra.mxu0 0.0
      %1620 = vmatprep.subr.mxu0 0.0
      %1621 = vmatpush1.xpose.msra.mxu0 0.0
      %1622 = vmatprep.subr.mxu0 0.0
      %1623 = vmatpush1.xpose.msra.mxu0 0.0
      %1624 = vmatprep.subr.mxu0 0.0
      %1625 = vmatpush1.xpose.msra.mxu0 0.0
      %1626 = vmatprep.subr.mxu0 0.0
      %1627 = vmatpush1.xpose.msra.mxu0 %v1594
      %1628 = vmatprep.subr.mxu0 0.0
      %1629 = vmatpush2.xpose.msra.mxu0 0.0
      %1630 = vmatprep.subr.mxu0 0.0
      %1631 = vmatpush2.xpose.msra.mxu0 0.0
      %1632 = vmatprep.subr.mxu0 0.0
      %1633 = vmatpush2.xpose.msra.mxu0 0.0
      %1634 = vmatprep.subr.mxu0 0.0
      %1635 = vmatpush2.xpose.msra.mxu0 0.0
      %1636 = vmatprep.subr.mxu0 0.0
      %1637 = vmatpush2.xpose.msra.mxu0 0.0
      %1638 = vmatprep.subr.mxu0 0.0
      %1639 = vmatpush2.xpose.msra.mxu0 0.0
      %1640 = vmatprep.subr.mxu0 0.0
      %1641 = vmatpush2.xpose.msra.mxu0 0.0
      %1642 = vmatprep.subr.mxu0 0.0
      %1643 = vmatpush2.xpose.msra.mxu0 0.0
      %1644 = vmatprep.subr.mxu0 0.0
      %1645 = vmatpush2.xpose.msra.mxu0 0.0
      %1646 = vmatprep.subr.mxu0 0.0
      %1647 = vmatpush2.xpose.msra.mxu0 0.0
      %1648 = vmatprep.subr.mxu0 0.0
      %1649 = vmatpush2.xpose.msra.mxu0 0.0
      %1650 = vmatprep.subr.mxu0 0.0
      %1651 = vmatpush2.xpose.msra.mxu0 0.0
      %1652 = vmatprep.subr.mxu0 0.0
      %1653 = vmatpush2.xpose.msra.mxu0 0.0
      %1654 = vmatprep.subr.mxu0 0.0
      %1655 = vmatpush2.xpose.msra.mxu0 0.0
      %1656 = vmatprep.subr.mxu0 0.0
      %1657 = vmatpush2.xpose.msra.mxu0 0.0
      %1658 = vmatprep.subr.mxu0 0.0
      %1659 = vmatpush2.xpose.msra.mxu0 0.0
      %1660 = vmatprep.mubr.f32.mxu0 0.0
      %1661 = vmatmul.mubr.f32.gmra.mxu0 %v1591
      %v1662 = vpop.f32.mrf.mxu0
      %v1663 = vadd.f32 %v1435, %v1662
      %v1664 = vpop.f32.mrf.mxu0
      %1665 = vdwg.mxu0
      %v1667 = vsel %vm1437, %v1010, 0
      %v1670 = vsel %vm1437, %v1218, 0
      %1672 = vmatprep.subr.mxu0 0.0
      %1673 = vmatpush1.xpose.msra.mxu0 0.0
      %1674 = vmatprep.subr.mxu0 0.0
      %1675 = vmatpush1.xpose.msra.mxu0 0.0
      %1676 = vmatprep.subr.mxu0 0.0
      %1677 = vmatpush1.xpose.msra.mxu0 0.0
      %1678 = vmatprep.subr.mxu0 0.0
      %1679 = vmatpush1.xpose.msra.mxu0 0.0
      %1680 = vmatprep.subr.mxu0 0.0
      %1681 = vmatpush1.xpose.msra.mxu0 0.0
      %1682 = vmatprep.subr.mxu0 0.0
      %1683 = vmatpush1.xpose.msra.mxu0 0.0
      %1684 = vmatprep.subr.mxu0 0.0
      %1685 = vmatpush1.xpose.msra.mxu0 0.0
      %1686 = vmatprep.subr.mxu0 0.0
      %1687 = vmatpush1.xpose.msra.mxu0 0.0
      %1688 = vmatprep.subr.mxu0 0.0
      %1689 = vmatpush1.xpose.msra.mxu0 0.0
      %1690 = vmatprep.subr.mxu0 0.0
      %1691 = vmatpush1.xpose.msra.mxu0 0.0
      %1692 = vmatprep.subr.mxu0 0.0
      %1693 = vmatpush1.xpose.msra.mxu0 0.0
      %1694 = vmatprep.subr.mxu0 0.0
      %1695 = vmatpush1.xpose.msra.mxu0 0.0
      %1696 = vmatprep.subr.mxu0 0.0
      %1697 = vmatpush1.xpose.msra.mxu0 0.0
      %1698 = vmatprep.subr.mxu0 0.0
      %1699 = vmatpush1.xpose.msra.mxu0 0.0
      %1700 = vmatprep.subr.mxu0 0.0
      %1701 = vmatpush1.xpose.msra.mxu0 0.0
      %1702 = vmatprep.subr.mxu0 0.0
      %1703 = vmatpush1.xpose.msra.mxu0 %v1670
      %1704 = vmatprep.subr.mxu0 0.0
      %1705 = vmatpush2.xpose.msra.mxu0 0.0
      %1706 = vmatprep.subr.mxu0 0.0
      %1707 = vmatpush2.xpose.msra.mxu0 0.0
      %1708 = vmatprep.subr.mxu0 0.0
      %1709 = vmatpush2.xpose.msra.mxu0 0.0
      %1710 = vmatprep.subr.mxu0 0.0
      %1711 = vmatpush2.xpose.msra.mxu0 0.0
      %1712 = vmatprep.subr.mxu0 0.0
      %1713 = vmatpush2.xpose.msra.mxu0 0.0
      %1714 = vmatprep.subr.mxu0 0.0
      %1715 = vmatpush2.xpose.msra.mxu0 0.0
      %1716 = vmatprep.subr.mxu0 0.0
      %1717 = vmatpush2.xpose.msra.mxu0 0.0
      %1718 = vmatprep.subr.mxu0 0.0
      %1719 = vmatpush2.xpose.msra.mxu0 0.0
      %1720 = vmatprep.subr.mxu0 0.0
      %1721 = vmatpush2.xpose.msra.mxu0 0.0
      %1722 = vmatprep.subr.mxu0 0.0
      %1723 = vmatpush2.xpose.msra.mxu0 0.0
      %1724 = vmatprep.subr.mxu0 0.0
      %1725 = vmatpush2.xpose.msra.mxu0 0.0
      %1726 = vmatprep.subr.mxu0 0.0
      %1727 = vmatpush2.xpose.msra.mxu0 0.0
      %1728 = vmatprep.subr.mxu0 0.0
      %1729 = vmatpush2.xpose.msra.mxu0 0.0
      %1730 = vmatprep.subr.mxu0 0.0
      %1731 = vmatpush2.xpose.msra.mxu0 0.0
      %1732 = vmatprep.subr.mxu0 0.0
      %1733 = vmatpush2.xpose.msra.mxu0 0.0
      %1734 = vmatprep.subr.mxu0 0.0
      %1735 = vmatpush2.xpose.msra.mxu0 0.0
      %1736 = vmatprep.mubr.f32.mxu0 0.0
      %1737 = vmatmul.mubr.f32.gmra.mxu0 %v1667
      %v1738 = vpop.f32.mrf.mxu0
      %v1739 = vadd.f32 %v1435, %v1738
      %v1740 = vpop.f32.mrf.mxu0
      %1741 = vdwg.mxu0
      %v1742 = vsel %vm1437, %v1511, -inf
      %1743 = vmax.xlane.f32.xlu0 %v1742
      %v1744 = vpop.xlane.xlu0 %1743
      %v1745 = vsel %vm1437, %v1587, -inf
      %1746 = vmax.xlane.f32.xlu0 %v1745
      %v1747 = vpop.xlane.xlu0 %1746
      %v1748 = vsel %vm1437, %v1663, -inf
      %1749 = vmax.xlane.f32.xlu0 %v1748
      %v1750 = vpop.xlane.xlu0 %1749
      %v1751 = vsel %vm1437, %v1739, -inf
      %1752 = vmax.xlane.f32.xlu0 %v1751
      %v1753 = vpop.xlane.xlu0 %1752
      %v1754 = vsub.f32 %v1511, %v1744
      %v1755 = vsub.f32 %v1587, %v1747
      %v1756 = vsub.f32 %v1663, %v1750
      %v1757 = vsub.f32 %v1739, %v1753
      %v1758 = vmul.f32 %v1754, 1.442695
      %v1759 = vpow.pop %v1758
      %v1760 = vmul.f32 %v1755, 1.442695
      %v1761 = vpow.pop %v1760
      %v1762 = vmul.f32 %v1756, 1.442695
      %v1763 = vpow.pop %v1762
      %v1764 = vmul.f32 %v1757, 1.442695
      %v1765 = vpow.pop %v1764
      %v1766 = vsel %vm1437, %v1759, 0.0
      %1767 = vadd.xlane.f32.xlu0 %v1766
      %v1768 = vpop.xlane.xlu0 %1767
      %v1769 = vsel %vm1437, %v1761, 0.0
      %1770 = vadd.xlane.f32.xlu0 %v1769
      %v1771 = vpop.xlane.xlu0 %1770
      %v1772 = vsel %vm1437, %v1763, 0.0
      %1773 = vadd.xlane.f32.xlu0 %v1772
      %v1774 = vpop.xlane.xlu0 %1773
      %v1775 = vsel %vm1437, %v1765, 0.0
      %1776 = vadd.xlane.f32.xlu0 %v1775
      %v1777 = vpop.xlane.xlu0 %1776
      %v1778 = vrcp.pop %v1768
      %v1779 = vrcp.pop %v1771
      %v1780 = vrcp.pop %v1774
      %v1781 = vrcp.pop %v1777
      %v1782 = vmul.f32 %v1759, %v1778
      %v1783 = vmul.f32 %v1761, %v1779
      %v1784 = vmul.f32 %v1763, %v1780
      %v1785 = vmul.f32 %v1765, %v1781
      %v1787 = vsel %vm1437, %v1782, 0
      %1789 = vmatprep.subr.mxu0 0.0
      %1790 = vmatpush1.msra.mxu0 0.0
      %1791 = vmatprep.subr.mxu0 0.0
      %1792 = vmatpush1.msra.mxu0 0.0
      %1793 = vmatprep.subr.mxu0 0.0
      %1794 = vmatpush1.msra.mxu0 0.0
      %1795 = vmatprep.subr.mxu0 0.0
      %1796 = vmatpush1.msra.mxu0 0.0
      %1797 = vmatprep.subr.mxu0 0.0
      %1798 = vmatpush1.msra.mxu0 0.0
      %1799 = vmatprep.subr.mxu0 0.0
      %1800 = vmatpush1.msra.mxu0 0.0
      %1801 = vmatprep.subr.mxu0 0.0
      %1802 = vmatpush1.msra.mxu0 0.0
      %1803 = vmatprep.subr.mxu0 0.0
      %1804 = vmatpush1.msra.mxu0 0.0
      %1805 = vmatprep.subr.mxu0 0.0
      %1806 = vmatpush1.msra.mxu0 0.0
      %1807 = vmatprep.subr.mxu0 0.0
      %1808 = vmatpush1.msra.mxu0 0.0
      %1809 = vmatprep.subr.mxu0 0.0
      %1810 = vmatpush1.msra.mxu0 0.0
      %1811 = vmatprep.subr.mxu0 0.0
      %1812 = vmatpush1.msra.mxu0 0.0
      %1813 = vmatprep.subr.mxu0 0.0
      %1814 = vmatpush1.msra.mxu0 0.0
      %1815 = vmatprep.subr.mxu0 0.0
      %1816 = vmatpush1.msra.mxu0 0.0
      %1817 = vmatprep.subr.mxu0 0.0
      %1818 = vmatpush1.msra.mxu0 0.0
      %1819 = vmatprep.subr.mxu0 0.0
      %1820 = vmatpush1.msra.mxu0 %v1270
      %1821 = vmatprep.subr.mxu0 0.0
      %1822 = vmatpush2.msra.mxu0 0.0
      %1823 = vmatprep.subr.mxu0 0.0
      %1824 = vmatpush2.msra.mxu0 0.0
      %1825 = vmatprep.subr.mxu0 0.0
      %1826 = vmatpush2.msra.mxu0 0.0
      %1827 = vmatprep.subr.mxu0 0.0
      %1828 = vmatpush2.msra.mxu0 0.0
      %1829 = vmatprep.subr.mxu0 0.0
      %1830 = vmatpush2.msra.mxu0 0.0
      %1831 = vmatprep.subr.mxu0 0.0
      %1832 = vmatpush2.msra.mxu0 0.0
      %1833 = vmatprep.subr.mxu0 0.0
      %1834 = vmatpush2.msra.mxu0 0.0
      %1835 = vmatprep.subr.mxu0 0.0
      %1836 = vmatpush2.msra.mxu0 0.0
      %1837 = vmatprep.subr.mxu0 0.0
      %1838 = vmatpush2.msra.mxu0 0.0
      %1839 = vmatprep.subr.mxu0 0.0
      %1840 = vmatpush2.msra.mxu0 0.0
      %1841 = vmatprep.subr.mxu0 0.0
      %1842 = vmatpush2.msra.mxu0 0.0
      %1843 = vmatprep.subr.mxu0 0.0
      %1844 = vmatpush2.msra.mxu0 0.0
      %1845 = vmatprep.subr.mxu0 0.0
      %1846 = vmatpush2.msra.mxu0 0.0
      %1847 = vmatprep.subr.mxu0 0.0
      %1848 = vmatpush2.msra.mxu0 0.0
      %1849 = vmatprep.subr.mxu0 0.0
      %1850 = vmatpush2.msra.mxu0 0.0
      %1851 = vmatprep.subr.mxu0 0.0
      %1852 = vmatpush2.msra.mxu0 0.0
      %1853 = vmatprep.mubr.f32.mxu0 0.0
      %1854 = vmatmul.mubr.f32.gmra.mxu0 %v1787
      %v1855 = vpop.f32.mrf.mxu0
      %v1856 = vadd.f32 0.0, %v1855
      %v1857 = vpop.f32.mrf.mxu0
      %1858 = vdwg.mxu0
      %v1860 = vsel %vm1437, %v1783, 0
      %1862 = vmatprep.subr.mxu0 0.0
      %1863 = vmatpush1.msra.mxu0 0.0
      %1864 = vmatprep.subr.mxu0 0.0
      %1865 = vmatpush1.msra.mxu0 0.0
      %1866 = vmatprep.subr.mxu0 0.0
      %1867 = vmatpush1.msra.mxu0 0.0
      %1868 = vmatprep.subr.mxu0 0.0
      %1869 = vmatpush1.msra.mxu0 0.0
      %1870 = vmatprep.subr.mxu0 0.0
      %1871 = vmatpush1.msra.mxu0 0.0
      %1872 = vmatprep.subr.mxu0 0.0
      %1873 = vmatpush1.msra.mxu0 0.0
      %1874 = vmatprep.subr.mxu0 0.0
      %1875 = vmatpush1.msra.mxu0 0.0
      %1876 = vmatprep.subr.mxu0 0.0
      %1877 = vmatpush1.msra.mxu0 0.0
      %1878 = vmatprep.subr.mxu0 0.0
      %1879 = vmatpush1.msra.mxu0 0.0
      %1880 = vmatprep.subr.mxu0 0.0
      %1881 = vmatpush1.msra.mxu0 0.0
      %1882 = vmatprep.subr.mxu0 0.0
      %1883 = vmatpush1.msra.mxu0 0.0
      %1884 = vmatprep.subr.mxu0 0.0
      %1885 = vmatpush1.msra.mxu0 0.0
      %1886 = vmatprep.subr.mxu0 0.0
      %1887 = vmatpush1.msra.mxu0 0.0
      %1888 = vmatprep.subr.mxu0 0.0
      %1889 = vmatpush1.msra.mxu0 0.0
      %1890 = vmatprep.subr.mxu0 0.0
      %1891 = vmatpush1.msra.mxu0 0.0
      %1892 = vmatprep.subr.mxu0 0.0
      %1893 = vmatpush1.msra.mxu0 %v1322
      %1894 = vmatprep.subr.mxu0 0.0
      %1895 = vmatpush2.msra.mxu0 0.0
      %1896 = vmatprep.subr.mxu0 0.0
      %1897 = vmatpush2.msra.mxu0 0.0
      %1898 = vmatprep.subr.mxu0 0.0
      %1899 = vmatpush2.msra.mxu0 0.0
      %1900 = vmatprep.subr.mxu0 0.0
      %1901 = vmatpush2.msra.mxu0 0.0
      %1902 = vmatprep.subr.mxu0 0.0
      %1903 = vmatpush2.msra.mxu0 0.0
      %1904 = vmatprep.subr.mxu0 0.0
      %1905 = vmatpush2.msra.mxu0 0.0
      %1906 = vmatprep.subr.mxu0 0.0
      %1907 = vmatpush2.msra.mxu0 0.0
      %1908 = vmatprep.subr.mxu0 0.0
      %1909 = vmatpush2.msra.mxu0 0.0
      %1910 = vmatprep.subr.mxu0 0.0
      %1911 = vmatpush2.msra.mxu0 0.0
      %1912 = vmatprep.subr.mxu0 0.0
      %1913 = vmatpush2.msra.mxu0 0.0
      %1914 = vmatprep.subr.mxu0 0.0
      %1915 = vmatpush2.msra.mxu0 0.0
      %1916 = vmatprep.subr.mxu0 0.0
      %1917 = vmatpush2.msra.mxu0 0.0
      %1918 = vmatprep.subr.mxu0 0.0
      %1919 = vmatpush2.msra.mxu0 0.0
      %1920 = vmatprep.subr.mxu0 0.0
      %1921 = vmatpush2.msra.mxu0 0.0
      %1922 = vmatprep.subr.mxu0 0.0
      %1923 = vmatpush2.msra.mxu0 0.0
      %1924 = vmatprep.subr.mxu0 0.0
      %1925 = vmatpush2.msra.mxu0 0.0
      %1926 = vmatprep.mubr.f32.mxu0 0.0
      %1927 = vmatmul.mubr.f32.gmra.mxu0 %v1860
      %v1928 = vpop.f32.mrf.mxu0
      %v1929 = vadd.f32 0.0, %v1928
      %v1930 = vpop.f32.mrf.mxu0
      %1931 = vdwg.mxu0
      %v1933 = vsel %vm1437, %v1784, 0
      %1935 = vmatprep.subr.mxu0 0.0
      %1936 = vmatpush1.msra.mxu0 0.0
      %1937 = vmatprep.subr.mxu0 0.0
      %1938 = vmatpush1.msra.mxu0 0.0
      %1939 = vmatprep.subr.mxu0 0.0
      %1940 = vmatpush1.msra.mxu0 0.0
      %1941 = vmatprep.subr.mxu0 0.0
      %1942 = vmatpush1.msra.mxu0 0.0
      %1943 = vmatprep.subr.mxu0 0.0
      %1944 = vmatpush1.msra.mxu0 0.0
      %1945 = vmatprep.subr.mxu0 0.0
      %1946 = vmatpush1.msra.mxu0 0.0
      %1947 = vmatprep.subr.mxu0 0.0
      %1948 = vmatpush1.msra.mxu0 0.0
      %1949 = vmatprep.subr.mxu0 0.0
      %1950 = vmatpush1.msra.mxu0 0.0
      %1951 = vmatprep.subr.mxu0 0.0
      %1952 = vmatpush1.msra.mxu0 0.0
      %1953 = vmatprep.subr.mxu0 0.0
      %1954 = vmatpush1.msra.mxu0 0.0
      %1955 = vmatprep.subr.mxu0 0.0
      %1956 = vmatpush1.msra.mxu0 0.0
      %1957 = vmatprep.subr.mxu0 0.0
      %1958 = vmatpush1.msra.mxu0 0.0
      %1959 = vmatprep.subr.mxu0 0.0
      %1960 = vmatpush1.msra.mxu0 0.0
      %1961 = vmatprep.subr.mxu0 0.0
      %1962 = vmatpush1.msra.mxu0 0.0
      %1963 = vmatprep.subr.mxu0 0.0
      %1964 = vmatpush1.msra.mxu0 0.0
      %1965 = vmatprep.subr.mxu0 0.0
      %1966 = vmatpush1.msra.mxu0 %v1374
      %1967 = vmatprep.subr.mxu0 0.0
      %1968 = vmatpush2.msra.mxu0 0.0
      %1969 = vmatprep.subr.mxu0 0.0
      %1970 = vmatpush2.msra.mxu0 0.0
      %1971 = vmatprep.subr.mxu0 0.0
      %1972 = vmatpush2.msra.mxu0 0.0
      %1973 = vmatprep.subr.mxu0 0.0
      %1974 = vmatpush2.msra.mxu0 0.0
      %1975 = vmatprep.subr.mxu0 0.0
      %1976 = vmatpush2.msra.mxu0 0.0
      %1977 = vmatprep.subr.mxu0 0.0
      %1978 = vmatpush2.msra.mxu0 0.0
      %1979 = vmatprep.subr.mxu0 0.0
      %1980 = vmatpush2.msra.mxu0 0.0
      %1981 = vmatprep.subr.mxu0 0.0
      %1982 = vmatpush2.msra.mxu0 0.0
      %1983 = vmatprep.subr.mxu0 0.0
      %1984 = vmatpush2.msra.mxu0 0.0
      %1985 = vmatprep.subr.mxu0 0.0
      %1986 = vmatpush2.msra.mxu0 0.0
      %1987 = vmatprep.subr.mxu0 0.0
      %1988 = vmatpush2.msra.mxu0 0.0
      %1989 = vmatprep.subr.mxu0 0.0
      %1990 = vmatpush2.msra.mxu0 0.0
      %1991 = vmatprep.subr.mxu0 0.0
      %1992 = vmatpush2.msra.mxu0 0.0
      %1993 = vmatprep.subr.mxu0 0.0
      %1994 = vmatpush2.msra.mxu0 0.0
      %1995 = vmatprep.subr.mxu0 0.0
      %1996 = vmatpush2.msra.mxu0 0.0
      %1997 = vmatprep.subr.mxu0 0.0
      %1998 = vmatpush2.msra.mxu0 0.0
      %1999 = vmatprep.mubr.f32.mxu0 0.0
      %2000 = vmatmul.mubr.f32.gmra.mxu0 %v1933
      %v2001 = vpop.f32.mrf.mxu0
      %v2002 = vadd.f32 0.0, %v2001
      %v2003 = vpop.f32.mrf.mxu0
      %2004 = vdwg.mxu0
      %v2006 = vsel %vm1437, %v1785, 0
      %2008 = vmatprep.subr.mxu0 0.0
      %2009 = vmatpush1.msra.mxu0 0.0
      %2010 = vmatprep.subr.mxu0 0.0
      %2011 = vmatpush1.msra.mxu0 0.0
      %2012 = vmatprep.subr.mxu0 0.0
      %2013 = vmatpush1.msra.mxu0 0.0
      %2014 = vmatprep.subr.mxu0 0.0
      %2015 = vmatpush1.msra.mxu0 0.0
      %2016 = vmatprep.subr.mxu0 0.0
      %2017 = vmatpush1.msra.mxu0 0.0
      %2018 = vmatprep.subr.mxu0 0.0
      %2019 = vmatpush1.msra.mxu0 0.0
      %2020 = vmatprep.subr.mxu0 0.0
      %2021 = vmatpush1.msra.mxu0 0.0
      %2022 = vmatprep.subr.mxu0 0.0
      %2023 = vmatpush1.msra.mxu0 0.0
      %2024 = vmatprep.subr.mxu0 0.0
      %2025 = vmatpush1.msra.mxu0 0.0
      %2026 = vmatprep.subr.mxu0 0.0
      %2027 = vmatpush1.msra.mxu0 0.0
      %2028 = vmatprep.subr.mxu0 0.0
      %2029 = vmatpush1.msra.mxu0 0.0
      %2030 = vmatprep.subr.mxu0 0.0
      %2031 = vmatpush1.msra.mxu0 0.0
      %2032 = vmatprep.subr.mxu0 0.0
      %2033 = vmatpush1.msra.mxu0 0.0
      %2034 = vmatprep.subr.mxu0 0.0
      %2035 = vmatpush1.msra.mxu0 0.0
      %2036 = vmatprep.subr.mxu0 0.0
      %2037 = vmatpush1.msra.mxu0 0.0
      %2038 = vmatprep.subr.mxu0 0.0
      %2039 = vmatpush1.msra.mxu0 %v1426
      %2040 = vmatprep.subr.mxu0 0.0
      %2041 = vmatpush2.msra.mxu0 0.0
      %2042 = vmatprep.subr.mxu0 0.0
      %2043 = vmatpush2.msra.mxu0 0.0
      %2044 = vmatprep.subr.mxu0 0.0
      %2045 = vmatpush2.msra.mxu0 0.0
      %2046 = vmatprep.subr.mxu0 0.0
      %2047 = vmatpush2.msra.mxu0 0.0
      %2048 = vmatprep.subr.mxu0 0.0
      %2049 = vmatpush2.msra.mxu0 0.0
      %2050 = vmatprep.subr.mxu0 0.0
      %2051 = vmatpush2.msra.mxu0 0.0
      %2052 = vmatprep.subr.mxu0 0.0
      %2053 = vmatpush2.msra.mxu0 0.0
      %2054 = vmatprep.subr.mxu0 0.0
      %2055 = vmatpush2.msra.mxu0 0.0
      %2056 = vmatprep.subr.mxu0 0.0
      %2057 = vmatpush2.msra.mxu0 0.0
      %2058 = vmatprep.subr.mxu0 0.0
      %2059 = vmatpush2.msra.mxu0 0.0
      %2060 = vmatprep.subr.mxu0 0.0
      %2061 = vmatpush2.msra.mxu0 0.0
      %2062 = vmatprep.subr.mxu0 0.0
      %2063 = vmatpush2.msra.mxu0 0.0
      %2064 = vmatprep.subr.mxu0 0.0
      %2065 = vmatpush2.msra.mxu0 0.0
      %2066 = vmatprep.subr.mxu0 0.0
      %2067 = vmatpush2.msra.mxu0 0.0
      %2068 = vmatprep.subr.mxu0 0.0
      %2069 = vmatpush2.msra.mxu0 0.0
      %2070 = vmatprep.subr.mxu0 0.0
      %2071 = vmatpush2.msra.mxu0 0.0
      %2072 = vmatprep.mubr.f32.mxu0 0.0
      %2073 = vmatmul.mubr.f32.gmra.mxu0 %v2006
      %v2074 = vpop.f32.mrf.mxu0
      %v2075 = vadd.f32 0.0, %v2074
      %v2076 = vpop.f32.mrf.mxu0
      %2077 = vdwg.mxu0
      %v2078 = vpack.c.bf16 %v1856, %v1856
      %v2079 = vpack.c.bf16 %v1929, %v1929
      %v2080 = vpack.c.bf16 %v2002, %v2002
      %v2081 = vpack.c.bf16 %v2075, %v2075
      %v2082 = vld [vmem:[%s6] sm:$0xf]
      %v2083 = vld [vmem:[%s6 + $0x4] sm:$0xf]
      %v2084 = vld [vmem:[%s6 + $0x8] sm:$0xf]
      %v2085 = vld [vmem:[%s6 + $0xc] sm:$0xf]
      %v2087 = vsel %vm1437, %v2078, 0
      %vm2089 = vcmask 1043456
      %v2091 = vsel %vm2089, %v2082, 0
      %2093 = vmatprep.subr.bf16.mxu0 0
      %2094 = vmatpush1.bf16.msra.mxu0 0
      %2095 = vmatprep.subr.bf16.mxu0 0
      %2096 = vmatpush1.bf16.msra.mxu0 0
      %2097 = vmatprep.subr.bf16.mxu0 0
      %2098 = vmatpush1.bf16.msra.mxu0 0
      %2099 = vmatprep.subr.bf16.mxu0 0
      %2100 = vmatpush1.bf16.msra.mxu0 0
      %2101 = vmatprep.subr.bf16.mxu0 0
      %2102 = vmatpush1.bf16.msra.mxu0 0
      %2103 = vmatprep.subr.bf16.mxu0 0
      %2104 = vmatpush1.bf16.msra.mxu0 0
      %2105 = vmatprep.subr.bf16.mxu0 0
      %2106 = vmatpush1.bf16.msra.mxu0 0
      %2107 = vmatprep.subr.bf16.mxu0 0
      %2108 = vmatpush1.bf16.msra.mxu0 %v2091
      %2109 = vmatprep.subr.bf16.mxu0 0
      %2110 = vmatpush2.bf16.msra.mxu0 0
      %2111 = vmatprep.subr.bf16.mxu0 0
      %2112 = vmatpush2.bf16.msra.mxu0 0
      %2113 = vmatprep.subr.bf16.mxu0 0
      %2114 = vmatpush2.bf16.msra.mxu0 0
      %2115 = vmatprep.subr.bf16.mxu0 0
      %2116 = vmatpush2.bf16.msra.mxu0 0
      %2117 = vmatprep.subr.bf16.mxu0 0
      %2118 = vmatpush2.bf16.msra.mxu0 0
      %2119 = vmatprep.subr.bf16.mxu0 0
      %2120 = vmatpush2.bf16.msra.mxu0 0
      %2121 = vmatprep.subr.bf16.mxu0 0
      %2122 = vmatpush2.bf16.msra.mxu0 0
      %2123 = vmatprep.subr.bf16.mxu0 0
      %2124 = vmatpush2.bf16.msra.mxu0 0
      %2125 = vmatprep.mubr.bf16.mxu0 0
      %2126 = vmatmul.mubr.bf16.gmra.mxu0 %v2087
      %v2127 = vpop.f32.mrf.mxu0
      %v2128 = vadd.f32 0.0, %v2127
      %v2129 = vpop.f32.mrf.mxu0
      %v2130 = vpop.f32.mrf.mxu0
      %v2131 = vpop.f32.mrf.mxu0
      %2132 = vdwg.mxu0
      %v2134 = vsel %vm1437, %v2079, 0
      %v2137 = vsel %vm2089, %v2083, 0
      %2139 = vmatprep.subr.bf16.mxu0 0
      %2140 = vmatpush1.bf16.msra.mxu0 0
      %2141 = vmatprep.subr.bf16.mxu0 0
      %2142 = vmatpush1.bf16.msra.mxu0 0
      %2143 = vmatprep.subr.bf16.mxu0 0
      %2144 = vmatpush1.bf16.msra.mxu0 0
      %2145 = vmatprep.subr.bf16.mxu0 0
      %2146 = vmatpush1.bf16.msra.mxu0 0
      %2147 = vmatprep.subr.bf16.mxu0 0
      %2148 = vmatpush1.bf16.msra.mxu0 0
      %2149 = vmatprep.subr.bf16.mxu0 0
      %2150 = vmatpush1.bf16.msra.mxu0 0
      %2151 = vmatprep.subr.bf16.mxu0 0
      %2152 = vmatpush1.bf16.msra.mxu0 0
      %2153 = vmatprep.subr.bf16.mxu0 0
      %2154 = vmatpush1.bf16.msra.mxu0 %v2137
      %2155 = vmatprep.subr.bf16.mxu0 0
      %2156 = vmatpush2.bf16.msra.mxu0 0
      %2157 = vmatprep.subr.bf16.mxu0 0
      %2158 = vmatpush2.bf16.msra.mxu0 0
      %2159 = vmatprep.subr.bf16.mxu0 0
      %2160 = vmatpush2.bf16.msra.mxu0 0
      %2161 = vmatprep.subr.bf16.mxu0 0
      %2162 = vmatpush2.bf16.msra.mxu0 0
      %2163 = vmatprep.subr.bf16.mxu0 0
      %2164 = vmatpush2.bf16.msra.mxu0 0
      %2165 = vmatprep.subr.bf16.mxu0 0
      %2166 = vmatpush2.bf16.msra.mxu0 0
      %2167 = vmatprep.subr.bf16.mxu0 0
      %2168 = vmatpush2.bf16.msra.mxu0 0
      %2169 = vmatprep.subr.bf16.mxu0 0
      %2170 = vmatpush2.bf16.msra.mxu0 0
      %2171 = vmatprep.mubr.bf16.mxu0 0
      %2172 = vmatmul.mubr.bf16.gmra.mxu0 %v2134
      %v2173 = vpop.f32.mrf.mxu0
      %v2174 = vadd.f32 0.0, %v2173
      %v2175 = vpop.f32.mrf.mxu0
      %v2176 = vpop.f32.mrf.mxu0
      %v2177 = vpop.f32.mrf.mxu0
      %2178 = vdwg.mxu0
      %v2180 = vsel %vm1437, %v2080, 0
      %v2183 = vsel %vm2089, %v2084, 0
      %2185 = vmatprep.subr.bf16.mxu0 0
      %2186 = vmatpush1.bf16.msra.mxu0 0
      %2187 = vmatprep.subr.bf16.mxu0 0
      %2188 = vmatpush1.bf16.msra.mxu0 0
      %2189 = vmatprep.subr.bf16.mxu0 0
      %2190 = vmatpush1.bf16.msra.mxu0 0
      %2191 = vmatprep.subr.bf16.mxu0 0
      %2192 = vmatpush1.bf16.msra.mxu0 0
      %2193 = vmatprep.subr.bf16.mxu0 0
      %2194 = vmatpush1.bf16.msra.mxu0 0
      %2195 = vmatprep.subr.bf16.mxu0 0
      %2196 = vmatpush1.bf16.msra.mxu0 0
      %2197 = vmatprep.subr.bf16.mxu0 0
      %2198 = vmatpush1.bf16.msra.mxu0 0
      %2199 = vmatprep.subr.bf16.mxu0 0
      %2200 = vmatpush1.bf16.msra.mxu0 %v2183
      %2201 = vmatprep.subr.bf16.mxu0 0
      %2202 = vmatpush2.bf16.msra.mxu0 0
      %2203 = vmatprep.subr.bf16.mxu0 0
      %2204 = vmatpush2.bf16.msra.mxu0 0
      %2205 = vmatprep.subr.bf16.mxu0 0
      %2206 = vmatpush2.bf16.msra.mxu0 0
      %2207 = vmatprep.subr.bf16.mxu0 0
      %2208 = vmatpush2.bf16.msra.mxu0 0
      %2209 = vmatprep.subr.bf16.mxu0 0
      %2210 = vmatpush2.bf16.msra.mxu0 0
      %2211 = vmatprep.subr.bf16.mxu0 0
      %2212 = vmatpush2.bf16.msra.mxu0 0
      %2213 = vmatprep.subr.bf16.mxu0 0
      %2214 = vmatpush2.bf16.msra.mxu0 0
      %2215 = vmatprep.subr.bf16.mxu0 0
      %2216 = vmatpush2.bf16.msra.mxu0 0
      %2217 = vmatprep.mubr.bf16.mxu0 0
      %2218 = vmatmul.mubr.bf16.gmra.mxu0 %v2180
      %v2219 = vpop.f32.mrf.mxu0
      %v2220 = vadd.f32 0.0, %v2219
      %v2221 = vpop.f32.mrf.mxu0
      %v2222 = vpop.f32.mrf.mxu0
      %v2223 = vpop.f32.mrf.mxu0
      %2224 = vdwg.mxu0
      %v2226 = vsel %vm1437, %v2081, 0
      %v2229 = vsel %vm2089, %v2085, 0
      %2231 = vmatprep.subr.bf16.mxu0 0
      %2232 = vmatpush1.bf16.msra.mxu0 0
      %2233 = vmatprep.subr.bf16.mxu0 0
      %2234 = vmatpush1.bf16.msra.mxu0 0
      %2235 = vmatprep.subr.bf16.mxu0 0
      %2236 = vmatpush1.bf16.msra.mxu0 0
      %2237 = vmatprep.subr.bf16.mxu0 0
      %2238 = vmatpush1.bf16.msra.mxu0 0
      %2239 = vmatprep.subr.bf16.mxu0 0
      %2240 = vmatpush1.bf16.msra.mxu0 0
      %2241 = vmatprep.subr.bf16.mxu0 0
      %2242 = vmatpush1.bf16.msra.mxu0 0
      %2243 = vmatprep.subr.bf16.mxu0 0
      %2244 = vmatpush1.bf16.msra.mxu0 0
      %2245 = vmatprep.subr.bf16.mxu0 0
      %2246 = vmatpush1.bf16.msra.mxu0 %v2229
      %2247 = vmatprep.subr.bf16.mxu0 0
      %2248 = vmatpush2.bf16.msra.mxu0 0
      %2249 = vmatprep.subr.bf16.mxu0 0
      %2250 = vmatpush2.bf16.msra.mxu0 0
      %2251 = vmatprep.subr.bf16.mxu0 0
      %2252 = vmatpush2.bf16.msra.mxu0 0
      %2253 = vmatprep.subr.bf16.mxu0 0
      %2254 = vmatpush2.bf16.msra.mxu0 0
      %2255 = vmatprep.subr.bf16.mxu0 0
      %2256 = vmatpush2.bf16.msra.mxu0 0
      %2257 = vmatprep.subr.bf16.mxu0 0
      %2258 = vmatpush2.bf16.msra.mxu0 0
      %2259 = vmatprep.subr.bf16.mxu0 0
      %2260 = vmatpush2.bf16.msra.mxu0 0
      %2261 = vmatprep.subr.bf16.mxu0 0
      %2262 = vmatpush2.bf16.msra.mxu0 0
      %2263 = vmatprep.mubr.bf16.mxu0 0
      %2264 = vmatmul.mubr.bf16.gmra.mxu0 %v2226
      %v2265 = vpop.f32.mrf.mxu0
      %v2266 = vadd.f32 0.0, %v2265
      %v2267 = vpop.f32.mrf.mxu0
      %v2268 = vpop.f32.mrf.mxu0
      %v2269 = vpop.f32.mrf.mxu0
      %2270 = vdwg.mxu0
      %v2271 = vsel %vm641, %v2128, 0.0
      %v2272 = vsel %vm641, %v2174, 0.0
      %v2273 = vadd.f32 %v2271, %v2272
      %v2274 = vsel %vm641, %v2220, 0.0
      %v2275 = vadd.f32 %v2273, %v2274
      %v2276 = vsel %vm641, %v2266, 0.0
      %v2277 = vadd.f32 %v2275, %v2276
      %v2278 = vld [vmem:[%s7] sm:$0x1]
      %v2280 = vlaneseq
      %v2281 = vshrl.u32 %v2280, 7
      %v2282 = vsub.s32 0, %v2281
      %v2283 = vrot.slane %v2278, %v2282
      %v2285 = vadd.f32 %v2277, %v2283
      %v2286 = vadd.f32 %v669, %v2285
      %v2287 = vld [vmem:[%s8] sm:$0x1]
      %v2288 = vld [vmem:[%s9] sm:$0x1]
      %v2289 = vsel %vm641, %v2286, 0.0
      %2290 = vadd.xlane.f32.xlu0 %v2289
      %v2291 = vpop.xlane.xlu0 %2290
      %v2292 = vmul.f32 %v2291, %v645
      %v2293 = vsub.f32 %v2286, %v2292
      %v2294 = vmul.f32 %v2293, %v2293
      %v2295 = vsel %vm641, %v2294, 0.0
      %2296 = vadd.xlane.f32.xlu0 %v2295
      %v2297 = vpop.xlane.xlu0 %2296
      %v2298 = vmul.f32 %v2297, %v645
      %v2299 = vadd.f32 %v2298, 1e-12
      %v2300 = vrsqrt.pop %v2299
      %v2301 = vmul.f32 %v2293, %v2300
      %v2303 = vlaneseq
      %v2304 = vshrl.u32 %v2303, 7
      %v2305 = vsub.s32 0, %v2304
      %v2306 = vrot.slane %v2287, %v2305
      %v2308 = vmul.f32 %v2301, %v2306
      %v2310 = vlaneseq
      %v2311 = vshrl.u32 %v2310, 7
      %v2312 = vsub.s32 0, %v2311
      %v2313 = vrot.slane %v2288, %v2312
      %v2315 = vadd.f32 %v2308, %v2313
      %v2316 = vld [vmem:[%s10] sm:$0xf]
      %v2317 = vld [vmem:[%s10 + $0x4] sm:$0xf]
      %v2318 = vld [vmem:[%s10 + $0x8] sm:$0xf]
      %v2319 = vld [vmem:[%s10 + $0xc] sm:$0xf]
      %v2320 = vld [vmem:[%s11] sm:$0x1]
      %v2321 = vpack.c.bf16 %v2315, %v2315
      %v2323 = vlaneseq
      %v2324 = vshrl.u32 %v2323, 7
      %v2325 = vsub.s32 0, %v2324
      %v2326 = vrot.slane %v2320, %v2325
      %v2332 = vunpack.c.l.b16 %v2316
      %v2333 = vunpack.c.l.b16 %v2317
      %v2334 = vunpack.c.l.b16 %v2318
      %v2335 = vunpack.c.l.b16 %v2319
      %v2336 = vpack.c.b16 %v2333, %v2332
      %v2337 = vpack.c.b16 %v2335, %v2334
      %v2341 = vsel %vm641, %v2321, 0
      %2343 = vmatprep.subr.bf16.mxu0 0
      %2344 = vmatpush1.bf16.msra.mxu0 0
      %2345 = vmatprep.subr.bf16.mxu0 0
      %2346 = vmatpush1.bf16.msra.mxu0 0
      %2347 = vmatprep.subr.bf16.mxu0 0
      %2348 = vmatpush1.bf16.msra.mxu0 0
      %2349 = vmatprep.subr.bf16.mxu0 0
      %2350 = vmatpush1.bf16.msra.mxu0 0
      %2351 = vmatprep.subr.bf16.mxu0 0
      %2352 = vmatpush1.bf16.msra.mxu0 0
      %2353 = vmatprep.subr.bf16.mxu0 0
      %2354 = vmatpush1.bf16.msra.mxu0 0
      %2355 = vmatprep.subr.bf16.mxu0 0
      %2356 = vmatpush1.bf16.msra.mxu0 %v2337
      %2357 = vmatprep.subr.bf16.mxu0 0
      %2358 = vmatpush1.bf16.msra.mxu0 %v2336
      %2359 = vmatprep.subr.bf16.mxu0 0
      %2360 = vmatpush2.bf16.msra.mxu0 0
      %2361 = vmatprep.subr.bf16.mxu0 0
      %2362 = vmatpush2.bf16.msra.mxu0 0
      %2363 = vmatprep.subr.bf16.mxu0 0
      %2364 = vmatpush2.bf16.msra.mxu0 0
      %2365 = vmatprep.subr.bf16.mxu0 0
      %2366 = vmatpush2.bf16.msra.mxu0 0
      %2367 = vmatprep.subr.bf16.mxu0 0
      %2368 = vmatpush2.bf16.msra.mxu0 0
      %2369 = vmatprep.subr.bf16.mxu0 0
      %2370 = vmatpush2.bf16.msra.mxu0 0
      %2371 = vmatprep.subr.bf16.mxu0 0
      %2372 = vmatpush2.bf16.msra.mxu0 0
      %2373 = vmatprep.subr.bf16.mxu0 0
      %2374 = vmatpush2.bf16.msra.mxu0 0
      %2375 = vmatprep.mubr.bf16.mxu0 0
      %2376 = vmatmul.mubr.bf16.gmra.mxu0 %v2341
      %v2377 = vpop.f32.mrf.mxu0
      %v2378 = vadd.f32 %v2326, %v2377
      %v2379 = vpop.f32.mrf.mxu0
      %v2380 = vpop.f32.mrf.mxu0
      %v2381 = vpop.f32.mrf.mxu0
      %2382 = vdwg.mxu0
      %v2383 = vmul.f32 %v2378, %v2378
      %v2384 = vmul.f32 %v2378, %v2383
      %v2385 = vmul.f32 %v2384, 0.044715
      %v2386 = vadd.f32 %v2378, %v2385
      %v2387 = vmul.f32 %v2386, 0.7978846
      %v2388 = vtanh.pop %v2387
      %v2389 = vadd.f32 %v2388, 1.0
      %v2390 = vmul.f32 %v2389, 0.5
      %v2391 = vmul.f32 %v2378, %v2390
      %v2392 = vld [vmem:[%s12] sm:$0xf]
      %v2393 = vld [vmem:[%s12 + $0x4] sm:$0xf]
      %v2394 = vld [vmem:[%s12 + $0x8] sm:$0xf]
      %v2395 = vld [vmem:[%s12 + $0xc] sm:$0xf]
      %v2396 = vld [vmem:[%s12 + $0x10] sm:$0xf]
      %v2397 = vld [vmem:[%s12 + $0x14] sm:$0xf]
      %v2398 = vld [vmem:[%s12 + $0x18] sm:$0xf]
      %v2399 = vld [vmem:[%s12 + $0x1c] sm:$0xf]
      %v2400 = vld [vmem:[%s13] sm:$0x1]
      %v2401 = vpack.c.bf16 %v2391, %v2391
      %v2403 = vlaneseq
      %v2404 = vshrl.u32 %v2403, 7
      %v2405 = vsub.s32 0, %v2404
      %v2406 = vrot.slane %v2400, %v2405
      %v2416 = vunpack.c.l.b16 %v2392
      %v2417 = vunpack.c.l.b16 %v2393
      %v2418 = vunpack.c.l.b16 %v2394
      %v2419 = vunpack.c.l.b16 %v2395
      %v2420 = vunpack.c.l.b16 %v2396
      %v2421 = vunpack.c.l.b16 %v2397
      %v2422 = vunpack.c.l.b16 %v2398
      %v2423 = vunpack.c.l.b16 %v2399
      %v2424 = vpack.c.b16 %v2417, %v2416
      %v2425 = vpack.c.b16 %v2419, %v2418
      %v2426 = vpack.c.b16 %v2421, %v2420
      %v2427 = vpack.c.b16 %v2423, %v2422
      %vm2432 = vcmask 523264
      %v2434 = vsel %vm2432, %v2401, 0
      %2436 = vmatprep.subr.bf16.mxu0 0
      %2437 = vmatpush1.bf16.msra.mxu0 0
      %2438 = vmatprep.subr.bf16.mxu0 0
      %2439 = vmatpush1.bf16.msra.mxu0 0
      %2440 = vmatprep.subr.bf16.mxu0 0
      %2441 = vmatpush1.bf16.msra.mxu0 0
      %2442 = vmatprep.subr.bf16.mxu0 0
      %2443 = vmatpush1.bf16.msra.mxu0 0
      %2444 = vmatprep.subr.bf16.mxu0 0
      %2445 = vmatpush1.bf16.msra.mxu0 %v2427
      %2446 = vmatprep.subr.bf16.mxu0 0
      %2447 = vmatpush1.bf16.msra.mxu0 %v2426
      %2448 = vmatprep.subr.bf16.mxu0 0
      %2449 = vmatpush1.bf16.msra.mxu0 %v2425
      %2450 = vmatprep.subr.bf16.mxu0 0
      %2451 = vmatpush1.bf16.msra.mxu0 %v2424
      %2452 = vmatprep.subr.bf16.mxu0 0
      %2453 = vmatpush2.bf16.msra.mxu0 0
      %2454 = vmatprep.subr.bf16.mxu0 0
      %2455 = vmatpush2.bf16.msra.mxu0 0
      %2456 = vmatprep.subr.bf16.mxu0 0
      %2457 = vmatpush2.bf16.msra.mxu0 0
      %2458 = vmatprep.subr.bf16.mxu0 0
      %2459 = vmatpush2.bf16.msra.mxu0 0
      %2460 = vmatprep.subr.bf16.mxu0 0
      %2461 = vmatpush2.bf16.msra.mxu0 0
      %2462 = vmatprep.subr.bf16.mxu0 0
      %2463 = vmatpush2.bf16.msra.mxu0 0
      %2464 = vmatprep.subr.bf16.mxu0 0
      %2465 = vmatpush2.bf16.msra.mxu0 0
      %2466 = vmatprep.subr.bf16.mxu0 0
      %2467 = vmatpush2.bf16.msra.mxu0 0
      %2468 = vmatprep.mubr.bf16.mxu0 0
      %2469 = vmatmul.mubr.bf16.gmra.mxu0 %v2434
      %v2470 = vpop.f32.mrf.mxu0
      %v2471 = vadd.f32 %v2406, %v2470
      %v2472 = vpop.f32.mrf.mxu0
      %v2473 = vpop.f32.mrf.mxu0
      %v2474 = vpop.f32.mrf.mxu0
      %2475 = vdwg.mxu0
      %v2476 = vadd.f32 %v2315, %v2471
      %v2477 = vld [vmem:[%s14] sm:$0x1]
      %v2478 = vld [vmem:[%s15] sm:$0x1]
      %v2479 = vsel %vm641, %v2476, 0.0
      %2480 = vadd.xlane.f32.xlu0 %v2479
      %v2481 = vpop.xlane.xlu0 %2480
      %v2482 = vmul.f32 %v2481, %v645
      %v2483 = vsub.f32 %v2476, %v2482
      %v2484 = vmul.f32 %v2483, %v2483
      %v2485 = vsel %vm641, %v2484, 0.0
      %2486 = vadd.xlane.f32.xlu0 %v2485
      %v2487 = vpop.xlane.xlu0 %2486
      %v2488 = vmul.f32 %v2487, %v645
      %v2489 = vadd.f32 %v2488, 1e-12
      %v2490 = vrsqrt.pop %v2489
      %v2491 = vmul.f32 %v2483, %v2490
      %v2493 = vlaneseq
      %v2494 = vshrl.u32 %v2493, 7
      %v2495 = vsub.s32 0, %v2494
      %v2496 = vrot.slane %v2477, %v2495
      %v2498 = vmul.f32 %v2491, %v2496
      %v2500 = vlaneseq
      %v2501 = vshrl.u32 %v2500, 7
      %v2502 = vsub.s32 0, %v2501
      %v2503 = vrot.slane %v2478, %v2502
      %v2505 = vadd.f32 %v2498, %v2503
      %v2506 = vpack.c.bf16 %v2505, %v2505
      %s2507 = scalar_lea.vmem %s4, 192
      %v2508 = vld [vmem:[%s2507] sm:$0xf]
      %v2509 = vld [vmem:[%s2507 + $0x4] sm:$0xf]
      %v2510 = vld [vmem:[%s2507 + $0x8] sm:$0xf]
      %v2511 = vld [vmem:[%s2507 + $0xc] sm:$0xf]
      %v2512 = vld [vmem:[%s2507 + $0x10] sm:$0xf]
      %v2513 = vld [vmem:[%s2507 + $0x14] sm:$0xf]
      %v2514 = vld [vmem:[%s2507 + $0x18] sm:$0xf]
      %v2515 = vld [vmem:[%s2507 + $0x1c] sm:$0xf]
      %v2516 = vld [vmem:[%s2507 + $0x20] sm:$0xf]
      %v2517 = vld [vmem:[%s2507 + $0x24] sm:$0xf]
      %v2518 = vld [vmem:[%s2507 + $0x28] sm:$0xf]
      %v2519 = vld [vmem:[%s2507 + $0x2c] sm:$0xf]
      %v2520 = vld [vmem:[%s2507 + $0x30] sm:$0xf]
      %v2521 = vld [vmem:[%s2507 + $0x34] sm:$0xf]
      %v2522 = vld [vmem:[%s2507 + $0x38] sm:$0xf]
      %v2523 = vld [vmem:[%s2507 + $0x3c] sm:$0xf]
      %v2524 = vld [vmem:[%s2507 + $0x40] sm:$0xf]
      %v2525 = vld [vmem:[%s2507 + $0x44] sm:$0xf]
      %v2526 = vld [vmem:[%s2507 + $0x48] sm:$0xf]
      %v2527 = vld [vmem:[%s2507 + $0x4c] sm:$0xf]
      %v2528 = vld [vmem:[%s2507 + $0x50] sm:$0xf]
      %v2529 = vld [vmem:[%s2507 + $0x54] sm:$0xf]
      %v2530 = vld [vmem:[%s2507 + $0x58] sm:$0xf]
      %v2531 = vld [vmem:[%s2507 + $0x5c] sm:$0xf]
      %v2532 = vld [vmem:[%s2507 + $0x60] sm:$0xf]
      %v2533 = vld [vmem:[%s2507 + $0x64] sm:$0xf]
      %v2534 = vld [vmem:[%s2507 + $0x68] sm:$0xf]
      %v2535 = vld [vmem:[%s2507 + $0x6c] sm:$0xf]
      %v2536 = vld [vmem:[%s2507 + $0x70] sm:$0xf]
      %v2537 = vld [vmem:[%s2507 + $0x74] sm:$0xf]
      %v2538 = vld [vmem:[%s2507 + $0x78] sm:$0xf]
      %v2539 = vld [vmem:[%s2507 + $0x7c] sm:$0xf]
      %v2540 = vld [vmem:[%s2507 + $0x80] sm:$0xf]
      %v2541 = vld [vmem:[%s2507 + $0x84] sm:$0xf]
      %v2542 = vld [vmem:[%s2507 + $0x88] sm:$0xf]
      %v2543 = vld [vmem:[%s2507 + $0x8c] sm:$0xf]
      %v2544 = vld [vmem:[%s2507 + $0x90] sm:$0xf]
      %v2545 = vld [vmem:[%s2507 + $0x94] sm:$0xf]
      %v2546 = vld [vmem:[%s2507 + $0x98] sm:$0xf]
      %v2547 = vld [vmem:[%s2507 + $0x9c] sm:$0xf]
      %v2548 = vld [vmem:[%s2507 + $0xa0] sm:$0xf]
      %v2549 = vld [vmem:[%s2507 + $0xa4] sm:$0xf]
      %v2550 = vld [vmem:[%s2507 + $0xa8] sm:$0xf]
      %v2551 = vld [vmem:[%s2507 + $0xac] sm:$0xf]
      %v2552 = vld [vmem:[%s2507 + $0xb0] sm:$0xf]
      %v2553 = vld [vmem:[%s2507 + $0xb4] sm:$0xf]
      %v2554 = vld [vmem:[%s2507 + $0xb8] sm:$0xf]
      %v2555 = vld [vmem:[%s2507 + $0xbc] sm:$0xf]
      %s2556 = scalar_lea.vmem %s5, 12
      %v2557 = vld [vmem:[%s2556] sm:$0x1]
      %v2558 = vld [vmem:[%s2556 + $0x1] sm:$0x1]
      %v2559 = vld [vmem:[%s2556 + $0x2] sm:$0x1]
      %v2560 = vld [vmem:[%s2556 + $0x3] sm:$0x1]
      %v2561 = vld [vmem:[%s2556 + $0x4] sm:$0x1]
      %v2562 = vld [vmem:[%s2556 + $0x5] sm:$0x1]
      %v2563 = vld [vmem:[%s2556 + $0x6] sm:$0x1]
      %v2564 = vld [vmem:[%s2556 + $0x7] sm:$0x1]
      %v2565 = vld [vmem:[%s2556 + $0x8] sm:$0x1]
      %v2566 = vld [vmem:[%s2556 + $0x9] sm:$0x1]
      %v2567 = vld [vmem:[%s2556 + $0xa] sm:$0x1]
      %v2568 = vld [vmem:[%s2556 + $0xb] sm:$0x1]
      %v2581 = vlaneseq
      %v2582 = vshrl.u32 %v2581, 7
      %v2583 = vsub.s32 0, %v2582
      %v2584 = vrot.slane %v2557, %v2583
      %v2585 = vlaneseq
      %v2586 = vshrl.u32 %v2585, 7
      %v2587 = vsub.s32 0, %v2586
      %v2588 = vrot.slane %v2558, %v2587
      %v2589 = vlaneseq
      %v2590 = vshrl.u32 %v2589, 7
      %v2591 = vsub.s32 0, %v2590
      %v2592 = vrot.slane %v2559, %v2591
      %v2593 = vlaneseq
      %v2594 = vshrl.u32 %v2593, 7
      %v2595 = vsub.s32 0, %v2594
      %v2596 = vrot.slane %v2560, %v2595
      %v2597 = vlaneseq
      %v2598 = vshrl.u32 %v2597, 7
      %v2599 = vsub.s32 0, %v2598
      %v2600 = vrot.slane %v2561, %v2599
      %v2601 = vlaneseq
      %v2602 = vshrl.u32 %v2601, 7
      %v2603 = vsub.s32 0, %v2602
      %v2604 = vrot.slane %v2562, %v2603
      %v2605 = vlaneseq
      %v2606 = vshrl.u32 %v2605, 7
      %v2607 = vsub.s32 0, %v2606
      %v2608 = vrot.slane %v2563, %v2607
      %v2609 = vlaneseq
      %v2610 = vshrl.u32 %v2609, 7
      %v2611 = vsub.s32 0, %v2610
      %v2612 = vrot.slane %v2564, %v2611
      %v2613 = vlaneseq
      %v2614 = vshrl.u32 %v2613, 7
      %v2615 = vsub.s32 0, %v2614
      %v2616 = vrot.slane %v2565, %v2615
      %v2617 = vlaneseq
      %v2618 = vshrl.u32 %v2617, 7
      %v2619 = vsub.s32 0, %v2618
      %v2620 = vrot.slane %v2566, %v2619
      %v2621 = vlaneseq
      %v2622 = vshrl.u32 %v2621, 7
      %v2623 = vsub.s32 0, %v2622
      %v2624 = vrot.slane %v2567, %v2623
      %v2625 = vlaneseq
      %v2626 = vshrl.u32 %v2625, 7
      %v2627 = vsub.s32 0, %v2626
      %v2628 = vrot.slane %v2568, %v2627
      %v2645 = vunpack.c.l.b16 %v2508
      %v2646 = vunpack.c.l.b16 %v2509
      %v2647 = vunpack.c.l.b16 %v2510
      %v2648 = vunpack.c.l.b16 %v2511
      %v2649 = vpack.c.b16 %v2646, %v2645
      %v2650 = vpack.c.b16 %v2648, %v2647
      %v2654 = vsel %vm641, %v2506, 0
      %2656 = vmatprep.subr.bf16.mxu0 0
      %2657 = vmatpush1.bf16.msra.mxu0 0
      %2658 = vmatprep.subr.bf16.mxu0 0
      %2659 = vmatpush1.bf16.msra.mxu0 0
      %2660 = vmatprep.subr.bf16.mxu0 0
      %2661 = vmatpush1.bf16.msra.mxu0 0
      %2662 = vmatprep.subr.bf16.mxu0 0
      %2663 = vmatpush1.bf16.msra.mxu0 0
      %2664 = vmatprep.subr.bf16.mxu0 0
      %2665 = vmatpush1.bf16.msra.mxu0 0
      %2666 = vmatprep.subr.bf16.mxu0 0
      %2667 = vmatpush1.bf16.msra.mxu0 0
      %2668 = vmatprep.subr.bf16.mxu0 0
      %2669 = vmatpush1.bf16.msra.mxu0 %v2650
      %2670 = vmatprep.subr.bf16.mxu0 0
      %2671 = vmatpush1.bf16.msra.mxu0 %v2649
      %2672 = vmatprep.subr.bf16.mxu0 0
      %2673 = vmatpush2.bf16.msra.mxu0 0
      %2674 = vmatprep.subr.bf16.mxu0 0
      %2675 = vmatpush2.bf16.msra.mxu0 0
      %2676 = vmatprep.subr.bf16.mxu0 0
      %2677 = vmatpush2.bf16.msra.mxu0 0
      %2678 = vmatprep.subr.bf16.mxu0 0
      %2679 = vmatpush2.bf16.msra.mxu0 0
      %2680 = vmatprep.subr.bf16.mxu0 0
      %2681 = vmatpush2.bf16.msra.mxu0 0
      %2682 = vmatprep.subr.bf16.mxu0 0
      %2683 = vmatpush2.bf16.msra.mxu0 0
      %2684 = vmatprep.subr.bf16.mxu0 0
      %2685 = vmatpush2.bf16.msra.mxu0 0
      %2686 = vmatprep.subr.bf16.mxu0 0
      %2687 = vmatpush2.bf16.msra.mxu0 0
      %2688 = vmatprep.mubr.bf16.mxu0 0
      %2689 = vmatmul.mubr.bf16.gmra.mxu0 %v2654
      %v2690 = vpop.f32.mrf.mxu0
      %v2691 = vadd.f32 %v2584, %v2690
      %v2692 = vpop.f32.mrf.mxu0
      %v2693 = vpop.f32.mrf.mxu0
      %v2694 = vpop.f32.mrf.mxu0
      %2695 = vdwg.mxu0
      %v2700 = vunpack.c.l.b16 %v2512
      %v2701 = vunpack.c.l.b16 %v2513
      %v2702 = vunpack.c.l.b16 %v2514
      %v2703 = vunpack.c.l.b16 %v2515
      %v2704 = vpack.c.b16 %v2701, %v2700
      %v2705 = vpack.c.b16 %v2703, %v2702
      %2708 = vmatprep.subr.bf16.mxu0 0
      %2709 = vmatpush1.bf16.msra.mxu0 0
      %2710 = vmatprep.subr.bf16.mxu0 0
      %2711 = vmatpush1.bf16.msra.mxu0 0
      %2712 = vmatprep.subr.bf16.mxu0 0
      %2713 = vmatpush1.bf16.msra.mxu0 0
      %2714 = vmatprep.subr.bf16.mxu0 0
      %2715 = vmatpush1.bf16.msra.mxu0 0
      %2716 = vmatprep.subr.bf16.mxu0 0
      %2717 = vmatpush1.bf16.msra.mxu0 0
      %2718 = vmatprep.subr.bf16.mxu0 0
      %2719 = vmatpush1.bf16.msra.mxu0 0
      %2720 = vmatprep.subr.bf16.mxu0 0
      %2721 = vmatpush1.bf16.msra.mxu0 %v2705
      %2722 = vmatprep.subr.bf16.mxu0 0
      %2723 = vmatpush1.bf16.msra.mxu0 %v2704
      %2724 = vmatprep.subr.bf16.mxu0 0
      %2725 = vmatpush2.bf16.msra.mxu0 0
      %2726 = vmatprep.subr.bf16.mxu0 0
      %2727 = vmatpush2.bf16.msra.mxu0 0
      %2728 = vmatprep.subr.bf16.mxu0 0
      %2729 = vmatpush2.bf16.msra.mxu0 0
      %2730 = vmatprep.subr.bf16.mxu0 0
      %2731 = vmatpush2.bf16.msra.mxu0 0
      %2732 = vmatprep.subr.bf16.mxu0 0
      %2733 = vmatpush2.bf16.msra.mxu0 0
      %2734 = vmatprep.subr.bf16.mxu0 0
      %2735 = vmatpush2.bf16.msra.mxu0 0
      %2736 = vmatprep.subr.bf16.mxu0 0
      %2737 = vmatpush2.bf16.msra.mxu0 0
      %2738 = vmatprep.subr.bf16.mxu0 0
      %2739 = vmatpush2.bf16.msra.mxu0 0
      %2740 = vmatprep.mubr.bf16.mxu0 0
      %2741 = vmatmul.mubr.bf16.gmra.mxu0 %v2654
      %v2742 = vpop.f32.mrf.mxu0
      %v2743 = vadd.f32 %v2588, %v2742
      %v2744 = vpop.f32.mrf.mxu0
      %v2745 = vpop.f32.mrf.mxu0
      %v2746 = vpop.f32.mrf.mxu0
      %2747 = vdwg.mxu0
      %v2752 = vunpack.c.l.b16 %v2516
      %v2753 = vunpack.c.l.b16 %v2517
      %v2754 = vunpack.c.l.b16 %v2518
      %v2755 = vunpack.c.l.b16 %v2519
      %v2756 = vpack.c.b16 %v2753, %v2752
      %v2757 = vpack.c.b16 %v2755, %v2754
      %2760 = vmatprep.subr.bf16.mxu0 0
      %2761 = vmatpush1.bf16.msra.mxu0 0
      %2762 = vmatprep.subr.bf16.mxu0 0
      %2763 = vmatpush1.bf16.msra.mxu0 0
      %2764 = vmatprep.subr.bf16.mxu0 0
      %2765 = vmatpush1.bf16.msra.mxu0 0
      %2766 = vmatprep.subr.bf16.mxu0 0
      %2767 = vmatpush1.bf16.msra.mxu0 0
      %2768 = vmatprep.subr.bf16.mxu0 0
      %2769 = vmatpush1.bf16.msra.mxu0 0
      %2770 = vmatprep.subr.bf16.mxu0 0
      %2771 = vmatpush1.bf16.msra.mxu0 0
      %2772 = vmatprep.subr.bf16.mxu0 0
      %2773 = vmatpush1.bf16.msra.mxu0 %v2757
      %2774 = vmatprep.subr.bf16.mxu0 0
      %2775 = vmatpush1.bf16.msra.mxu0 %v2756
      %2776 = vmatprep.subr.bf16.mxu0 0
      %2777 = vmatpush2.bf16.msra.mxu0 0
      %2778 = vmatprep.subr.bf16.mxu0 0
      %2779 = vmatpush2.bf16.msra.mxu0 0
      %2780 = vmatprep.subr.bf16.mxu0 0
      %2781 = vmatpush2.bf16.msra.mxu0 0
      %2782 = vmatprep.subr.bf16.mxu0 0
      %2783 = vmatpush2.bf16.msra.mxu0 0
      %2784 = vmatprep.subr.bf16.mxu0 0
      %2785 = vmatpush2.bf16.msra.mxu0 0
      %2786 = vmatprep.subr.bf16.mxu0 0
      %2787 = vmatpush2.bf16.msra.mxu0 0
      %2788 = vmatprep.subr.bf16.mxu0 0
      %2789 = vmatpush2.bf16.msra.mxu0 0
      %2790 = vmatprep.subr.bf16.mxu0 0
      %2791 = vmatpush2.bf16.msra.mxu0 0
      %2792 = vmatprep.mubr.bf16.mxu0 0
      %2793 = vmatmul.mubr.bf16.gmra.mxu0 %v2654
      %v2794 = vpop.f32.mrf.mxu0
      %v2795 = vadd.f32 %v2592, %v2794
      %v2796 = vpop.f32.mrf.mxu0
      %v2797 = vpop.f32.mrf.mxu0
      %v2798 = vpop.f32.mrf.mxu0
      %2799 = vdwg.mxu0
      %v2804 = vunpack.c.l.b16 %v2520
      %v2805 = vunpack.c.l.b16 %v2521
      %v2806 = vunpack.c.l.b16 %v2522
      %v2807 = vunpack.c.l.b16 %v2523
      %v2808 = vpack.c.b16 %v2805, %v2804
      %v2809 = vpack.c.b16 %v2807, %v2806
      %2812 = vmatprep.subr.bf16.mxu0 0
      %2813 = vmatpush1.bf16.msra.mxu0 0
      %2814 = vmatprep.subr.bf16.mxu0 0
      %2815 = vmatpush1.bf16.msra.mxu0 0
      %2816 = vmatprep.subr.bf16.mxu0 0
      %2817 = vmatpush1.bf16.msra.mxu0 0
      %2818 = vmatprep.subr.bf16.mxu0 0
      %2819 = vmatpush1.bf16.msra.mxu0 0
      %2820 = vmatprep.subr.bf16.mxu0 0
      %2821 = vmatpush1.bf16.msra.mxu0 0
      %2822 = vmatprep.subr.bf16.mxu0 0
      %2823 = vmatpush1.bf16.msra.mxu0 0
      %2824 = vmatprep.subr.bf16.mxu0 0
      %2825 = vmatpush1.bf16.msra.mxu0 %v2809
      %2826 = vmatprep.subr.bf16.mxu0 0
      %2827 = vmatpush1.bf16.msra.mxu0 %v2808
      %2828 = vmatprep.subr.bf16.mxu0 0
      %2829 = vmatpush2.bf16.msra.mxu0 0
      %2830 = vmatprep.subr.bf16.mxu0 0
      %2831 = vmatpush2.bf16.msra.mxu0 0
      %2832 = vmatprep.subr.bf16.mxu0 0
      %2833 = vmatpush2.bf16.msra.mxu0 0
      %2834 = vmatprep.subr.bf16.mxu0 0
      %2835 = vmatpush2.bf16.msra.mxu0 0
      %2836 = vmatprep.subr.bf16.mxu0 0
      %2837 = vmatpush2.bf16.msra.mxu0 0
      %2838 = vmatprep.subr.bf16.mxu0 0
      %2839 = vmatpush2.bf16.msra.mxu0 0
      %2840 = vmatprep.subr.bf16.mxu0 0
      %2841 = vmatpush2.bf16.msra.mxu0 0
      %2842 = vmatprep.subr.bf16.mxu0 0
      %2843 = vmatpush2.bf16.msra.mxu0 0
      %2844 = vmatprep.mubr.bf16.mxu0 0
      %2845 = vmatmul.mubr.bf16.gmra.mxu0 %v2654
      %v2846 = vpop.f32.mrf.mxu0
      %v2847 = vadd.f32 %v2596, %v2846
      %v2848 = vpop.f32.mrf.mxu0
      %v2849 = vpop.f32.mrf.mxu0
      %v2850 = vpop.f32.mrf.mxu0
      %2851 = vdwg.mxu0
      %v2856 = vunpack.c.l.b16 %v2524
      %v2857 = vunpack.c.l.b16 %v2525
      %v2858 = vunpack.c.l.b16 %v2526
      %v2859 = vunpack.c.l.b16 %v2527
      %v2860 = vpack.c.b16 %v2857, %v2856
      %v2861 = vpack.c.b16 %v2859, %v2858
      %2864 = vmatprep.subr.bf16.mxu0 0
      %2865 = vmatpush1.bf16.msra.mxu0 0
      %2866 = vmatprep.subr.bf16.mxu0 0
      %2867 = vmatpush1.bf16.msra.mxu0 0
      %2868 = vmatprep.subr.bf16.mxu0 0
      %2869 = vmatpush1.bf16.msra.mxu0 0
      %2870 = vmatprep.subr.bf16.mxu0 0
      %2871 = vmatpush1.bf16.msra.mxu0 0
      %2872 = vmatprep.subr.bf16.mxu0 0
      %2873 = vmatpush1.bf16.msra.mxu0 0
      %2874 = vmatprep.subr.bf16.mxu0 0
      %2875 = vmatpush1.bf16.msra.mxu0 0
      %2876 = vmatprep.subr.bf16.mxu0 0
      %2877 = vmatpush1.bf16.msra.mxu0 %v2861
      %2878 = vmatprep.subr.bf16.mxu0 0
      %2879 = vmatpush1.bf16.msra.mxu0 %v2860
      %2880 = vmatprep.subr.bf16.mxu0 0
      %2881 = vmatpush2.bf16.msra.mxu0 0
      %2882 = vmatprep.subr.bf16.mxu0 0
      %2883 = vmatpush2.bf16.msra.mxu0 0
      %2884 = vmatprep.subr.bf16.mxu0 0
      %2885 = vmatpush2.bf16.msra.mxu0 0
      %2886 = vmatprep.subr.bf16.mxu0 0
      %2887 = vmatpush2.bf16.msra.mxu0 0
      %2888 = vmatprep.subr.bf16.mxu0 0
      %2889 = vmatpush2.bf16.msra.mxu0 0
      %2890 = vmatprep.subr.bf16.mxu0 0
      %2891 = vmatpush2.bf16.msra.mxu0 0
      %2892 = vmatprep.subr.bf16.mxu0 0
      %2893 = vmatpush2.bf16.msra.mxu0 0
      %2894 = vmatprep.subr.bf16.mxu0 0
      %2895 = vmatpush2.bf16.msra.mxu0 0
      %2896 = vmatprep.mubr.bf16.mxu0 0
      %2897 = vmatmul.mubr.bf16.gmra.mxu0 %v2654
      %v2898 = vpop.f32.mrf.mxu0
      %v2899 = vadd.f32 %v2600, %v2898
      %v2900 = vpop.f32.mrf.mxu0
      %v2901 = vpop.f32.mrf.mxu0
      %v2902 = vpop.f32.mrf.mxu0
      %2903 = vdwg.mxu0
      %v2908 = vunpack.c.l.b16 %v2528
      %v2909 = vunpack.c.l.b16 %v2529
      %v2910 = vunpack.c.l.b16 %v2530
      %v2911 = vunpack.c.l.b16 %v2531
      %v2912 = vpack.c.b16 %v2909, %v2908
      %v2913 = vpack.c.b16 %v2911, %v2910
      %2916 = vmatprep.subr.bf16.mxu0 0
      %2917 = vmatpush1.bf16.msra.mxu0 0
      %2918 = vmatprep.subr.bf16.mxu0 0
      %2919 = vmatpush1.bf16.msra.mxu0 0
      %2920 = vmatprep.subr.bf16.mxu0 0
      %2921 = vmatpush1.bf16.msra.mxu0 0
      %2922 = vmatprep.subr.bf16.mxu0 0
      %2923 = vmatpush1.bf16.msra.mxu0 0
      %2924 = vmatprep.subr.bf16.mxu0 0
      %2925 = vmatpush1.bf16.msra.mxu0 0
      %2926 = vmatprep.subr.bf16.mxu0 0
      %2927 = vmatpush1.bf16.msra.mxu0 0
      %2928 = vmatprep.subr.bf16.mxu0 0
      %2929 = vmatpush1.bf16.msra.mxu0 %v2913
      %2930 = vmatprep.subr.bf16.mxu0 0
      %2931 = vmatpush1.bf16.msra.mxu0 %v2912
      %2932 = vmatprep.subr.bf16.mxu0 0
      %2933 = vmatpush2.bf16.msra.mxu0 0
      %2934 = vmatprep.subr.bf16.mxu0 0
      %2935 = vmatpush2.bf16.msra.mxu0 0
      %2936 = vmatprep.subr.bf16.mxu0 0
      %2937 = vmatpush2.bf16.msra.mxu0 0
      %2938 = vmatprep.subr.bf16.mxu0 0
      %2939 = vmatpush2.bf16.msra.mxu0 0
      %2940 = vmatprep.subr.bf16.mxu0 0
      %2941 = vmatpush2.bf16.msra.mxu0 0
      %2942 = vmatprep.subr.bf16.mxu0 0
      %2943 = vmatpush2.bf16.msra.mxu0 0
      %2944 = vmatprep.subr.bf16.mxu0 0
      %2945 = vmatpush2.bf16.msra.mxu0 0
      %2946 = vmatprep.subr.bf16.mxu0 0
      %2947 = vmatpush2.bf16.msra.mxu0 0
      %2948 = vmatprep.mubr.bf16.mxu0 0
      %2949 = vmatmul.mubr.bf16.gmra.mxu0 %v2654
      %v2950 = vpop.f32.mrf.mxu0
      %v2951 = vadd.f32 %v2604, %v2950
      %v2952 = vpop.f32.mrf.mxu0
      %v2953 = vpop.f32.mrf.mxu0
      %v2954 = vpop.f32.mrf.mxu0
      %2955 = vdwg.mxu0
      %v2960 = vunpack.c.l.b16 %v2532
      %v2961 = vunpack.c.l.b16 %v2533
      %v2962 = vunpack.c.l.b16 %v2534
      %v2963 = vunpack.c.l.b16 %v2535
      %v2964 = vpack.c.b16 %v2961, %v2960
      %v2965 = vpack.c.b16 %v2963, %v2962
      %2968 = vmatprep.subr.bf16.mxu0 0
      %2969 = vmatpush1.bf16.msra.mxu0 0
      %2970 = vmatprep.subr.bf16.mxu0 0
      %2971 = vmatpush1.bf16.msra.mxu0 0
      %2972 = vmatprep.subr.bf16.mxu0 0
      %2973 = vmatpush1.bf16.msra.mxu0 0
      %2974 = vmatprep.subr.bf16.mxu0 0
      %2975 = vmatpush1.bf16.msra.mxu0 0
      %2976 = vmatprep.subr.bf16.mxu0 0
      %2977 = vmatpush1.bf16.msra.mxu0 0
      %2978 = vmatprep.subr.bf16.mxu0 0
      %2979 = vmatpush1.bf16.msra.mxu0 0
      %2980 = vmatprep.subr.bf16.mxu0 0
      %2981 = vmatpush1.bf16.msra.mxu0 %v2965
      %2982 = vmatprep.subr.bf16.mxu0 0
      %2983 = vmatpush1.bf16.msra.mxu0 %v2964
      %2984 = vmatprep.subr.bf16.mxu0 0
      %2985 = vmatpush2.bf16.msra.mxu0 0
      %2986 = vmatprep.subr.bf16.mxu0 0
      %2987 = vmatpush2.bf16.msra.mxu0 0
      %2988 = vmatprep.subr.bf16.mxu0 0
      %2989 = vmatpush2.bf16.msra.mxu0 0
      %2990 = vmatprep.subr.bf16.mxu0 0
      %2991 = vmatpush2.bf16.msra.mxu0 0
      %2992 = vmatprep.subr.bf16.mxu0 0
      %2993 = vmatpush2.bf16.msra.mxu0 0
      %2994 = vmatprep.subr.bf16.mxu0 0
      %2995 = vmatpush2.bf16.msra.mxu0 0
      %2996 = vmatprep.subr.bf16.mxu0 0
      %2997 = vmatpush2.bf16.msra.mxu0 0
      %2998 = vmatprep.subr.bf16.mxu0 0
      %2999 = vmatpush2.bf16.msra.mxu0 0
      %3000 = vmatprep.mubr.bf16.mxu0 0
      %3001 = vmatmul.mubr.bf16.gmra.mxu0 %v2654
      %v3002 = vpop.f32.mrf.mxu0
      %v3003 = vadd.f32 %v2608, %v3002
      %v3004 = vpop.f32.mrf.mxu0
      %v3005 = vpop.f32.mrf.mxu0
      %v3006 = vpop.f32.mrf.mxu0
      %3007 = vdwg.mxu0
      %v3012 = vunpack.c.l.b16 %v2536
      %v3013 = vunpack.c.l.b16 %v2537
      %v3014 = vunpack.c.l.b16 %v2538
      %v3015 = vunpack.c.l.b16 %v2539
      %v3016 = vpack.c.b16 %v3013, %v3012
      %v3017 = vpack.c.b16 %v3015, %v3014
      %3020 = vmatprep.subr.bf16.mxu0 0
      %3021 = vmatpush1.bf16.msra.mxu0 0
      %3022 = vmatprep.subr.bf16.mxu0 0
      %3023 = vmatpush1.bf16.msra.mxu0 0
      %3024 = vmatprep.subr.bf16.mxu0 0
      %3025 = vmatpush1.bf16.msra.mxu0 0
      %3026 = vmatprep.subr.bf16.mxu0 0
      %3027 = vmatpush1.bf16.msra.mxu0 0
      %3028 = vmatprep.subr.bf16.mxu0 0
      %3029 = vmatpush1.bf16.msra.mxu0 0
      %3030 = vmatprep.subr.bf16.mxu0 0
      %3031 = vmatpush1.bf16.msra.mxu0 0
      %3032 = vmatprep.subr.bf16.mxu0 0
      %3033 = vmatpush1.bf16.msra.mxu0 %v3017
      %3034 = vmatprep.subr.bf16.mxu0 0
      %3035 = vmatpush1.bf16.msra.mxu0 %v3016
      %3036 = vmatprep.subr.bf16.mxu0 0
      %3037 = vmatpush2.bf16.msra.mxu0 0
      %3038 = vmatprep.subr.bf16.mxu0 0
      %3039 = vmatpush2.bf16.msra.mxu0 0
      %3040 = vmatprep.subr.bf16.mxu0 0
      %3041 = vmatpush2.bf16.msra.mxu0 0
      %3042 = vmatprep.subr.bf16.mxu0 0
      %3043 = vmatpush2.bf16.msra.mxu0 0
      %3044 = vmatprep.subr.bf16.mxu0 0
      %3045 = vmatpush2.bf16.msra.mxu0 0
      %3046 = vmatprep.subr.bf16.mxu0 0
      %3047 = vmatpush2.bf16.msra.mxu0 0
      %3048 = vmatprep.subr.bf16.mxu0 0
      %3049 = vmatpush2.bf16.msra.mxu0 0
      %3050 = vmatprep.subr.bf16.mxu0 0
      %3051 = vmatpush2.bf16.msra.mxu0 0
      %3052 = vmatprep.mubr.bf16.mxu0 0
      %3053 = vmatmul.mubr.bf16.gmra.mxu0 %v2654
      %v3054 = vpop.f32.mrf.mxu0
      %v3055 = vadd.f32 %v2612, %v3054
      %v3056 = vpop.f32.mrf.mxu0
      %v3057 = vpop.f32.mrf.mxu0
      %v3058 = vpop.f32.mrf.mxu0
      %3059 = vdwg.mxu0
      %v3064 = vunpack.c.l.b16 %v2540
      %v3065 = vunpack.c.l.b16 %v2541
      %v3066 = vunpack.c.l.b16 %v2542
      %v3067 = vunpack.c.l.b16 %v2543
      %v3068 = vpack.c.b16 %v3065, %v3064
      %v3069 = vpack.c.b16 %v3067, %v3066
      %3072 = vmatprep.subr.bf16.mxu0 0
      %3073 = vmatpush1.bf16.msra.mxu0 0
      %3074 = vmatprep.subr.bf16.mxu0 0
      %3075 = vmatpush1.bf16.msra.mxu0 0
      %3076 = vmatprep.subr.bf16.mxu0 0
      %3077 = vmatpush1.bf16.msra.mxu0 0
      %3078 = vmatprep.subr.bf16.mxu0 0
      %3079 = vmatpush1.bf16.msra.mxu0 0
      %3080 = vmatprep.subr.bf16.mxu0 0
      %3081 = vmatpush1.bf16.msra.mxu0 0
      %3082 = vmatprep.subr.bf16.mxu0 0
      %3083 = vmatpush1.bf16.msra.mxu0 0
      %3084 = vmatprep.subr.bf16.mxu0 0
      %3085 = vmatpush1.bf16.msra.mxu0 %v3069
      %3086 = vmatprep.subr.bf16.mxu0 0
      %3087 = vmatpush1.bf16.msra.mxu0 %v3068
      %3088 = vmatprep.subr.bf16.mxu0 0
      %3089 = vmatpush2.bf16.msra.mxu0 0
      %3090 = vmatprep.subr.bf16.mxu0 0
      %3091 = vmatpush2.bf16.msra.mxu0 0
      %3092 = vmatprep.subr.bf16.mxu0 0
      %3093 = vmatpush2.bf16.msra.mxu0 0
      %3094 = vmatprep.subr.bf16.mxu0 0
      %3095 = vmatpush2.bf16.msra.mxu0 0
      %3096 = vmatprep.subr.bf16.mxu0 0
      %3097 = vmatpush2.bf16.msra.mxu0 0
      %3098 = vmatprep.subr.bf16.mxu0 0
      %3099 = vmatpush2.bf16.msra.mxu0 0
      %3100 = vmatprep.subr.bf16.mxu0 0
      %3101 = vmatpush2.bf16.msra.mxu0 0
      %3102 = vmatprep.subr.bf16.mxu0 0
      %3103 = vmatpush2.bf16.msra.mxu0 0
      %3104 = vmatprep.mubr.bf16.mxu0 0
      %3105 = vmatmul.mubr.bf16.gmra.mxu0 %v2654
      %v3106 = vpop.f32.mrf.mxu0
      %v3107 = vadd.f32 %v2616, %v3106
      %v3108 = vpop.f32.mrf.mxu0
      %v3109 = vpop.f32.mrf.mxu0
      %v3110 = vpop.f32.mrf.mxu0
      %3111 = vdwg.mxu0
      %v3116 = vunpack.c.l.b16 %v2544
      %v3117 = vunpack.c.l.b16 %v2545
      %v3118 = vunpack.c.l.b16 %v2546
      %v3119 = vunpack.c.l.b16 %v2547
      %v3120 = vpack.c.b16 %v3117, %v3116
      %v3121 = vpack.c.b16 %v3119, %v3118
      %3124 = vmatprep.subr.bf16.mxu0 0
      %3125 = vmatpush1.bf16.msra.mxu0 0
      %3126 = vmatprep.subr.bf16.mxu0 0
      %3127 = vmatpush1.bf16.msra.mxu0 0
      %3128 = vmatprep.subr.bf16.mxu0 0
      %3129 = vmatpush1.bf16.msra.mxu0 0
      %3130 = vmatprep.subr.bf16.mxu0 0
      %3131 = vmatpush1.bf16.msra.mxu0 0
      %3132 = vmatprep.subr.bf16.mxu0 0
      %3133 = vmatpush1.bf16.msra.mxu0 0
      %3134 = vmatprep.subr.bf16.mxu0 0
      %3135 = vmatpush1.bf16.msra.mxu0 0
      %3136 = vmatprep.subr.bf16.mxu0 0
      %3137 = vmatpush1.bf16.msra.mxu0 %v3121
      %3138 = vmatprep.subr.bf16.mxu0 0
      %3139 = vmatpush1.bf16.msra.mxu0 %v3120
      %3140 = vmatprep.subr.bf16.mxu0 0
      %3141 = vmatpush2.bf16.msra.mxu0 0
      %3142 = vmatprep.subr.bf16.mxu0 0
      %3143 = vmatpush2.bf16.msra.mxu0 0
      %3144 = vmatprep.subr.bf16.mxu0 0
      %3145 = vmatpush2.bf16.msra.mxu0 0
      %3146 = vmatprep.subr.bf16.mxu0 0
      %3147 = vmatpush2.bf16.msra.mxu0 0
      %3148 = vmatprep.subr.bf16.mxu0 0
      %3149 = vmatpush2.bf16.msra.mxu0 0
      %3150 = vmatprep.subr.bf16.mxu0 0
      %3151 = vmatpush2.bf16.msra.mxu0 0
      %3152 = vmatprep.subr.bf16.mxu0 0
      %3153 = vmatpush2.bf16.msra.mxu0 0
      %3154 = vmatprep.subr.bf16.mxu0 0
      %3155 = vmatpush2.bf16.msra.mxu0 0
      %3156 = vmatprep.mubr.bf16.mxu0 0
      %3157 = vmatmul.mubr.bf16.gmra.mxu0 %v2654
      %v3158 = vpop.f32.mrf.mxu0
      %v3159 = vadd.f32 %v2620, %v3158
      %v3160 = vpop.f32.mrf.mxu0
      %v3161 = vpop.f32.mrf.mxu0
      %v3162 = vpop.f32.mrf.mxu0
      %3163 = vdwg.mxu0
      %v3168 = vunpack.c.l.b16 %v2548
      %v3169 = vunpack.c.l.b16 %v2549
      %v3170 = vunpack.c.l.b16 %v2550
      %v3171 = vunpack.c.l.b16 %v2551
      %v3172 = vpack.c.b16 %v3169, %v3168
      %v3173 = vpack.c.b16 %v3171, %v3170
      %3176 = vmatprep.subr.bf16.mxu0 0
      %3177 = vmatpush1.bf16.msra.mxu0 0
      %3178 = vmatprep.subr.bf16.mxu0 0
      %3179 = vmatpush1.bf16.msra.mxu0 0
      %3180 = vmatprep.subr.bf16.mxu0 0
      %3181 = vmatpush1.bf16.msra.mxu0 0
      %3182 = vmatprep.subr.bf16.mxu0 0
      %3183 = vmatpush1.bf16.msra.mxu0 0
      %3184 = vmatprep.subr.bf16.mxu0 0
      %3185 = vmatpush1.bf16.msra.mxu0 0
      %3186 = vmatprep.subr.bf16.mxu0 0
      %3187 = vmatpush1.bf16.msra.mxu0 0
      %3188 = vmatprep.subr.bf16.mxu0 0
      %3189 = vmatpush1.bf16.msra.mxu0 %v3173
      %3190 = vmatprep.subr.bf16.mxu0 0
      %3191 = vmatpush1.bf16.msra.mxu0 %v3172
      %3192 = vmatprep.subr.bf16.mxu0 0
      %3193 = vmatpush2.bf16.msra.mxu0 0
      %3194 = vmatprep.subr.bf16.mxu0 0
      %3195 = vmatpush2.bf16.msra.mxu0 0
      %3196 = vmatprep.subr.bf16.mxu0 0
      %3197 = vmatpush2.bf16.msra.mxu0 0
      %3198 = vmatprep.subr.bf16.mxu0 0
      %3199 = vmatpush2.bf16.msra.mxu0 0
      %3200 = vmatprep.subr.bf16.mxu0 0
      %3201 = vmatpush2.bf16.msra.mxu0 0
      %3202 = vmatprep.subr.bf16.mxu0 0
      %3203 = vmatpush2.bf16.msra.mxu0 0
      %3204 = vmatprep.subr.bf16.mxu0 0
      %3205 = vmatpush2.bf16.msra.mxu0 0
      %3206 = vmatprep.subr.bf16.mxu0 0
      %3207 = vmatpush2.bf16.msra.mxu0 0
      %3208 = vmatprep.mubr.bf16.mxu0 0
      %3209 = vmatmul.mubr.bf16.gmra.mxu0 %v2654
      %v3210 = vpop.f32.mrf.mxu0
      %v3211 = vadd.f32 %v2624, %v3210
      %v3212 = vpop.f32.mrf.mxu0
      %v3213 = vpop.f32.mrf.mxu0
      %v3214 = vpop.f32.mrf.mxu0
      %3215 = vdwg.mxu0
      %v3220 = vunpack.c.l.b16 %v2552
      %v3221 = vunpack.c.l.b16 %v2553
      %v3222 = vunpack.c.l.b16 %v2554
      %v3223 = vunpack.c.l.b16 %v2555
      %v3224 = vpack.c.b16 %v3221, %v3220
      %v3225 = vpack.c.b16 %v3223, %v3222
      %3228 = vmatprep.subr.bf16.mxu0 0
      %3229 = vmatpush1.bf16.msra.mxu0 0
      %3230 = vmatprep.subr.bf16.mxu0 0
      %3231 = vmatpush1.bf16.msra.mxu0 0
      %3232 = vmatprep.subr.bf16.mxu0 0
      %3233 = vmatpush1.bf16.msra.mxu0 0
      %3234 = vmatprep.subr.bf16.mxu0 0
      %3235 = vmatpush1.bf16.msra.mxu0 0
      %3236 = vmatprep.subr.bf16.mxu0 0
      %3237 = vmatpush1.bf16.msra.mxu0 0
      %3238 = vmatprep.subr.bf16.mxu0 0
      %3239 = vmatpush1.bf16.msra.mxu0 0
      %3240 = vmatprep.subr.bf16.mxu0 0
      %3241 = vmatpush1.bf16.msra.mxu0 %v3225
      %3242 = vmatprep.subr.bf16.mxu0 0
      %3243 = vmatpush1.bf16.msra.mxu0 %v3224
      %3244 = vmatprep.subr.bf16.mxu0 0
      %3245 = vmatpush2.bf16.msra.mxu0 0
      %3246 = vmatprep.subr.bf16.mxu0 0
      %3247 = vmatpush2.bf16.msra.mxu0 0
      %3248 = vmatprep.subr.bf16.mxu0 0
      %3249 = vmatpush2.bf16.msra.mxu0 0
      %3250 = vmatprep.subr.bf16.mxu0 0
      %3251 = vmatpush2.bf16.msra.mxu0 0
      %3252 = vmatprep.subr.bf16.mxu0 0
      %3253 = vmatpush2.bf16.msra.mxu0 0
      %3254 = vmatprep.subr.bf16.mxu0 0
      %3255 = vmatpush2.bf16.msra.mxu0 0
      %3256 = vmatprep.subr.bf16.mxu0 0
      %3257 = vmatpush2.bf16.msra.mxu0 0
      %3258 = vmatprep.subr.bf16.mxu0 0
      %3259 = vmatpush2.bf16.msra.mxu0 0
      %3260 = vmatprep.mubr.bf16.mxu0 0
      %3261 = vmatmul.mubr.bf16.gmra.mxu0 %v2654
      %v3262 = vpop.f32.mrf.mxu0
      %v3263 = vadd.f32 %v2628, %v3262
      %v3264 = vpop.f32.mrf.mxu0
      %v3265 = vpop.f32.mrf.mxu0
      %v3266 = vpop.f32.mrf.mxu0
      %3267 = vdwg.mxu0
      %v3269 = vsel %vm1437, %v2691, 0
      %v3272 = vsel %vm1437, %v2899, 0
      %3274 = vmatprep.subr.mxu0 0.0
      %3275 = vmatpush1.xpose.msra.mxu0 0.0
      %3276 = vmatprep.subr.mxu0 0.0
      %3277 = vmatpush1.xpose.msra.mxu0 0.0
      %3278 = vmatprep.subr.mxu0 0.0
      %3279 = vmatpush1.xpose.msra.mxu0 0.0
      %3280 = vmatprep.subr.mxu0 0.0
      %3281 = vmatpush1.xpose.msra.mxu0 0.0
      %3282 = vmatprep.subr.mxu0 0.0
      %3283 = vmatpush1.xpose.msra.mxu0 0.0
      %3284 = vmatprep.subr.mxu0 0.0
      %3285 = vmatpush1.xpose.msra.mxu0 0.0
      %3286 = vmatprep.subr.mxu0 0.0
      %3287 = vmatpush1.xpose.msra.mxu0 0.0
      %3288 = vmatprep.subr.mxu0 0.0
      %3289 = vmatpush1.xpose.msra.mxu0 0.0
      %3290 = vmatprep.subr.mxu0 0.0
      %3291 = vmatpush1.xpose.msra.mxu0 0.0
      %3292 = vmatprep.subr.mxu0 0.0
      %3293 = vmatpush1.xpose.msra.mxu0 0.0
      %3294 = vmatprep.subr.mxu0 0.0
      %3295 = vmatpush1.xpose.msra.mxu0 0.0
      %3296 = vmatprep.subr.mxu0 0.0
      %3297 = vmatpush1.xpose.msra.mxu0 0.0
      %3298 = vmatprep.subr.mxu0 0.0
      %3299 = vmatpush1.xpose.msra.mxu0 0.0
      %3300 = vmatprep.subr.mxu0 0.0
      %3301 = vmatpush1.xpose.msra.mxu0 0.0
      %3302 = vmatprep.subr.mxu0 0.0
      %3303 = vmatpush1.xpose.msra.mxu0 0.0
      %3304 = vmatprep.subr.mxu0 0.0
      %3305 = vmatpush1.xpose.msra.mxu0 %v3272
      %3306 = vmatprep.subr.mxu0 0.0
      %3307 = vmatpush2.xpose.msra.mxu0 0.0
      %3308 = vmatprep.subr.mxu0 0.0
      %3309 = vmatpush2.xpose.msra.mxu0 0.0
      %3310 = vmatprep.subr.mxu0 0.0
      %3311 = vmatpush2.xpose.msra.mxu0 0.0
      %3312 = vmatprep.subr.mxu0 0.0
      %3313 = vmatpush2.xpose.msra.mxu0 0.0
      %3314 = vmatprep.subr.mxu0 0.0
      %3315 = vmatpush2.xpose.msra.mxu0 0.0
      %3316 = vmatprep.subr.mxu0 0.0
      %3317 = vmatpush2.xpose.msra.mxu0 0.0
      %3318 = vmatprep.subr.mxu0 0.0
      %3319 = vmatpush2.xpose.msra.mxu0 0.0
      %3320 = vmatprep.subr.mxu0 0.0
      %3321 = vmatpush2.xpose.msra.mxu0 0.0
      %3322 = vmatprep.subr.mxu0 0.0
      %3323 = vmatpush2.xpose.msra.mxu0 0.0
      %3324 = vmatprep.subr.mxu0 0.0
      %3325 = vmatpush2.xpose.msra.mxu0 0.0
      %3326 = vmatprep.subr.mxu0 0.0
      %3327 = vmatpush2.xpose.msra.mxu0 0.0
      %3328 = vmatprep.subr.mxu0 0.0
      %3329 = vmatpush2.xpose.msra.mxu0 0.0
      %3330 = vmatprep.subr.mxu0 0.0
      %3331 = vmatpush2.xpose.msra.mxu0 0.0
      %3332 = vmatprep.subr.mxu0 0.0
      %3333 = vmatpush2.xpose.msra.mxu0 0.0
      %3334 = vmatprep.subr.mxu0 0.0
      %3335 = vmatpush2.xpose.msra.mxu0 0.0
      %3336 = vmatprep.subr.mxu0 0.0
      %3337 = vmatpush2.xpose.msra.mxu0 0.0
      %3338 = vmatprep.mubr.f32.mxu0 0.0
      %3339 = vmatmul.mubr.f32.gmra.mxu0 %v3269
      %v3340 = vpop.f32.mrf.mxu0
      %v3341 = vadd.f32 %v1435, %v3340
      %v3342 = vpop.f32.mrf.mxu0
      %3343 = vdwg.mxu0
      %v3345 = vsel %vm1437, %v2743, 0
      %v3348 = vsel %vm1437, %v2951, 0
      %3350 = vmatprep.subr.mxu0 0.0
      %3351 = vmatpush1.xpose.msra.mxu0 0.0
      %3352 = vmatprep.subr.mxu0 0.0
      %3353 = vmatpush1.xpose.msra.mxu0 0.0
      %3354 = vmatprep.subr.mxu0 0.0
      %3355 = vmatpush1.xpose.msra.mxu0 0.0
      %3356 = vmatprep.subr.mxu0 0.0
      %3357 = vmatpush1.xpose.msra.mxu0 0.0
      %3358 = vmatprep.subr.mxu0 0.0
      %3359 = vmatpush1.xpose.msra.mxu0 0.0
      %3360 = vmatprep.subr.mxu0 0.0
      %3361 = vmatpush1.xpose.msra.mxu0 0.0
      %3362 = vmatprep.subr.mxu0 0.0
      %3363 = vmatpush1.xpose.msra.mxu0 0.0
      %3364 = vmatprep.subr.mxu0 0.0
      %3365 = vmatpush1.xpose.msra.mxu0 0.0
      %3366 = vmatprep.subr.mxu0 0.0
      %3367 = vmatpush1.xpose.msra.mxu0 0.0
      %3368 = vmatprep.subr.mxu0 0.0
      %3369 = vmatpush1.xpose.msra.mxu0 0.0
      %3370 = vmatprep.subr.mxu0 0.0
      %3371 = vmatpush1.xpose.msra.mxu0 0.0
      %3372 = vmatprep.subr.mxu0 0.0
      %3373 = vmatpush1.xpose.msra.mxu0 0.0
      %3374 = vmatprep.subr.mxu0 0.0
      %3375 = vmatpush1.xpose.msra.mxu0 0.0
      %3376 = vmatprep.subr.mxu0 0.0
      %3377 = vmatpush1.xpose.msra.mxu0 0.0
      %3378 = vmatprep.subr.mxu0 0.0
      %3379 = vmatpush1.xpose.msra.mxu0 0.0
      %3380 = vmatprep.subr.mxu0 0.0
      %3381 = vmatpush1.xpose.msra.mxu0 %v3348
      %3382 = vmatprep.subr.mxu0 0.0
      %3383 = vmatpush2.xpose.msra.mxu0 0.0
      %3384 = vmatprep.subr.mxu0 0.0
      %3385 = vmatpush2.xpose.msra.mxu0 0.0
      %3386 = vmatprep.subr.mxu0 0.0
      %3387 = vmatpush2.xpose.msra.mxu0 0.0
      %3388 = vmatprep.subr.mxu0 0.0
      %3389 = vmatpush2.xpose.msra.mxu0 0.0
      %3390 = vmatprep.subr.mxu0 0.0
      %3391 = vmatpush2.xpose.msra.mxu0 0.0
      %3392 = vmatprep.subr.mxu0 0.0
      %3393 = vmatpush2.xpose.msra.mxu0 0.0
      %3394 = vmatprep.subr.mxu0 0.0
      %3395 = vmatpush2.xpose.msra.mxu0 0.0
      %3396 = vmatprep.subr.mxu0 0.0
      %3397 = vmatpush2.xpose.msra.mxu0 0.0
      %3398 = vmatprep.subr.mxu0 0.0
      %3399 = vmatpush2.xpose.msra.mxu0 0.0
      %3400 = vmatprep.subr.mxu0 0.0
      %3401 = vmatpush2.xpose.msra.mxu0 0.0
      %3402 = vmatprep.subr.mxu0 0.0
      %3403 = vmatpush2.xpose.msra.mxu0 0.0
      %3404 = vmatprep.subr.mxu0 0.0
      %3405 = vmatpush2.xpose.msra.mxu0 0.0
      %3406 = vmatprep.subr.mxu0 0.0
      %3407 = vmatpush2.xpose.msra.mxu0 0.0
      %3408 = vmatprep.subr.mxu0 0.0
      %3409 = vmatpush2.xpose.msra.mxu0 0.0
      %3410 = vmatprep.subr.mxu0 0.0
      %3411 = vmatpush2.xpose.msra.mxu0 0.0
      %3412 = vmatprep.subr.mxu0 0.0
      %3413 = vmatpush2.xpose.msra.mxu0 0.0
      %3414 = vmatprep.mubr.f32.mxu0 0.0
      %3415 = vmatmul.mubr.f32.gmra.mxu0 %v3345
      %v3416 = vpop.f32.mrf.mxu0
      %v3417 = vadd.f32 %v1435, %v3416
      %v3418 = vpop.f32.mrf.mxu0
      %3419 = vdwg.mxu0
      %v3421 = vsel %vm1437, %v2795, 0
      %v3424 = vsel %vm1437, %v3003, 0
      %3426 = vmatprep.subr.mxu0 0.0
      %3427 = vmatpush1.xpose.msra.mxu0 0.0
      %3428 = vmatprep.subr.mxu0 0.0
      %3429 = vmatpush1.xpose.msra.mxu0 0.0
      %3430 = vmatprep.subr.mxu0 0.0
      %3431 = vmatpush1.xpose.msra.mxu0 0.0
      %3432 = vmatprep.subr.mxu0 0.0
      %3433 = vmatpush1.xpose.msra.mxu0 0.0
      %3434 = vmatprep.subr.mxu0 0.0
      %3435 = vmatpush1.xpose.msra.mxu0 0.0
      %3436 = vmatprep.subr.mxu0 0.0
      %3437 = vmatpush1.xpose.msra.mxu0 0.0
      %3438 = vmatprep.subr.mxu0 0.0
      %3439 = vmatpush1.xpose.msra.mxu0 0.0
      %3440 = vmatprep.subr.mxu0 0.0
      %3441 = vmatpush1.xpose.msra.mxu0 0.0
      %3442 = vmatprep.subr.mxu0 0.0
      %3443 = vmatpush1.xpose.msra.mxu0 0.0
      %3444 = vmatprep.subr.mxu0 0.0
      %3445 = vmatpush1.xpose.msra.mxu0 0.0
      %3446 = vmatprep.subr.mxu0 0.0
      %3447 = vmatpush1.xpose.msra.mxu0 0.0
      %3448 = vmatprep.subr.mxu0 0.0
      %3449 = vmatpush1.xpose.msra.mxu0 0.0
      %3450 = vmatprep.subr.mxu0 0.0
      %3451 = vmatpush1.xpose.msra.mxu0 0.0
      %3452 = vmatprep.subr.mxu0 0.0
      %3453 = vmatpush1.xpose.msra.mxu0 0.0
      %3454 = vmatprep.subr.mxu0 0.0
      %3455 = vmatpush1.xpose.msra.mxu0 0.0
      %3456 = vmatprep.subr.mxu0 0.0
      %3457 = vmatpush1.xpose.msra.mxu0 %v3424
      %3458 = vmatprep.subr.mxu0 0.0
      %3459 = vmatpush2.xpose.msra.mxu0 0.0
      %3460 = vmatprep.subr.mxu0 0.0
      %3461 = vmatpush2.xpose.msra.mxu0 0.0
      %3462 = vmatprep.subr.mxu0 0.0
      %3463 = vmatpush2.xpose.msra.mxu0 0.0
      %3464 = vmatprep.subr.mxu0 0.0
      %3465 = vmatpush2.xpose.msra.mxu0 0.0
      %3466 = vmatprep.subr.mxu0 0.0
      %3467 = vmatpush2.xpose.msra.mxu0 0.0
      %3468 = vmatprep.subr.mxu0 0.0
      %3469 = vmatpush2.xpose.msra.mxu0 0.0
      %3470 = vmatprep.subr.mxu0 0.0
      %3471 = vmatpush2.xpose.msra.mxu0 0.0
      %3472 = vmatprep.subr.mxu0 0.0
      %3473 = vmatpush2.xpose.msra.mxu0 0.0
      %3474 = vmatprep.subr.mxu0 0.0
      %3475 = vmatpush2.xpose.msra.mxu0 0.0
      %3476 = vmatprep.subr.mxu0 0.0
      %3477 = vmatpush2.xpose.msra.mxu0 0.0
      %3478 = vmatprep.subr.mxu0 0.0
      %3479 = vmatpush2.xpose.msra.mxu0 0.0
      %3480 = vmatprep.subr.mxu0 0.0
      %3481 = vmatpush2.xpose.msra.mxu0 0.0
      %3482 = vmatprep.subr.mxu0 0.0
      %3483 = vmatpush2.xpose.msra.mxu0 0.0
      %3484 = vmatprep.subr.mxu0 0.0
      %3485 = vmatpush2.xpose.msra.mxu0 0.0
      %3486 = vmatprep.subr.mxu0 0.0
      %3487 = vmatpush2.xpose.msra.mxu0 0.0
      %3488 = vmatprep.subr.mxu0 0.0
      %3489 = vmatpush2.xpose.msra.mxu0 0.0
      %3490 = vmatprep.mubr.f32.mxu0 0.0
      %3491 = vmatmul.mubr.f32.gmra.mxu0 %v3421
      %v3492 = vpop.f32.mrf.mxu0
      %v3493 = vadd.f32 %v1435, %v3492
      %v3494 = vpop.f32.mrf.mxu0
      %3495 = vdwg.mxu0
      %v3497 = vsel %vm1437, %v2847, 0
      %v3500 = vsel %vm1437, %v3055, 0
      %3502 = vmatprep.subr.mxu0 0.0
      %3503 = vmatpush1.xpose.msra.mxu0 0.0
      %3504 = vmatprep.subr.mxu0 0.0
      %3505 = vmatpush1.xpose.msra.mxu0 0.0
      %3506 = vmatprep.subr.mxu0 0.0
      %3507 = vmatpush1.xpose.msra.mxu0 0.0
      %3508 = vmatprep.subr.mxu0 0.0
      %3509 = vmatpush1.xpose.msra.mxu0 0.0
      %3510 = vmatprep.subr.mxu0 0.0
      %3511 = vmatpush1.xpose.msra.mxu0 0.0
      %3512 = vmatprep.subr.mxu0 0.0
      %3513 = vmatpush1.xpose.msra.mxu0 0.0
      %3514 = vmatprep.subr.mxu0 0.0
      %3515 = vmatpush1.xpose.msra.mxu0 0.0
      %3516 = vmatprep.subr.mxu0 0.0
      %3517 = vmatpush1.xpose.msra.mxu0 0.0
      %3518 = vmatprep.subr.mxu0 0.0
      %3519 = vmatpush1.xpose.msra.mxu0 0.0
      %3520 = vmatprep.subr.mxu0 0.0
      %3521 = vmatpush1.xpose.msra.mxu0 0.0
      %3522 = vmatprep.subr.mxu0 0.0
      %3523 = vmatpush1.xpose.msra.mxu0 0.0
      %3524 = vmatprep.subr.mxu0 0.0
      %3525 = vmatpush1.xpose.msra.mxu0 0.0
      %3526 = vmatprep.subr.mxu0 0.0
      %3527 = vmatpush1.xpose.msra.mxu0 0.0
      %3528 = vmatprep.subr.mxu0 0.0
      %3529 = vmatpush1.xpose.msra.mxu0 0.0
      %3530 = vmatprep.subr.mxu0 0.0
      %3531 = vmatpush1.xpose.msra.mxu0 0.0
      %3532 = vmatprep.subr.mxu0 0.0
      %3533 = vmatpush1.xpose.msra.mxu0 %v3500
      %3534 = vmatprep.subr.mxu0 0.0
      %3535 = vmatpush2.xpose.msra.mxu0 0.0
      %3536 = vmatprep.subr.mxu0 0.0
      %3537 = vmatpush2.xpose.msra.mxu0 0.0
      %3538 = vmatprep.subr.mxu0 0.0
      %3539 = vmatpush2.xpose.msra.mxu0 0.0
      %3540 = vmatprep.subr.mxu0 0.0
      %3541 = vmatpush2.xpose.msra.mxu0 0.0
      %3542 = vmatprep.subr.mxu0 0.0
      %3543 = vmatpush2.xpose.msra.mxu0 0.0
      %3544 = vmatprep.subr.mxu0 0.0
      %3545 = vmatpush2.xpose.msra.mxu0 0.0
      %3546 = vmatprep.subr.mxu0 0.0
      %3547 = vmatpush2.xpose.msra.mxu0 0.0
      %3548 = vmatprep.subr.mxu0 0.0
      %3549 = vmatpush2.xpose.msra.mxu0 0.0
      %3550 = vmatprep.subr.mxu0 0.0
      %3551 = vmatpush2.xpose.msra.mxu0 0.0
      %3552 = vmatprep.subr.mxu0 0.0
      %3553 = vmatpush2.xpose.msra.mxu0 0.0
      %3554 = vmatprep.subr.mxu0 0.0
      %3555 = vmatpush2.xpose.msra.mxu0 0.0
      %3556 = vmatprep.subr.mxu0 0.0
      %3557 = vmatpush2.xpose.msra.mxu0 0.0
      %3558 = vmatprep.subr.mxu0 0.0
      %3559 = vmatpush2.xpose.msra.mxu0 0.0
      %3560 = vmatprep.subr.mxu0 0.0
      %3561 = vmatpush2.xpose.msra.mxu0 0.0
      %3562 = vmatprep.subr.mxu0 0.0
      %3563 = vmatpush2.xpose.msra.mxu0 0.0
      %3564 = vmatprep.subr.mxu0 0.0
      %3565 = vmatpush2.xpose.msra.mxu0 0.0
      %3566 = vmatprep.mubr.f32.mxu0 0.0
      %3567 = vmatmul.mubr.f32.gmra.mxu0 %v3497
      %v3568 = vpop.f32.mrf.mxu0
      %v3569 = vadd.f32 %v1435, %v3568
      %v3570 = vpop.f32.mrf.mxu0
      %3571 = vdwg.mxu0
      %v3572 = vsel %vm1437, %v3341, -inf
      %3573 = vmax.xlane.f32.xlu0 %v3572
      %v3574 = vpop.xlane.xlu0 %3573
      %v3575 = vsel %vm1437, %v3417, -inf
      %3576 = vmax.xlane.f32.xlu0 %v3575
      %v3577 = vpop.xlane.xlu0 %3576
      %v3578 = vsel %vm1437, %v3493, -inf
      %3579 = vmax.xlane.f32.xlu0 %v3578
      %v3580 = vpop.xlane.xlu0 %3579
      %v3581 = vsel %vm1437, %v3569, -inf
      %3582 = vmax.xlane.f32.xlu0 %v3581
      %v3583 = vpop.xlane.xlu0 %3582
      %v3584 = vsub.f32 %v3341, %v3574
      %v3585 = vsub.f32 %v3417, %v3577
      %v3586 = vsub.f32 %v3493, %v3580
      %v3587 = vsub.f32 %v3569, %v3583
      %v3588 = vmul.f32 %v3584, 1.442695
      %v3589 = vpow.pop %v3588
      %v3590 = vmul.f32 %v3585, 1.442695
      %v3591 = vpow.pop %v3590
      %v3592 = vmul.f32 %v3586, 1.442695
      %v3593 = vpow.pop %v3592
      %v3594 = vmul.f32 %v3587, 1.442695
      %v3595 = vpow.pop %v3594
      %v3596 = vsel %vm1437, %v3589, 0.0
      %3597 = vadd.xlane.f32.xlu0 %v3596
      %v3598 = vpop.xlane.xlu0 %3597
      %v3599 = vsel %vm1437, %v3591, 0.0
      %3600 = vadd.xlane.f32.xlu0 %v3599
      %v3601 = vpop.xlane.xlu0 %3600
      %v3602 = vsel %vm1437, %v3593, 0.0
      %3603 = vadd.xlane.f32.xlu0 %v3602
      %v3604 = vpop.xlane.xlu0 %3603
      %v3605 = vsel %vm1437, %v3595, 0.0
      %3606 = vadd.xlane.f32.xlu0 %v3605
      %v3607 = vpop.xlane.xlu0 %3606
      %v3608 = vrcp.pop %v3598
      %v3609 = vrcp.pop %v3601
      %v3610 = vrcp.pop %v3604
      %v3611 = vrcp.pop %v3607
      %v3612 = vmul.f32 %v3589, %v3608
      %v3613 = vmul.f32 %v3591, %v3609
      %v3614 = vmul.f32 %v3593, %v3610
      %v3615 = vmul.f32 %v3595, %v3611
      %v3617 = vsel %vm1437, %v3612, 0
      %3619 = vmatprep.subr.mxu0 0.0
      %3620 = vmatpush1.msra.mxu0 0.0
      %3621 = vmatprep.subr.mxu0 0.0
      %3622 = vmatpush1.msra.mxu0 0.0
      %3623 = vmatprep.subr.mxu0 0.0
      %3624 = vmatpush1.msra.mxu0 0.0
      %3625 = vmatprep.subr.mxu0 0.0
      %3626 = vmatpush1.msra.mxu0 0.0
      %3627 = vmatprep.subr.mxu0 0.0
      %3628 = vmatpush1.msra.mxu0 0.0
      %3629 = vmatprep.subr.mxu0 0.0
      %3630 = vmatpush1.msra.mxu0 0.0
      %3631 = vmatprep.subr.mxu0 0.0
      %3632 = vmatpush1.msra.mxu0 0.0
      %3633 = vmatprep.subr.mxu0 0.0
      %3634 = vmatpush1.msra.mxu0 0.0
      %3635 = vmatprep.subr.mxu0 0.0
      %3636 = vmatpush1.msra.mxu0 0.0
      %3637 = vmatprep.subr.mxu0 0.0
      %3638 = vmatpush1.msra.mxu0 0.0
      %3639 = vmatprep.subr.mxu0 0.0
      %3640 = vmatpush1.msra.mxu0 0.0
      %3641 = vmatprep.subr.mxu0 0.0
      %3642 = vmatpush1.msra.mxu0 0.0
      %3643 = vmatprep.subr.mxu0 0.0
      %3644 = vmatpush1.msra.mxu0 0.0
      %3645 = vmatprep.subr.mxu0 0.0
      %3646 = vmatpush1.msra.mxu0 0.0
      %3647 = vmatprep.subr.mxu0 0.0
      %3648 = vmatpush1.msra.mxu0 0.0
      %3649 = vmatprep.subr.mxu0 0.0
      %3650 = vmatpush1.msra.mxu0 %v3107
      %3651 = vmatprep.subr.mxu0 0.0
      %3652 = vmatpush2.msra.mxu0 0.0
      %3653 = vmatprep.subr.mxu0 0.0
      %3654 = vmatpush2.msra.mxu0 0.0
      %3655 = vmatprep.subr.mxu0 0.0
      %3656 = vmatpush2.msra.mxu0 0.0
      %3657 = vmatprep.subr.mxu0 0.0
      %3658 = vmatpush2.msra.mxu0 0.0
      %3659 = vmatprep.subr.mxu0 0.0
      %3660 = vmatpush2.msra.mxu0 0.0
      %3661 = vmatprep.subr.mxu0 0.0
      %3662 = vmatpush2.msra.mxu0 0.0
      %3663 = vmatprep.subr.mxu0 0.0
      %3664 = vmatpush2.msra.mxu0 0.0
      %3665 = vmatprep.subr.mxu0 0.0
      %3666 = vmatpush2.msra.mxu0 0.0
      %3667 = vmatprep.subr.mxu0 0.0
      %3668 = vmatpush2.msra.mxu0 0.0
      %3669 = vmatprep.subr.mxu0 0.0
      %3670 = vmatpush2.msra.mxu0 0.0
      %3671 = vmatprep.subr.mxu0 0.0
      %3672 = vmatpush2.msra.mxu0 0.0
      %3673 = vmatprep.subr.mxu0 0.0
      %3674 = vmatpush2.msra.mxu0 0.0
      %3675 = vmatprep.subr.mxu0 0.0
      %3676 = vmatpush2.msra.mxu0 0.0
      %3677 = vmatprep.subr.mxu0 0.0
      %3678 = vmatpush2.msra.mxu0 0.0
      %3679 = vmatprep.subr.mxu0 0.0
      %3680 = vmatpush2.msra.mxu0 0.0
      %3681 = vmatprep.subr.mxu0 0.0
      %3682 = vmatpush2.msra.mxu0 0.0
      %3683 = vmatprep.mubr.f32.mxu0 0.0
      %3684 = vmatmul.mubr.f32.gmra.mxu0 %v3617
      %v3685 = vpop.f32.mrf.mxu0
      %v3686 = vadd.f32 0.0, %v3685
      %v3687 = vpop.f32.mrf.mxu0
      %3688 = vdwg.mxu0
      %v3690 = vsel %vm1437, %v3613, 0
      %3692 = vmatprep.subr.mxu0 0.0
      %3693 = vmatpush1.msra.mxu0 0.0
      %3694 = vmatprep.subr.mxu0 0.0
      %3695 = vmatpush1.msra.mxu0 0.0
      %3696 = vmatprep.subr.mxu0 0.0
      %3697 = vmatpush1.msra.mxu0 0.0
      %3698 = vmatprep.subr.mxu0 0.0
      %3699 = vmatpush1.msra.mxu0 0.0
      %3700 = vmatprep.subr.mxu0 0.0
      %3701 = vmatpush1.msra.mxu0 0.0
      %3702 = vmatprep.subr.mxu0 0.0
      %3703 = vmatpush1.msra.mxu0 0.0
      %3704 = vmatprep.subr.mxu0 0.0
      %3705 = vmatpush1.msra.mxu0 0.0
      %3706 = vmatprep.subr.mxu0 0.0
      %3707 = vmatpush1.msra.mxu0 0.0
      %3708 = vmatprep.subr.mxu0 0.0
      %3709 = vmatpush1.msra.mxu0 0.0
      %3710 = vmatprep.subr.mxu0 0.0
      %3711 = vmatpush1.msra.mxu0 0.0
      %3712 = vmatprep.subr.mxu0 0.0
      %3713 = vmatpush1.msra.mxu0 0.0
      %3714 = vmatprep.subr.mxu0 0.0
      %3715 = vmatpush1.msra.mxu0 0.0
      %3716 = vmatprep.subr.mxu0 0.0
      %3717 = vmatpush1.msra.mxu0 0.0
      %3718 = vmatprep.subr.mxu0 0.0
      %3719 = vmatpush1.msra.mxu0 0.0
      %3720 = vmatprep.subr.mxu0 0.0
      %3721 = vmatpush1.msra.mxu0 0.0
      %3722 = vmatprep.subr.mxu0 0.0
      %3723 = vmatpush1.msra.mxu0 %v3159
      %3724 = vmatprep.subr.mxu0 0.0
      %3725 = vmatpush2.msra.mxu0 0.0
      %3726 = vmatprep.subr.mxu0 0.0
      %3727 = vmatpush2.msra.mxu0 0.0
      %3728 = vmatprep.subr.mxu0 0.0
      %3729 = vmatpush2.msra.mxu0 0.0
      %3730 = vmatprep.subr.mxu0 0.0
      %3731 = vmatpush2.msra.mxu0 0.0
      %3732 = vmatprep.subr.mxu0 0.0
      %3733 = vmatpush2.msra.mxu0 0.0
      %3734 = vmatprep.subr.mxu0 0.0
      %3735 = vmatpush2.msra.mxu0 0.0
      %3736 = vmatprep.subr.mxu0 0.0
      %3737 = vmatpush2.msra.mxu0 0.0
      %3738 = vmatprep.subr.mxu0 0.0
      %3739 = vmatpush2.msra.mxu0 0.0
      %3740 = vmatprep.subr.mxu0 0.0
      %3741 = vmatpush2.msra.mxu0 0.0
      %3742 = vmatprep.subr.mxu0 0.0
      %3743 = vmatpush2.msra.mxu0 0.0
      %3744 = vmatprep.subr.mxu0 0.0
      %3745 = vmatpush2.msra.mxu0 0.0
      %3746 = vmatprep.subr.mxu0 0.0
      %3747 = vmatpush2.msra.mxu0 0.0
      %3748 = vmatprep.subr.mxu0 0.0
      %3749 = vmatpush2.msra.mxu0 0.0
      %3750 = vmatprep.subr.mxu0 0.0
      %3751 = vmatpush2.msra.mxu0 0.0
      %3752 = vmatprep.subr.mxu0 0.0
      %3753 = vmatpush2.msra.mxu0 0.0
      %3754 = vmatprep.subr.mxu0 0.0
      %3755 = vmatpush2.msra.mxu0 0.0
      %3756 = vmatprep.mubr.f32.mxu0 0.0
      %3757 = vmatmul.mubr.f32.gmra.mxu0 %v3690
      %v3758 = vpop.f32.mrf.mxu0
      %v3759 = vadd.f32 0.0, %v3758
      %v3760 = vpop.f32.mrf.mxu0
      %3761 = vdwg.mxu0
      %v3763 = vsel %vm1437, %v3614, 0
      %3765 = vmatprep.subr.mxu0 0.0
      %3766 = vmatpush1.msra.mxu0 0.0
      %3767 = vmatprep.subr.mxu0 0.0
      %3768 = vmatpush1.msra.mxu0 0.0
      %3769 = vmatprep.subr.mxu0 0.0
      %3770 = vmatpush1.msra.mxu0 0.0
      %3771 = vmatprep.subr.mxu0 0.0
      %3772 = vmatpush1.msra.mxu0 0.0
      %3773 = vmatprep.subr.mxu0 0.0
      %3774 = vmatpush1.msra.mxu0 0.0
      %3775 = vmatprep.subr.mxu0 0.0
      %3776 = vmatpush1.msra.mxu0 0.0
      %3777 = vmatprep.subr.mxu0 0.0
      %3778 = vmatpush1.msra.mxu0 0.0
      %3779 = vmatprep.subr.mxu0 0.0
      %3780 = vmatpush1.msra.mxu0 0.0
      %3781 = vmatprep.subr.mxu0 0.0
      %3782 = vmatpush1.msra.mxu0 0.0
      %3783 = vmatprep.subr.mxu0 0.0
      %3784 = vmatpush1.msra.mxu0 0.0
      %3785 = vmatprep.subr.mxu0 0.0
      %3786 = vmatpush1.msra.mxu0 0.0
      %3787 = vmatprep.subr.mxu0 0.0
      %3788 = vmatpush1.msra.mxu0 0.0
      %3789 = vmatprep.subr.mxu0 0.0
      %3790 = vmatpush1.msra.mxu0 0.0
      %3791 = vmatprep.subr.mxu0 0.0
      %3792 = vmatpush1.msra.mxu0 0.0
      %3793 = vmatprep.subr.mxu0 0.0
      %3794 = vmatpush1.msra.mxu0 0.0
      %3795 = vmatprep.subr.mxu0 0.0
      %3796 = vmatpush1.msra.mxu0 %v3211
      %3797 = vmatprep.subr.mxu0 0.0
      %3798 = vmatpush2.msra.mxu0 0.0
      %3799 = vmatprep.subr.mxu0 0.0
      %3800 = vmatpush2.msra.mxu0 0.0
      %3801 = vmatprep.subr.mxu0 0.0
      %3802 = vmatpush2.msra.mxu0 0.0
      %3803 = vmatprep.subr.mxu0 0.0
      %3804 = vmatpush2.msra.mxu0 0.0
      %3805 = vmatprep.subr.mxu0 0.0
      %3806 = vmatpush2.msra.mxu0 0.0
      %3807 = vmatprep.subr.mxu0 0.0
      %3808 = vmatpush2.msra.mxu0 0.0
      %3809 = vmatprep.subr.mxu0 0.0
      %3810 = vmatpush2.msra.mxu0 0.0
      %3811 = vmatprep.subr.mxu0 0.0
      %3812 = vmatpush2.msra.mxu0 0.0
      %3813 = vmatprep.subr.mxu0 0.0
      %3814 = vmatpush2.msra.mxu0 0.0
      %3815 = vmatprep.subr.mxu0 0.0
      %3816 = vmatpush2.msra.mxu0 0.0
      %3817 = vmatprep.subr.mxu0 0.0
      %3818 = vmatpush2.msra.mxu0 0.0
      %3819 = vmatprep.subr.mxu0 0.0
      %3820 = vmatpush2.msra.mxu0 0.0
      %3821 = vmatprep.subr.mxu0 0.0
      %3822 = vmatpush2.msra.mxu0 0.0
      %3823 = vmatprep.subr.mxu0 0.0
      %3824 = vmatpush2.msra.mxu0 0.0
      %3825 = vmatprep.subr.mxu0 0.0
      %3826 = vmatpush2.msra.mxu0 0.0
      %3827 = vmatprep.subr.mxu0 0.0
      %3828 = vmatpush2.msra.mxu0 0.0
      %3829 = vmatprep.mubr.f32.mxu0 0.0
      %3830 = vmatmul.mubr.f32.gmra.mxu0 %v3763
      %v3831 = vpop.f32.mrf.mxu0
      %v3832 = vadd.f32 0.0, %v3831
      %v3833 = vpop.f32.mrf.mxu0
      %3834 = vdwg.mxu0
      %v3836 = vsel %vm1437, %v3615, 0
      %3838 = vmatprep.subr.mxu0 0.0
      %3839 = vmatpush1.msra.mxu0 0.0
      %3840 = vmatprep.subr.mxu0 0.0
      %3841 = vmatpush1.msra.mxu0 0.0
      %3842 = vmatprep.subr.mxu0 0.0
      %3843 = vmatpush1.msra.mxu0 0.0
      %3844 = vmatprep.subr.mxu0 0.0
      %3845 = vmatpush1.msra.mxu0 0.0
      %3846 = vmatprep.subr.mxu0 0.0
      %3847 = vmatpush1.msra.mxu0 0.0
      %3848 = vmatprep.subr.mxu0 0.0
      %3849 = vmatpush1.msra.mxu0 0.0
      %3850 = vmatprep.subr.mxu0 0.0
      %3851 = vmatpush1.msra.mxu0 0.0
      %3852 = vmatprep.subr.mxu0 0.0
      %3853 = vmatpush1.msra.mxu0 0.0
      %3854 = vmatprep.subr.mxu0 0.0
      %3855 = vmatpush1.msra.mxu0 0.0
      %3856 = vmatprep.subr.mxu0 0.0
      %3857 = vmatpush1.msra.mxu0 0.0
      %3858 = vmatprep.subr.mxu0 0.0
      %3859 = vmatpush1.msra.mxu0 0.0
      %3860 = vmatprep.subr.mxu0 0.0
      %3861 = vmatpush1.msra.mxu0 0.0
      %3862 = vmatprep.subr.mxu0 0.0
      %3863 = vmatpush1.msra.mxu0 0.0
      %3864 = vmatprep.subr.mxu0 0.0
      %3865 = vmatpush1.msra.mxu0 0.0
      %3866 = vmatprep.subr.mxu0 0.0
      %3867 = vmatpush1.msra.mxu0 0.0
      %3868 = vmatprep.subr.mxu0 0.0
      %3869 = vmatpush1.msra.mxu0 %v3263
      %3870 = vmatprep.subr.mxu0 0.0
      %3871 = vmatpush2.msra.mxu0 0.0
      %3872 = vmatprep.subr.mxu0 0.0
      %3873 = vmatpush2.msra.mxu0 0.0
      %3874 = vmatprep.subr.mxu0 0.0
      %3875 = vmatpush2.msra.mxu0 0.0
      %3876 = vmatprep.subr.mxu0 0.0
      %3877 = vmatpush2.msra.mxu0 0.0
      %3878 = vmatprep.subr.mxu0 0.0
      %3879 = vmatpush2.msra.mxu0 0.0
      %3880 = vmatprep.subr.mxu0 0.0
      %3881 = vmatpush2.msra.mxu0 0.0
      %3882 = vmatprep.subr.mxu0 0.0
      %3883 = vmatpush2.msra.mxu0 0.0
      %3884 = vmatprep.subr.mxu0 0.0
      %3885 = vmatpush2.msra.mxu0 0.0
      %3886 = vmatprep.subr.mxu0 0.0
      %3887 = vmatpush2.msra.mxu0 0.0
      %3888 = vmatprep.subr.mxu0 0.0
      %3889 = vmatpush2.msra.mxu0 0.0
      %3890 = vmatprep.subr.mxu0 0.0
      %3891 = vmatpush2.msra.mxu0 0.0
      %3892 = vmatprep.subr.mxu0 0.0
      %3893 = vmatpush2.msra.mxu0 0.0
      %3894 = vmatprep.subr.mxu0 0.0
      %3895 = vmatpush2.msra.mxu0 0.0
      %3896 = vmatprep.subr.mxu0 0.0
      %3897 = vmatpush2.msra.mxu0 0.0
      %3898 = vmatprep.subr.mxu0 0.0
      %3899 = vmatpush2.msra.mxu0 0.0
      %3900 = vmatprep.subr.mxu0 0.0
      %3901 = vmatpush2.msra.mxu0 0.0
      %3902 = vmatprep.mubr.f32.mxu0 0.0
      %3903 = vmatmul.mubr.f32.gmra.mxu0 %v3836
      %v3904 = vpop.f32.mrf.mxu0
      %v3905 = vadd.f32 0.0, %v3904
      %v3906 = vpop.f32.mrf.mxu0
      %3907 = vdwg.mxu0
      %v3908 = vpack.c.bf16 %v3686, %v3686
      %v3909 = vpack.c.bf16 %v3759, %v3759
      %v3910 = vpack.c.bf16 %v3832, %v3832
      %v3911 = vpack.c.bf16 %v3905, %v3905
      %s3912 = scalar_lea.vmem %s6, 16
      %v3913 = vld [vmem:[%s3912] sm:$0xf]
      %v3914 = vld [vmem:[%s3912 + $0x4] sm:$0xf]
      %v3915 = vld [vmem:[%s3912 + $0x8] sm:$0xf]
      %v3916 = vld [vmem:[%s3912 + $0xc] sm:$0xf]
      %v3918 = vsel %vm1437, %v3908, 0
      %v3921 = vsel %vm2089, %v3913, 0
      %3923 = vmatprep.subr.bf16.mxu0 0
      %3924 = vmatpush1.bf16.msra.mxu0 0
      %3925 = vmatprep.subr.bf16.mxu0 0
      %3926 = vmatpush1.bf16.msra.mxu0 0
      %3927 = vmatprep.subr.bf16.mxu0 0
      %3928 = vmatpush1.bf16.msra.mxu0 0
      %3929 = vmatprep.subr.bf16.mxu0 0
      %3930 = vmatpush1.bf16.msra.mxu0 0
      %3931 = vmatprep.subr.bf16.mxu0 0
      %3932 = vmatpush1.bf16.msra.mxu0 0
      %3933 = vmatprep.subr.bf16.mxu0 0
      %3934 = vmatpush1.bf16.msra.mxu0 0
      %3935 = vmatprep.subr.bf16.mxu0 0
      %3936 = vmatpush1.bf16.msra.mxu0 0
      %3937 = vmatprep.subr.bf16.mxu0 0
      %3938 = vmatpush1.bf16.msra.mxu0 %v3921
      %3939 = vmatprep.subr.bf16.mxu0 0
      %3940 = vmatpush2.bf16.msra.mxu0 0
      %3941 = vmatprep.subr.bf16.mxu0 0
      %3942 = vmatpush2.bf16.msra.mxu0 0
      %3943 = vmatprep.subr.bf16.mxu0 0
      %3944 = vmatpush2.bf16.msra.mxu0 0
      %3945 = vmatprep.subr.bf16.mxu0 0
      %3946 = vmatpush2.bf16.msra.mxu0 0
      %3947 = vmatprep.subr.bf16.mxu0 0
      %3948 = vmatpush2.bf16.msra.mxu0 0
      %3949 = vmatprep.subr.bf16.mxu0 0
      %3950 = vmatpush2.bf16.msra.mxu0 0
      %3951 = vmatprep.subr.bf16.mxu0 0
      %3952 = vmatpush2.bf16.msra.mxu0 0
      %3953 = vmatprep.subr.bf16.mxu0 0
      %3954 = vmatpush2.bf16.msra.mxu0 0
      %3955 = vmatprep.mubr.bf16.mxu0 0
      %3956 = vmatmul.mubr.bf16.gmra.mxu0 %v3918
      %v3957 = vpop.f32.mrf.mxu0
      %v3958 = vadd.f32 0.0, %v3957
      %v3959 = vpop.f32.mrf.mxu0
      %v3960 = vpop.f32.mrf.mxu0
      %v3961 = vpop.f32.mrf.mxu0
      %3962 = vdwg.mxu0
      %v3964 = vsel %vm1437, %v3909, 0
      %v3967 = vsel %vm2089, %v3914, 0
      %3969 = vmatprep.subr.bf16.mxu0 0
      %3970 = vmatpush1.bf16.msra.mxu0 0
      %3971 = vmatprep.subr.bf16.mxu0 0
      %3972 = vmatpush1.bf16.msra.mxu0 0
      %3973 = vmatprep.subr.bf16.mxu0 0
      %3974 = vmatpush1.bf16.msra.mxu0 0
      %3975 = vmatprep.subr.bf16.mxu0 0
      %3976 = vmatpush1.bf16.msra.mxu0 0
      %3977 = vmatprep.subr.bf16.mxu0 0
      %3978 = vmatpush1.bf16.msra.mxu0 0
      %3979 = vmatprep.subr.bf16.mxu0 0
      %3980 = vmatpush1.bf16.msra.mxu0 0
      %3981 = vmatprep.subr.bf16.mxu0 0
      %3982 = vmatpush1.bf16.msra.mxu0 0
      %3983 = vmatprep.subr.bf16.mxu0 0
      %3984 = vmatpush1.bf16.msra.mxu0 %v3967
      %3985 = vmatprep.subr.bf16.mxu0 0
      %3986 = vmatpush2.bf16.msra.mxu0 0
      %3987 = vmatprep.subr.bf16.mxu0 0
      %3988 = vmatpush2.bf16.msra.mxu0 0
      %3989 = vmatprep.subr.bf16.mxu0 0
      %3990 = vmatpush2.bf16.msra.mxu0 0
      %3991 = vmatprep.subr.bf16.mxu0 0
      %3992 = vmatpush2.bf16.msra.mxu0 0
      %3993 = vmatprep.subr.bf16.mxu0 0
      %3994 = vmatpush2.bf16.msra.mxu0 0
      %3995 = vmatprep.subr.bf16.mxu0 0
      %3996 = vmatpush2.bf16.msra.mxu0 0
      %3997 = vmatprep.subr.bf16.mxu0 0
      %3998 = vmatpush2.bf16.msra.mxu0 0
      %3999 = vmatprep.subr.bf16.mxu0 0
      %4000 = vmatpush2.bf16.msra.mxu0 0
      %4001 = vmatprep.mubr.bf16.mxu0 0
      %4002 = vmatmul.mubr.bf16.gmra.mxu0 %v3964
      %v4003 = vpop.f32.mrf.mxu0
      %v4004 = vadd.f32 0.0, %v4003
      %v4005 = vpop.f32.mrf.mxu0
      %v4006 = vpop.f32.mrf.mxu0
      %v4007 = vpop.f32.mrf.mxu0
      %4008 = vdwg.mxu0
      %v4010 = vsel %vm1437, %v3910, 0
      %v4013 = vsel %vm2089, %v3915, 0
      %4015 = vmatprep.subr.bf16.mxu0 0
      %4016 = vmatpush1.bf16.msra.mxu0 0
      %4017 = vmatprep.subr.bf16.mxu0 0
      %4018 = vmatpush1.bf16.msra.mxu0 0
      %4019 = vmatprep.subr.bf16.mxu0 0
      %4020 = vmatpush1.bf16.msra.mxu0 0
      %4021 = vmatprep.subr.bf16.mxu0 0
      %4022 = vmatpush1.bf16.msra.mxu0 0
      %4023 = vmatprep.subr.bf16.mxu0 0
      %4024 = vmatpush1.bf16.msra.mxu0 0
      %4025 = vmatprep.subr.bf16.mxu0 0
      %4026 = vmatpush1.bf16.msra.mxu0 0
      %4027 = vmatprep.subr.bf16.mxu0 0
      %4028 = vmatpush1.bf16.msra.mxu0 0
      %4029 = vmatprep.subr.bf16.mxu0 0
      %4030 = vmatpush1.bf16.msra.mxu0 %v4013
      %4031 = vmatprep.subr.bf16.mxu0 0
      %4032 = vmatpush2.bf16.msra.mxu0 0
      %4033 = vmatprep.subr.bf16.mxu0 0
      %4034 = vmatpush2.bf16.msra.mxu0 0
      %4035 = vmatprep.subr.bf16.mxu0 0
      %4036 = vmatpush2.bf16.msra.mxu0 0
      %4037 = vmatprep.subr.bf16.mxu0 0
      %4038 = vmatpush2.bf16.msra.mxu0 0
      %4039 = vmatprep.subr.bf16.mxu0 0
      %4040 = vmatpush2.bf16.msra.mxu0 0
      %4041 = vmatprep.subr.bf16.mxu0 0
      %4042 = vmatpush2.bf16.msra.mxu0 0
      %4043 = vmatprep.subr.bf16.mxu0 0
      %4044 = vmatpush2.bf16.msra.mxu0 0
      %4045 = vmatprep.subr.bf16.mxu0 0
      %4046 = vmatpush2.bf16.msra.mxu0 0
      %4047 = vmatprep.mubr.bf16.mxu0 0
      %4048 = vmatmul.mubr.bf16.gmra.mxu0 %v4010
      %v4049 = vpop.f32.mrf.mxu0
      %v4050 = vadd.f32 0.0, %v4049
      %v4051 = vpop.f32.mrf.mxu0
      %v4052 = vpop.f32.mrf.mxu0
      %v4053 = vpop.f32.mrf.mxu0
      %4054 = vdwg.mxu0
      %v4056 = vsel %vm1437, %v3911, 0
      %v4059 = vsel %vm2089, %v3916, 0
      %4061 = vmatprep.subr.bf16.mxu0 0
      %4062 = vmatpush1.bf16.msra.mxu0 0
      %4063 = vmatprep.subr.bf16.mxu0 0
      %4064 = vmatpush1.bf16.msra.mxu0 0
      %4065 = vmatprep.subr.bf16.mxu0 0
      %4066 = vmatpush1.bf16.msra.mxu0 0
      %4067 = vmatprep.subr.bf16.mxu0 0
      %4068 = vmatpush1.bf16.msra.mxu0 0
      %4069 = vmatprep.subr.bf16.mxu0 0
      %4070 = vmatpush1.bf16.msra.mxu0 0
      %4071 = vmatprep.subr.bf16.mxu0 0
      %4072 = vmatpush1.bf16.msra.mxu0 0
      %4073 = vmatprep.subr.bf16.mxu0 0
      %4074 = vmatpush1.bf16.msra.mxu0 0
      %4075 = vmatprep.subr.bf16.mxu0 0
      %4076 = vmatpush1.bf16.msra.mxu0 %v4059
      %4077 = vmatprep.subr.bf16.mxu0 0
      %4078 = vmatpush2.bf16.msra.mxu0 0
      %4079 = vmatprep.subr.bf16.mxu0 0
      %4080 = vmatpush2.bf16.msra.mxu0 0
      %4081 = vmatprep.subr.bf16.mxu0 0
      %4082 = vmatpush2.bf16.msra.mxu0 0
      %4083 = vmatprep.subr.bf16.mxu0 0
      %4084 = vmatpush2.bf16.msra.mxu0 0
      %4085 = vmatprep.subr.bf16.mxu0 0
      %4086 = vmatpush2.bf16.msra.mxu0 0
      %4087 = vmatprep.subr.bf16.mxu0 0
      %4088 = vmatpush2.bf16.msra.mxu0 0
      %4089 = vmatprep.subr.bf16.mxu0 0
      %4090 = vmatpush2.bf16.msra.mxu0 0
      %4091 = vmatprep.subr.bf16.mxu0 0
      %4092 = vmatpush2.bf16.msra.mxu0 0
      %4093 = vmatprep.mubr.bf16.mxu0 0
      %4094 = vmatmul.mubr.bf16.gmra.mxu0 %v4056
      %v4095 = vpop.f32.mrf.mxu0
      %v4096 = vadd.f32 0.0, %v4095
      %v4097 = vpop.f32.mrf.mxu0
      %v4098 = vpop.f32.mrf.mxu0
      %v4099 = vpop.f32.mrf.mxu0
      %4100 = vdwg.mxu0
      %v4101 = vsel %vm641, %v3958, 0.0
      %v4102 = vsel %vm641, %v4004, 0.0
      %v4103 = vadd.f32 %v4101, %v4102
      %v4104 = vsel %vm641, %v4050, 0.0
      %v4105 = vadd.f32 %v4103, %v4104
      %v4106 = vsel %vm641, %v4096, 0.0
      %v4107 = vadd.f32 %v4105, %v4106
      %s4108 = scalar_lea.vmem %s7, 1
      %v4109 = vld [vmem:[%s4108] sm:$0x1]
      %v4111 = vlaneseq
      %v4112 = vshrl.u32 %v4111, 7
      %v4113 = vsub.s32 0, %v4112
      %v4114 = vrot.slane %v4109, %v4113
      %v4116 = vadd.f32 %v4107, %v4114
      %v4117 = vadd.f32 %v2505, %v4116
      %s4118 = scalar_lea.vmem %s8, 1
      %v4119 = vld [vmem:[%s4118] sm:$0x1]
      %s4120 = scalar_lea.vmem %s9, 1
      %v4121 = vld [vmem:[%s4120] sm:$0x1]
      %v4122 = vsel %vm641, %v4117, 0.0
      %4123 = vadd.xlane.f32.xlu0 %v4122
      %v4124 = vpop.xlane.xlu0 %4123
      %v4125 = vmul.f32 %v4124, %v645
      %v4126 = vsub.f32 %v4117, %v4125
      %v4127 = vmul.f32 %v4126, %v4126
      %v4128 = vsel %vm641, %v4127, 0.0
      %4129 = vadd.xlane.f32.xlu0 %v4128
      %v4130 = vpop.xlane.xlu0 %4129
      %v4131 = vmul.f32 %v4130, %v645
      %v4132 = vadd.f32 %v4131, 1e-12
      %v4133 = vrsqrt.pop %v4132
      %v4134 = vmul.f32 %v4126, %v4133
      %v4136 = vlaneseq
      %v4137 = vshrl.u32 %v4136, 7
      %v4138 = vsub.s32 0, %v4137
      %v4139 = vrot.slane %v4119, %v4138
      %v4141 = vmul.f32 %v4134, %v4139
      %v4143 = vlaneseq
      %v4144 = vshrl.u32 %v4143, 7
      %v4145 = vsub.s32 0, %v4144
      %v4146 = vrot.slane %v4121, %v4145
      %v4148 = vadd.f32 %v4141, %v4146
      %s4149 = scalar_lea.vmem %s10, 16
      %v4150 = vld [vmem:[%s4149] sm:$0xf]
      %v4151 = vld [vmem:[%s4149 + $0x4] sm:$0xf]
      %v4152 = vld [vmem:[%s4149 + $0x8] sm:$0xf]
      %v4153 = vld [vmem:[%s4149 + $0xc] sm:$0xf]
      %s4154 = scalar_lea.vmem %s11, 1
      %v4155 = vld [vmem:[%s4154] sm:$0x1]
      %v4156 = vpack.c.bf16 %v4148, %v4148
      %v4158 = vlaneseq
      %v4159 = vshrl.u32 %v4158, 7
      %v4160 = vsub.s32 0, %v4159
      %v4161 = vrot.slane %v4155, %v4160
      %v4167 = vunpack.c.l.b16 %v4150
      %v4168 = vunpack.c.l.b16 %v4151
      %v4169 = vunpack.c.l.b16 %v4152
      %v4170 = vunpack.c.l.b16 %v4153
      %v4171 = vpack.c.b16 %v4168, %v4167
      %v4172 = vpack.c.b16 %v4170, %v4169
      %v4176 = vsel %vm641, %v4156, 0
      %4178 = vmatprep.subr.bf16.mxu0 0
      %4179 = vmatpush1.bf16.msra.mxu0 0
      %4180 = vmatprep.subr.bf16.mxu0 0
      %4181 = vmatpush1.bf16.msra.mxu0 0
      %4182 = vmatprep.subr.bf16.mxu0 0
      %4183 = vmatpush1.bf16.msra.mxu0 0
      %4184 = vmatprep.subr.bf16.mxu0 0
      %4185 = vmatpush1.bf16.msra.mxu0 0
      %4186 = vmatprep.subr.bf16.mxu0 0
      %4187 = vmatpush1.bf16.msra.mxu0 0
      %4188 = vmatprep.subr.bf16.mxu0 0
      %4189 = vmatpush1.bf16.msra.mxu0 0
      %4190 = vmatprep.subr.bf16.mxu0 0
      %4191 = vmatpush1.bf16.msra.mxu0 %v4172
      %4192 = vmatprep.subr.bf16.mxu0 0
      %4193 = vmatpush1.bf16.msra.mxu0 %v4171
      %4194 = vmatprep.subr.bf16.mxu0 0
      %4195 = vmatpush2.bf16.msra.mxu0 0
      %4196 = vmatprep.subr.bf16.mxu0 0
      %4197 = vmatpush2.bf16.msra.mxu0 0
      %4198 = vmatprep.subr.bf16.mxu0 0
      %4199 = vmatpush2.bf16.msra.mxu0 0
      %4200 = vmatprep.subr.bf16.mxu0 0
      %4201 = vmatpush2.bf16.msra.mxu0 0
      %4202 = vmatprep.subr.bf16.mxu0 0
      %4203 = vmatpush2.bf16.msra.mxu0 0
      %4204 = vmatprep.subr.bf16.mxu0 0
      %4205 = vmatpush2.bf16.msra.mxu0 0
      %4206 = vmatprep.subr.bf16.mxu0 0
      %4207 = vmatpush2.bf16.msra.mxu0 0
      %4208 = vmatprep.subr.bf16.mxu0 0
      %4209 = vmatpush2.bf16.msra.mxu0 0
      %4210 = vmatprep.mubr.bf16.mxu0 0
      %4211 = vmatmul.mubr.bf16.gmra.mxu0 %v4176
      %v4212 = vpop.f32.mrf.mxu0
      %v4213 = vadd.f32 %v4161, %v4212
      %v4214 = vpop.f32.mrf.mxu0
      %v4215 = vpop.f32.mrf.mxu0
      %v4216 = vpop.f32.mrf.mxu0
      %4217 = vdwg.mxu0
      %v4218 = vmul.f32 %v4213, %v4213
      %v4219 = vmul.f32 %v4213, %v4218
      %v4220 = vmul.f32 %v4219, 0.044715
      %v4221 = vadd.f32 %v4213, %v4220
      %v4222 = vmul.f32 %v4221, 0.7978846
      %v4223 = vtanh.pop %v4222
      %v4224 = vadd.f32 %v4223, 1.0
      %v4225 = vmul.f32 %v4224, 0.5
      %v4226 = vmul.f32 %v4213, %v4225
      %s4227 = scalar_lea.vmem %s12, 32
      %v4228 = vld [vmem:[%s4227] sm:$0xf]
      %v4229 = vld [vmem:[%s4227 + $0x4] sm:$0xf]
      %v4230 = vld [vmem:[%s4227 + $0x8] sm:$0xf]
      %v4231 = vld [vmem:[%s4227 + $0xc] sm:$0xf]
      %v4232 = vld [vmem:[%s4227 + $0x10] sm:$0xf]
      %v4233 = vld [vmem:[%s4227 + $0x14] sm:$0xf]
      %v4234 = vld [vmem:[%s4227 + $0x18] sm:$0xf]
      %v4235 = vld [vmem:[%s4227 + $0x1c] sm:$0xf]
      %s4236 = scalar_lea.vmem %s13, 1
      %v4237 = vld [vmem:[%s4236] sm:$0x1]
      %v4238 = vpack.c.bf16 %v4226, %v4226
      %v4240 = vlaneseq
      %v4241 = vshrl.u32 %v4240, 7
      %v4242 = vsub.s32 0, %v4241
      %v4243 = vrot.slane %v4237, %v4242
      %v4253 = vunpack.c.l.b16 %v4228
      %v4254 = vunpack.c.l.b16 %v4229
      %v4255 = vunpack.c.l.b16 %v4230
      %v4256 = vunpack.c.l.b16 %v4231
      %v4257 = vunpack.c.l.b16 %v4232
      %v4258 = vunpack.c.l.b16 %v4233
      %v4259 = vunpack.c.l.b16 %v4234
      %v4260 = vunpack.c.l.b16 %v4235
      %v4261 = vpack.c.b16 %v4254, %v4253
      %v4262 = vpack.c.b16 %v4256, %v4255
      %v4263 = vpack.c.b16 %v4258, %v4257
      %v4264 = vpack.c.b16 %v4260, %v4259
      %v4270 = vsel %vm2432, %v4238, 0
      %4272 = vmatprep.subr.bf16.mxu0 0
      %4273 = vmatpush1.bf16.msra.mxu0 0
      %4274 = vmatprep.subr.bf16.mxu0 0
      %4275 = vmatpush1.bf16.msra.mxu0 0
      %4276 = vmatprep.subr.bf16.mxu0 0
      %4277 = vmatpush1.bf16.msra.mxu0 0
      %4278 = vmatprep.subr.bf16.mxu0 0
      %4279 = vmatpush1.bf16.msra.mxu0 0
      %4280 = vmatprep.subr.bf16.mxu0 0
      %4281 = vmatpush1.bf16.msra.mxu0 %v4264
      %4282 = vmatprep.subr.bf16.mxu0 0
      %4283 = vmatpush1.bf16.msra.mxu0 %v4263
      %4284 = vmatprep.subr.bf16.mxu0 0
      %4285 = vmatpush1.bf16.msra.mxu0 %v4262
      %4286 = vmatprep.subr.bf16.mxu0 0
      %4287 = vmatpush1.bf16.msra.mxu0 %v4261
      %4288 = vmatprep.subr.bf16.mxu0 0
      %4289 = vmatpush2.bf16.msra.mxu0 0
      %4290 = vmatprep.subr.bf16.mxu0 0
      %4291 = vmatpush2.bf16.msra.mxu0 0
      %4292 = vmatprep.subr.bf16.mxu0 0
      %4293 = vmatpush2.bf16.msra.mxu0 0
      %4294 = vmatprep.subr.bf16.mxu0 0
      %4295 = vmatpush2.bf16.msra.mxu0 0
      %4296 = vmatprep.subr.bf16.mxu0 0
      %4297 = vmatpush2.bf16.msra.mxu0 0
      %4298 = vmatprep.subr.bf16.mxu0 0
      %4299 = vmatpush2.bf16.msra.mxu0 0
      %4300 = vmatprep.subr.bf16.mxu0 0
      %4301 = vmatpush2.bf16.msra.mxu0 0
      %4302 = vmatprep.subr.bf16.mxu0 0
      %4303 = vmatpush2.bf16.msra.mxu0 0
      %4304 = vmatprep.mubr.bf16.mxu0 0
      %4305 = vmatmul.mubr.bf16.gmra.mxu0 %v4270
      %v4306 = vpop.f32.mrf.mxu0
      %v4307 = vadd.f32 %v4243, %v4306
      %v4308 = vpop.f32.mrf.mxu0
      %v4309 = vpop.f32.mrf.mxu0
      %v4310 = vpop.f32.mrf.mxu0
      %4311 = vdwg.mxu0
      %v4312 = vadd.f32 %v4148, %v4307
      %s4313 = scalar_lea.vmem %s14, 1
      %v4314 = vld [vmem:[%s4313] sm:$0x1]
      %s4315 = scalar_lea.vmem %s15, 1
      %v4316 = vld [vmem:[%s4315] sm:$0x1]
      %v4317 = vsel %vm641, %v4312, 0.0
      %4318 = vadd.xlane.f32.xlu0 %v4317
      %v4319 = vpop.xlane.xlu0 %4318
      %v4320 = vmul.f32 %v4319, %v645
      %v4321 = vsub.f32 %v4312, %v4320
      %v4322 = vmul.f32 %v4321, %v4321
      %v4323 = vsel %vm641, %v4322, 0.0
      %4324 = vadd.xlane.f32.xlu0 %v4323
      %v4325 = vpop.xlane.xlu0 %4324
      %v4326 = vmul.f32 %v4325, %v645
      %v4327 = vadd.f32 %v4326, 1e-12
      %v4328 = vrsqrt.pop %v4327
      %v4329 = vmul.f32 %v4321, %v4328
      %v4331 = vlaneseq
      %v4332 = vshrl.u32 %v4331, 7
      %v4333 = vsub.s32 0, %v4332
      %v4334 = vrot.slane %v4314, %v4333
      %v4336 = vmul.f32 %v4329, %v4334
      %v4338 = vlaneseq
      %v4339 = vshrl.u32 %v4338, 7
      %v4340 = vsub.s32 0, %v4339
      %v4341 = vrot.slane %v4316, %v4340
      %v4343 = vadd.f32 %v4336, %v4341
      %v4344 = vld [vmem:[%s16] sm:$0x1]
      %v4345 = vld [vmem:[%s17] sm:$0x1]
      %vm4346 = vcmask 253952
      %v4347 = vsel %vm4346, %v4343, 0.0
      %4348 = vadd.xlane.f32.xlu0 %v4347
      %v4349 = vpop.xlane.xlu0 %4348
      %v4350 = vmul.f32 %v4349, %v645
      %v4351 = vsub.f32 %v4343, %v4350
      %v4352 = vmul.f32 %v4351, %v4351
      %v4353 = vsel %vm4346, %v4352, 0.0
      %4354 = vadd.xlane.f32.xlu0 %v4353
      %v4355 = vpop.xlane.xlu0 %4354
      %v4356 = vmul.f32 %v4355, %v645
      %v4357 = vadd.f32 %v4356, 1e-12
      %v4358 = vrsqrt.pop %v4357
      %v4359 = vmul.f32 %v4351, %v4358
      %v4360 = vmul.f32 %v4359, %v4344
      %v4361 = vadd.f32 %v4360, %v4345
      %v4362 = vld [vmem:[%s18] sm:$0xf]
      %v4363 = vld [vmem:[%s18 + $0x4] sm:$0xf]
      %v4364 = vld [vmem:[%s18 + $0x8] sm:$0xf]
      %v4365 = vld [vmem:[%s18 + $0xc] sm:$0xf]
      %v4366 = vld [vmem:[%s19] sm:$0x1]
      %v4367 = vpack.c.bf16 %v4361, %v4361
      %v4372 = vunpack.c.l.b16 %v4362
      %v4373 = vunpack.c.l.b16 %v4363
      %v4374 = vunpack.c.l.b16 %v4364
      %v4375 = vunpack.c.l.b16 %v4365
      %v4376 = vpack.c.b16 %v4373, %v4372
      %v4377 = vpack.c.b16 %v4375, %v4374
      %v4381 = vsel %vm641, %v4367, 0
      %4383 = vmatprep.subr.bf16.mxu0 0
      %4384 = vmatpush1.bf16.msra.mxu0 0
      %4385 = vmatprep.subr.bf16.mxu0 0
      %4386 = vmatpush1.bf16.msra.mxu0 0
      %4387 = vmatprep.subr.bf16.mxu0 0
      %4388 = vmatpush1.bf16.msra.mxu0 0
      %4389 = vmatprep.subr.bf16.mxu0 0
      %4390 = vmatpush1.bf16.msra.mxu0 0
      %4391 = vmatprep.subr.bf16.mxu0 0
      %4392 = vmatpush1.bf16.msra.mxu0 0
      %4393 = vmatprep.subr.bf16.mxu0 0
      %4394 = vmatpush1.bf16.msra.mxu0 0
      %4395 = vmatprep.subr.bf16.mxu0 0
      %4396 = vmatpush1.bf16.msra.mxu0 %v4377
      %4397 = vmatprep.subr.bf16.mxu0 0
      %4398 = vmatpush1.bf16.msra.mxu0 %v4376
      %4399 = vmatprep.subr.bf16.mxu0 0
      %4400 = vmatpush2.bf16.msra.mxu0 0
      %4401 = vmatprep.subr.bf16.mxu0 0
      %4402 = vmatpush2.bf16.msra.mxu0 0
      %4403 = vmatprep.subr.bf16.mxu0 0
      %4404 = vmatpush2.bf16.msra.mxu0 0
      %4405 = vmatprep.subr.bf16.mxu0 0
      %4406 = vmatpush2.bf16.msra.mxu0 0
      %4407 = vmatprep.subr.bf16.mxu0 0
      %4408 = vmatpush2.bf16.msra.mxu0 0
      %4409 = vmatprep.subr.bf16.mxu0 0
      %4410 = vmatpush2.bf16.msra.mxu0 0
      %4411 = vmatprep.subr.bf16.mxu0 0
      %4412 = vmatpush2.bf16.msra.mxu0 0
      %4413 = vmatprep.subr.bf16.mxu0 0
      %4414 = vmatpush2.bf16.msra.mxu0 0
      %4415 = vmatprep.mubr.bf16.mxu0 0
      %4416 = vmatmul.mubr.bf16.gmra.mxu0 %v4381
      %v4417 = vpop.f32.mrf.mxu0
      %v4418 = vadd.f32 %v4366, %v4417
      %v4419 = vpop.f32.mrf.mxu0
      %v4420 = vpop.f32.mrf.mxu0
      %v4421 = vpop.f32.mrf.mxu0
      %4422 = vdwg.mxu0
      %4424 = vrot.lane.b32.xlu0 %v4418, 32
      %v4425 = vpop.permute.xlu0 %4424
      %v4427 = vsel %vm641, %v4343, %v4425
      %vm4428 = vcmask 286720
      %4429 = vst.msk [vmem:[%s636] sm:$0x1] %vm4428, %v4427
      %p4430 = scmp.lt.s32.totalorder %s31, 1
      %s4431 = scalar_select %p4430, %s31, 1
      %s4432 = scalar_lea.vmem %s20, %s4431
      // Predicated region
      $region101: #{_lambda_.1} parent=99 // pred_check
        %p4433 = pneg %p479
      $region102: #{_lambda_.1} parent=99 // pred_check_branch
        %4435 = sbr.rel (%p4433) target = $region104
      $region103: #{_lambda_.1} parent=99 // pred_region
        _
      $region104: #{_lambda_.1} parent=99 // pred_fallthru
        _
    $region100: #{_lambda_.1} parent=5 // pred_fallthru
      _
    %p4436 = scmp.le.s32.totalorder 2, %s26
    // Predicated region
    $region105: #{_lambda_.1} parent=5 // pred_check
      %p4437 = pneg %p4436
    $region106: #{_lambda_.1} parent=5 // pred_check_branch
      %4439 = sbr.rel (%p4437) target = $region108
    $region107: #{_lambda_.1} parent=5 // pred_region
      %s4440 = ssub.s32 %s26, 2
      // Predicated region
      $region109: #{_lambda_.1} parent=107 // pred_check
        %p4441 = pneg %p485
      $region110: #{_lambda_.1} parent=107 // pred_check_branch
        %4443 = sbr.rel (%p4441) target = $region112
      $region111: #{_lambda_.1} parent=107 // pred_region
        %p4444 = scmp.lt.s32.totalorder %s32, 1
        %s4445 = scalar_select %p4444, %s32, 1
        %s4446 = scalar_lea.vmem %s20, %s4445
      $region112: #{_lambda_.1} parent=107 // pred_fallthru
        _
    $region108: #{_lambda_.1} parent=5 // pred_fallthru
      _
  $region6: #{_lambda_.1} parent=0 // loop_footer
    %s30 = sadd.s32 1, %s26
  $region7: #{_lambda_.1} parent=0 // loop_footer_branch
    %25 = sbr.rel target = $region3
  $region8: #{_lambda_.1} parent=0 // loop_exit
    _

</llo_original>
